<compile_context>
chip_gen: v5e
topology: v5e:2x2
jax: 0.10.0
libtpu: 0.0.40
codegen_flags: <defaults>
</compile_context>

<pallas_src>
import jax
import jax.numpy as jnp
from jax import lax
from jax.experimental import pallas as pl
from jax.experimental.pallas import tpu as pltpu

BN_EPS = 1e-5
# TODO(synk): set to jnp.bfloat16 at production channel counts (C % 128 == 0); f32 is kept here
#             so the toy-size check matches the f32 reference tightly.
MATMUL_DTYPE = jnp.float32


def _vmem_limit_bytes():
    """Scoped-VMEM budget derived from the actual chip (~75% of physical, capped)."""
    try:
        cap = int(getattr(pltpu.get_tpu_info(), "vmem_capacity_bytes", 0))
    except Exception:
        cap = 0
    if cap <= 0:
        return 32 * 1024 * 1024                      # safe fallback on v5e/v6e/v7x
    return min(cap * 3 // 4, 100 * 1024 * 1024)


# ------------------------------- kernels -----------------------------------------


def _conv_s2_kernel(x_ref, w_ref, z_ref, ssum_ref, ssq_ref, phs_ref):
    """Block 1: stride-2 dw3x3 + 1x1 (folded) as 9 accumulated MXU matmuls + BN1 partial sums.

    x_ref   : (2*Ho, Wo, 2*Cin) raw NHWC rows, W column-pairs packed on the lane axis
              (free wrapper reshape); no pre-padding, no wrapper-side phase split.
    w_ref   : (9, Cin, Cmid)    folded per-tap depthwise*pointwise weights.
    z_ref   : (Ho, Wo, Cmid)    pre-BN conv output tile.
    ssum_ref, ssq_ref : (1, Cmid) per-step partial sum / sum-of-squares (reduced outside).
    phs_ref : (2, 2, Ho+1, Wo+8, Cin) VMEM scratch: the 4 stride-2 phases, each with a zero
              top row and a zero 8-column left pad (so the interior store is sublane-aligned).
    """
    Ho, Wo, c_mid = z_ref.shape
    cin2 = x_ref.shape[-1]
    cin = cin2 // 2

    # Zero only the border strips that are read as padding.  Done every step (tiny) so it is
    # correct even when the "parallel" batch axis is sharded across TensorCores.
    phs_ref[:, :, 0:1, :, :] = jnp.zeros((2, 2, 1, Wo + 8, cin), phs_ref.dtype)
    phs_ref[:, :, :, 0:8, :] = jnp.zeros((2, 2, Ho + 1, 8, cin), phs_ref.dtype)

    # In-kernel phase split: rows via a leading-dim reshape (layout no-op), columns via the
    # lane-packed pairs.  Interior store is at W offset 8 (sublane-aligned, unmasked vst).
    xp = x_ref[...].reshape(Ho, 2, Wo, cin2)
    for r in (0, 1):
        for s in (0, 1):
            phs_ref[r, s, 1:Ho + 1, 8:Wo + 8, :] = xp[:, r, :, s * cin:(s + 1) * cin]

    # tap (ki,kj) reads x[2i+ki-1, 2j+kj-1]:
    #   row phase r = (ki+1)%2, scratch row offset 0 (ki==0) else 1
    #   col phase s = (kj+1)%2, scratch col offset 7 (kj==0) else 8
    # Nine accumulated MXU matmuls -> no (Ho*Wo, 9*Cin) patches buffer, no lane concat.
    acc = None
    for ki in range(3):
        r = (ki + 1) % 2
        ri = 0 if ki == 0 else 1
        for kj in range(3):
            s = (kj + 1) % 2
            cj = 7 if kj == 0 else 8
            tap = phs_ref[r, s, ri:ri + Ho, cj:cj + Wo, :]
            tap2d = tap.reshape(Ho * Wo, cin).astype(w_ref.dtype)
            part = jnp.dot(tap2d, w_ref[3 * ki + kj],
                           preferred_element_type=jnp.float32)
            acc = part if acc is None else acc + part

    z_ref[...] = acc.reshape(Ho, Wo, c_mid)
    ssum_ref[...] = jnp.sum(acc, axis=0, keepdims=True)
    ssq_ref[...] = jnp.sum(acc * acc, axis=0, keepdims=True)


def _bn_conv_s1_kernel(z1_ref, s_ref, b_ref, w_ref, z2_ref, ssum_ref, ssq_ref, ypad_ref):
    """Block 2: fused BN1(scale/shift)+ReLU, then stride-1 folded dw3x3+1x1 conv as 9
    accumulated MXU matmuls, plus per-step BN2 partial sums.

    ypad_ref : (Ho+2, Wo+16, Cin) VMEM halo scratch; data lives at rows 1..Ho, cols 8..Wo+7
    so the interior store is sublane-aligned and the 9 stride-1 taps are contiguous slices.
    """
    Ho, Wo, cin = z1_ref.shape
    c_out = z2_ref.shape[-1]
    Wp = ypad_ref.shape[1]                           # Wo + 16

    # BN1 + ReLU, fused (scale/shift precomputed in the wrapper epilogue).
    y = jnp.maximum(z1_ref[...] * s_ref[...].reshape(1, 1, cin)
                    + b_ref[...].reshape(1, 1, cin), 0.0)

    # Zero only the border strips that are read as padding (every step: megacore-safe).
    zrow = jnp.zeros((1, Wp, cin), ypad_ref.dtype)
    zcol = jnp.zeros((Ho + 2, 8, cin), ypad_ref.dtype)
    ypad_ref[0:1, :, :] = zrow
    ypad_ref[Ho + 1:Ho + 2, :, :] = zrow
    ypad_ref[:, 0:8, :] = zcol
    ypad_ref[:, Wo + 8:Wo + 16, :] = zcol
    ypad_ref[1:Ho + 1, 8:Wo + 8, :] = y              # sublane-aligned interior store

    acc = None
    for ki in range(3):
        for kj in range(3):
            tap = ypad_ref[ki:ki + Ho, kj + 7:kj + 7 + Wo, :]
            tap2d = tap.reshape(Ho * Wo, cin).astype(w_ref.dtype)
            part = jnp.dot(tap2d, w_ref[3 * ki + kj],
                           preferred_element_type=jnp.float32)
            acc = part if acc is None else acc + part

    z2_ref[...] = acc.reshape(Ho, Wo, c_out)
    ssum_ref[...] = jnp.sum(acc, axis=0, keepdims=True)
    ssq_ref[...] = jnp.sum(acc * acc, axis=0, keepdims=True)


def _bn_relu_kernel(z_ref, s_ref, b_ref, o_ref):
    """Final BN2 + ReLU as a tiled, lane-dense elementwise pass."""
    o_ref[...] = jnp.maximum(z_ref[...] * s_ref[...] + b_ref[...], 0.0)


# ------------------------------ pallas_call wrappers ------------------------------


def _conv_block_s2(x_pairs, w_fold, c_mid, vmem_limit):
    B, H, Wo, cin2 = x_pairs.shape
    Ho = H // 2
    cin = cin2 // 2
    return pl.pallas_call(
        _conv_s2_kernel,
        grid=(B,),
        in_specs=[
            pl.BlockSpec((None, H, Wo, cin2), lambda b: (b, 0, 0, 0)),
            pl.BlockSpec(w_fold.shape, lambda b: (0, 0, 0)),
        ],
        out_specs=[
            pl.BlockSpec((None, Ho, Wo, c_mid), lambda b: (b, 0, 0, 0)),
            pl.BlockSpec((None, 1, c_mid), lambda b: (b, 0, 0)),   # per-step partial stats
            pl.BlockSpec((None, 1, c_mid), lambda b: (b, 0, 0)),
        ],
        out_shape=[
            jax.ShapeDtypeStruct((B, Ho, Wo, c_mid), jnp.float32),
            jax.ShapeDtypeStruct((B, 1, c_mid), jnp.float32),
            jax.ShapeDtypeStruct((B, 1, c_mid), jnp.float32),
        ],
        scratch_shapes=[pltpu.VMEM((2, 2, Ho + 1, Wo + 8, cin), jnp.float32)],
        compiler_params=pltpu.CompilerParams(
            dimension_semantics=("parallel",),       # per-step stats -> megacore-shardable
            vmem_limit_bytes=vmem_limit),
    )(x_pairs, w_fold)


def _conv_block_s1(z1, scale1, shift1, w_fold, c_out, vmem_limit):
    B, Ho, Wo, cin = z1.shape
    return pl.pallas_call(
        _bn_conv_s1_kernel,
        grid=(B,),
        in_specs=[
            pl.BlockSpec((None, Ho, Wo, cin), lambda b: (b, 0, 0, 0)),
            pl.BlockSpec((1, cin), lambda b: (0, 0)),
            pl.BlockSpec((1, cin), lambda b: (0, 0)),
            pl.BlockSpec(w_fold.shape, lambda b: (0, 0, 0)),
        ],
        out_specs=[
            pl.BlockSpec((None, Ho, Wo, c_out), lambda b: (b, 0, 0, 0)),
            pl.BlockSpec((None, 1, c_out), lambda b: (b, 0, 0)),
            pl.BlockSpec((None, 1, c_out), lambda b: (b, 0, 0)),
        ],
        out_shape=[
            jax.ShapeDtypeStruct((B, Ho, Wo, c_out), jnp.float32),
            jax.ShapeDtypeStruct((B, 1, c_out), jnp.float32),
            jax.ShapeDtypeStruct((B, 1, c_out), jnp.float32),
        ],
        scratch_shapes=[pltpu.VMEM((Ho + 2, Wo + 16, cin), jnp.float32)],
        compiler_params=pltpu.CompilerParams(
            dimension_semantics=("parallel",),
            vmem_limit_bytes=vmem_limit),
    )(z1, scale1, shift1, w_fold)


def _bn_relu(z, scale, shift, vmem_limit):
    """Final BN + ReLU with a lane-dense output view (packs pixels when C < 128)."""
    B, Ho, Wo, C = z.shape
    total = B * Ho * Wo * C
    if C % 128 == 0:
        z2d, s2d, b2d = z.reshape(-1, C), scale, shift
    elif total % 128 == 0 and 128 % C == 0:
        reps = 128 // C
        z2d = z.reshape(-1, 128)                     # lane-dense: 128/C pixels per row
        s2d = jnp.tile(scale, (1, reps))
        b2d = jnp.tile(shift, (1, reps))
    else:
        z2d, s2d, b2d = z.reshape(-1, C), scale, shift
    R, K = z2d.shape
    tr = R
    for cand in (4096, 2048, 1024, 512, 256, 128, 64, 32, 16, 8):
        if cand <= R and R % cand == 0:
            tr = cand
            break
    out = pl.pallas_call(
        _bn_relu_kernel,
        grid=(R // tr,),
        in_specs=[
            pl.BlockSpec((tr, K), lambda i: (i, 0)),
            pl.BlockSpec((1, K), lambda i: (0, 0)),
            pl.BlockSpec((1, K), lambda i: (0, 0)),
        ],
        out_specs=pl.BlockSpec((tr, K), lambda i: (i, 0)),
        out_shape=jax.ShapeDtypeStruct((R, K), jnp.float32),
        compiler_params=pltpu.CompilerParams(
            dimension_semantics=("parallel",),
            vmem_limit_bytes=vmem_limit),
    )(z2d, s2d, b2d)
    return out.reshape(B, Ho, Wo, C)


# ------------------------------ wrapper glue (layout + folds) ---------------------


def _fold_dw_pw(w_dw, w_pw):
    """Fold depthwise (9, Cin) and pointwise (Cin, Cout) into per-tap weights (9, Cin, Cout):
    W[t, c, co] = w_dw[t, c] * w_pw[c, co]."""
    return (w_dw[:, :, None] * w_pw[None, :, :]).astype(MATMUL_DTYPE)


def _bn_scale_shift(ssum, ssq, gamma, beta, n):
    """Training-mode BN (biased variance) folded into a per-channel scale/shift."""
    # TODO(synk): for very large N*H*W switch to a centered / two-pass variance (f32 E[x^2]-E[x]^2
    #             can lose precision); fine at these sizes.
    mean = ssum / n
    var = ssq / n - mean * mean
    inv = lax.rsqrt(var + BN_EPS)
    scale = gamma * inv
    shift = beta - mean * scale
    return scale, shift


def sep_conv_forward(x_nchw, p):
    """Full SepConv forward.  x_nchw: (B, C_in, H, W) f32 -> (B, C_out, H//2, W//2)."""
    x = jnp.transpose(x_nchw, (0, 2, 3, 1))          # NCHW -> NHWC
    B, H, W, c_in = x.shape
    assert H % 2 == 0 and W % 2 == 0, "stride-2 path assumes even spatial dims"
    c_mid = p["w_pw1"].shape[1]
    c_out = p["w_pw2"].shape[1]
    vmem_limit = _vmem_limit_bytes()

    # W column-pairs packed on the lane axis: a FREE row-major reshape (no extra HBM pass).
    x_pairs = x.reshape(B, H, W // 2, 2 * c_in)

    # ---- block 1: dw3x3 stride-2 + 1x1 as 9 accumulated matmuls, plus BN1 partial stats ----
    wf1 = _fold_dw_pw(p["w_dw1"], p["w_pw1"])
    z1, s1p, q1p = _conv_block_s2(x_pairs, wf1, c_mid, vmem_limit)
    n1 = B * z1.shape[1] * z1.shape[2]
    scale1, shift1 = _bn_scale_shift(jnp.sum(s1p, axis=0), jnp.sum(q1p, axis=0),
                                     p["gamma1"], p["beta1"], n1)

    # ---- block 2: BN1+ReLU fused in-kernel, dw3x3 stride-1 + 1x1, BN2 partial stats ----
    wf2 = _fold_dw_pw(p["w_dw2"], p["w_pw2"])
    z2, s2p, q2p = _conv_block_s1(z1, scale1, shift1, wf2, c_out, vmem_limit)
    n2 = B * z2.shape[1] * z2.shape[2]
    scale2, shift2 = _bn_scale_shift(jnp.sum(s2p, axis=0), jnp.sum(q2p, axis=0),
                                     p["gamma2"], p["beta2"], n2)

    # ---- final BN2 + ReLU (lane-dense elementwise pass) ----
    y = _bn_relu(z2, scale2, shift2, vmem_limit)
    return jnp.transpose(y, (0, 3, 1, 2))            # NHWC -> NCHW


# ------------------------------ parameters (deterministic) ------------------------


def init_params(key, c_in, c_out):
    """Returns (torch-layout params for the reference, kernel-layout params)."""
    ks = jax.random.split(key, 8)
    w_dw1 = 0.3 * jax.random.normal(ks[0], (c_in, 1, 3, 3), jnp.float32)     # groups=c_in
    w_pw1 = 0.3 * jax.random.normal(ks[1], (c_in, c_in, 1, 1), jnp.float32)
    gamma1 = 1.0 + 0.1 * jax.random.normal(ks[2], (c_in,), jnp.float32)
    beta1 = 0.1 * jax.random.normal(ks[3], (c_in,), jnp.float32)
    w_dw2 = 0.3 * jax.random.normal(ks[4], (c_in, 1, 3, 3), jnp.float32)     # groups=c_in
    w_pw2 = 0.3 * jax.random.normal(ks[5], (c_out, c_in, 1, 1), jnp.float32)
    gamma2 = 1.0 + 0.1 * jax.random.normal(ks[6], (c_out,), jnp.float32)
    beta2 = 0.1 * jax.random.normal(ks[7], (c_out,), jnp.float32)

    torch_p = dict(w_dw1=w_dw1, w_pw1=w_pw1, gamma1=gamma1, beta1=beta1,
                   w_dw2=w_dw2, w_pw2=w_pw2, gamma2=gamma2, beta2=beta2)

    def dw_to_kernel(w):   # (C,1,3,3) -> (9, C), tap index t = 3*ki + kj
        return jnp.transpose(w[:, 0], (1, 2, 0)).reshape(9, w.shape[0])

    def pw_to_kernel(w):   # (Cout,Cin,1,1) -> (Cin, Cout)
        return jnp.transpose(w[:, :, 0, 0], (1, 0))

    kern_p = dict(
        w_dw1=dw_to_kernel(w_dw1), w_pw1=pw_to_kernel(w_pw1),
        gamma1=gamma1.reshape(1, -1), beta1=beta1.reshape(1, -1),
        w_dw2=dw_to_kernel(w_dw2), w_pw2=pw_to_kernel(w_pw2),
        gamma2=gamma2.reshape(1, -1), beta2=beta2.reshape(1, -1),
    )
    return torch_p, kern_p


# ------------------------------ pure-JAX reference (mirrors PyTorch) --------------


def ref_forward(x, p):
    dn = ("NCHW", "OIHW", "NCHW")
    prec = lax.Precision.HIGHEST

    def dwconv(x, w, stride):
        return lax.conv_general_dilated(x, w, (stride, stride), ((1, 1), (1, 1)),
                                        dimension_numbers=dn,
                                        feature_group_count=w.shape[0],
                                        precision=prec)

    def pwconv(x, w):
        return lax.conv_general_dilated(x, w, (1, 1), ((0, 0), (0, 0)),
                                        dimension_numbers=dn, precision=prec)

    def bn_relu(x, gamma, beta):
        mean = jnp.mean(x, axis=(0, 2, 3), keepdims=True)
        var = jnp.mean(jnp.square(x - mean), axis=(0, 2, 3), keepdims=True)
        xn = (x - mean) / jnp.sqrt(var + BN_EPS)
        xn = xn * gamma.reshape(1, -1, 1, 1) + beta.reshape(1, -1, 1, 1)
        return jnp.maximum(xn, 0.0)

    y = bn_relu(pwconv(dwconv(x, p["w_dw1"], 2), p["w_pw1"]), p["gamma1"], p["beta1"])
    y = bn_relu(pwconv(dwconv(y, p["w_dw2"], 1), p["w_pw2"]), p["gamma2"], p["beta2"])
    return y


if __name__ == "__main__":
    B, C_in, H, W = 2, 4, 16, 16
    C_out = 8

    key = jax.random.PRNGKey(0)
    kx, kp = jax.random.split(key)
    x = jax.random.normal(kx, (B, C_in, H, W), jnp.float32)

    torch_p, kern_p = init_params(kp, C_in, C_out)

    out = jax.jit(sep_conv_forward)(x, kern_p)
    out = jax.block_until_ready(out)
    assert out.shape == (B, C_out, H // 2, W // 2), out.shape

    ref = ref_forward(x, torch_p)
    max_err = float(jnp.max(jnp.abs(out - ref)))
    if not max_err < 2e-4:
        raise AssertionError(f"Pallas/reference mismatch, max abs err = {max_err}")

    print("KERNEL_OK")
</pallas_src>

<mosaic_0001>
module attributes {stable_mosaic.version = 11 : i64} {
  func.func @_conv_s2_kernel(%arg0: i32, %arg1: memref<1x16x8x8xf32, #tpu.memory_space<vmem>>, %arg2: memref<9x4x4xf32, #tpu.memory_space<vmem>>, %arg3: memref<1x8x8x4xf32, #tpu.memory_space<vmem>>, %arg4: memref<1x1x4xf32, #tpu.memory_space<vmem>>, %arg5: memref<1x1x4xf32, #tpu.memory_space<vmem>>, %arg6: memref<2x2x9x16x4xf32, #tpu.memory_space<vmem>>) attributes {dimension_semantics = [#tpu.dimension_semantics<parallel>], iteration_bounds = array<i64: 2>, scalar_prefetch = 0 : i64, scratch_operands = 1 : i64, tpu.core_type = #tpu.core_type<tc>, window_params = [{transform_indices = @transform_0, window_bounds = array<i64: 1, 16, 8, 8>}, {pipeline_mode = #tpu.pipeline_mode<synchronous>, transform_indices = @transform_1, window_bounds = array<i64: 9, 4, 4>}, {transform_indices = @transform_2, window_bounds = array<i64: 1, 8, 8, 4>}, {transform_indices = @transform_3, window_bounds = array<i64: 1, 1, 4>}, {transform_indices = @transform_4, window_bounds = array<i64: 1, 1, 4>}]} {
    %cst = arith.constant 0.000000e+00 : f32
    %0 = vector.broadcast %cst : f32 to vector<2x2x1x16x4xf32>
    %c0 = arith.constant 0 : index
    %c0_0 = arith.constant 0 : index
    %c0_1 = arith.constant 0 : index
    %c0_2 = arith.constant 0 : index
    %c0_3 = arith.constant 0 : index
    %1 = vector.load %arg6[%c0, %c0_0, %c0_1, %c0_2, %c0_3] : memref<2x2x9x16x4xf32, #tpu.memory_space<vmem>>, vector<2x2x1x16x4xf32>
    tpu.vector_store %arg6[%c0, %c0_0, %c0_1, %c0_2, %c0_3], %0 {strides = array<i32>} : memref<2x2x9x16x4xf32, #tpu.memory_space<vmem>>, vector<2x2x1x16x4xf32>,
    %cst_4 = arith.constant 0.000000e+00 : f32
    %2 = vector.broadcast %cst_4 : f32 to vector<2x2x9x8x4xf32>
    %c0_5 = arith.constant 0 : index
    %c0_6 = arith.constant 0 : index
    %c0_7 = arith.constant 0 : index
    %c0_8 = arith.constant 0 : index
    %c0_9 = arith.constant 0 : index
    %3 = vector.load %arg6[%c0_5, %c0_6, %c0_7, %c0_8, %c0_9] : memref<2x2x9x16x4xf32, #tpu.memory_space<vmem>>, vector<2x2x9x8x4xf32>
    tpu.vector_store %arg6[%c0_5, %c0_6, %c0_7, %c0_8, %c0_9], %2 {strides = array<i32>} : memref<2x2x9x16x4xf32, #tpu.memory_space<vmem>>, vector<2x2x9x8x4xf32>,
    %c0_10 = arith.constant 0 : index
    %c0_11 = arith.constant 0 : index
    %c0_12 = arith.constant 0 : index
    %c0_13 = arith.constant 0 : index
    %4 = vector.load %arg1[%c0_10, %c0_11, %c0_12, %c0_13] : memref<1x16x8x8xf32, #tpu.memory_space<vmem>>, vector<1x16x8x8xf32>
    %5 = vector.shape_cast %4 : vector<1x16x8x8xf32> to vector<16x8x8xf32>
    %6 = vector.shape_cast %5 : vector<16x8x8xf32> to vector<8x2x8x8xf32>
    %7 = vector.extract_strided_slice %6 {offsets = [0, 0, 0, 0], sizes = [8, 1, 8, 4], strides = [1, 1, 1, 1]} : vector<8x2x8x8xf32> to vector<8x1x8x4xf32>
    %8 = vector.shape_cast %7 : vector<8x1x8x4xf32> to vector<8x8x4xf32>
    %c0_14 = arith.constant 0 : index
    %c0_15 = arith.constant 0 : index
    %c1 = arith.constant 1 : index
    %c8 = arith.constant 8 : index
    %c0_16 = arith.constant 0 : index
    %9 = vector.load %arg6[%c0_14, %c0_15, %c1, %c8, %c0_16] : memref<2x2x9x16x4xf32, #tpu.memory_space<vmem>>, vector<1x1x8x8x4xf32>
    %10 = vector.shape_cast %9 : vector<1x1x8x8x4xf32> to vector<8x8x4xf32>
    %11 = vector.shape_cast %8 : vector<8x8x4xf32> to vector<1x1x8x8x4xf32>
    tpu.vector_store %arg6[%c0_14, %c0_15, %c1, %c8, %c0_16], %11 {strides = array<i32>} : memref<2x2x9x16x4xf32, #tpu.memory_space<vmem>>, vector<1x1x8x8x4xf32>,
    %12 = vector.extract_strided_slice %6 {offsets = [0, 0, 0, 4], sizes = [8, 1, 8, 4], strides = [1, 1, 1, 1]} : vector<8x2x8x8xf32> to vector<8x1x8x4xf32>
    %13 = vector.shape_cast %12 : vector<8x1x8x4xf32> to vector<8x8x4xf32>
    %c0_17 = arith.constant 0 : index
    %c1_18 = arith.constant 1 : index
    %c1_19 = arith.constant 1 : index
    %c8_20 = arith.constant 8 : index
    %c0_21 = arith.constant 0 : index
    %14 = vector.load %arg6[%c0_17, %c1_18, %c1_19, %c8_20, %c0_21] : memref<2x2x9x16x4xf32, #tpu.memory_space<vmem>>, vector<1x1x8x8x4xf32>
    %15 = vector.shape_cast %14 : vector<1x1x8x8x4xf32> to vector<8x8x4xf32>
    %16 = vector.shape_cast %13 : vector<8x8x4xf32> to vector<1x1x8x8x4xf32>
    tpu.vector_store %arg6[%c0_17, %c1_18, %c1_19, %c8_20, %c0_21], %16 {strides = array<i32>} : memref<2x2x9x16x4xf32, #tpu.memory_space<vmem>>, vector<1x1x8x8x4xf32>,
    %17 = vector.extract_strided_slice %6 {offsets = [0, 1, 0, 0], sizes = [8, 1, 8, 4], strides = [1, 1, 1, 1]} : vector<8x2x8x8xf32> to vector<8x1x8x4xf32>
    %18 = vector.shape_cast %17 : vector<8x1x8x4xf32> to vector<8x8x4xf32>
    %c1_22 = arith.constant 1 : index
    %c0_23 = arith.constant 0 : index
    %c1_24 = arith.constant 1 : index
    %c8_25 = arith.constant 8 : index
    %c0_26 = arith.constant 0 : index
    %19 = vector.load %arg6[%c1_22, %c0_23, %c1_24, %c8_25, %c0_26] : memref<2x2x9x16x4xf32, #tpu.memory_space<vmem>>, vector<1x1x8x8x4xf32>
    %20 = vector.shape_cast %19 : vector<1x1x8x8x4xf32> to vector<8x8x4xf32>
    %21 = vector.shape_cast %18 : vector<8x8x4xf32> to vector<1x1x8x8x4xf32>
    tpu.vector_store %arg6[%c1_22, %c0_23, %c1_24, %c8_25, %c0_26], %21 {strides = array<i32>} : memref<2x2x9x16x4xf32, #tpu.memory_space<vmem>>, vector<1x1x8x8x4xf32>,
    %22 = vector.extract_strided_slice %6 {offsets = [0, 1, 0, 4], sizes = [8, 1, 8, 4], strides = [1, 1, 1, 1]} : vector<8x2x8x8xf32> to vector<8x1x8x4xf32>
    %23 = vector.shape_cast %22 : vector<8x1x8x4xf32> to vector<8x8x4xf32>
    %c1_27 = arith.constant 1 : index
    %c1_28 = arith.constant 1 : index
    %c1_29 = arith.constant 1 : index
    %c8_30 = arith.constant 8 : index
    %c0_31 = arith.constant 0 : index
    %24 = vector.load %arg6[%c1_27, %c1_28, %c1_29, %c8_30, %c0_31] : memref<2x2x9x16x4xf32, #tpu.memory_space<vmem>>, vector<1x1x8x8x4xf32>
    %25 = vector.shape_cast %24 : vector<1x1x8x8x4xf32> to vector<8x8x4xf32>
    %26 = vector.shape_cast %23 : vector<8x8x4xf32> to vector<1x1x8x8x4xf32>
    tpu.vector_store %arg6[%c1_27, %c1_28, %c1_29, %c8_30, %c0_31], %26 {strides = array<i32>} : memref<2x2x9x16x4xf32, #tpu.memory_space<vmem>>, vector<1x1x8x8x4xf32>,
    %c1_32 = arith.constant 1 : index
    %c1_33 = arith.constant 1 : index
    %c0_34 = arith.constant 0 : index
    %c7 = arith.constant 7 : index
    %c0_35 = arith.constant 0 : index
    %27 = vector.load %arg6[%c1_32, %c1_33, %c0_34, %c7, %c0_35] : memref<2x2x9x16x4xf32, #tpu.memory_space<vmem>>, vector<1x1x8x8x4xf32>
    %28 = vector.shape_cast %27 : vector<1x1x8x8x4xf32> to vector<8x8x4xf32>
    %29 = vector.shape_cast %28 : vector<8x8x4xf32> to vector<64x4xf32>
    %c0_36 = arith.constant 0 : index
    %c0_37 = arith.constant 0 : index
    %c0_38 = arith.constant 0 : index
    %30 = vector.load %arg2[%c0_36, %c0_37, %c0_38] : memref<9x4x4xf32, #tpu.memory_space<vmem>>, vector<1x4x4xf32>
    %31 = vector.shape_cast %30 : vector<1x4x4xf32> to vector<4x4xf32>
    %cst_39 = arith.constant dense<0.000000e+00> : vector<64x4xf32>
    %32 = tpu.matmul %29, %31, %cst_39 {dimension_numbers = #tpu.dot_dimension_numbers<[1], [0], [0], [1], [0, 0, 1, 1], [], []>} : vector<64x4xf32>, vector<4x4xf32>, vector<64x4xf32> -> vector<64x4xf32>
    %c1_40 = arith.constant 1 : index
    %c0_41 = arith.constant 0 : index
    %c0_42 = arith.constant 0 : index
    %c8_43 = arith.constant 8 : index
    %c0_44 = arith.constant 0 : index
    %33 = vector.load %arg6[%c1_40, %c0_41, %c0_42, %c8_43, %c0_44] : memref<2x2x9x16x4xf32, #tpu.memory_space<vmem>>, vector<1x1x8x8x4xf32>
    %34 = vector.shape_cast %33 : vector<1x1x8x8x4xf32> to vector<8x8x4xf32>
    %35 = vector.shape_cast %34 : vector<8x8x4xf32> to vector<64x4xf32>
    %c1_45 = arith.constant 1 : index
    %c0_46 = arith.constant 0 : index
    %c0_47 = arith.constant 0 : index
    %36 = vector.load %arg2[%c1_45, %c0_46, %c0_47] : memref<9x4x4xf32, #tpu.memory_space<vmem>>, vector<1x4x4xf32>
    %37 = vector.shape_cast %36 : vector<1x4x4xf32> to vector<4x4xf32>
    %cst_48 = arith.constant dense<0.000000e+00> : vector<64x4xf32>
    %38 = tpu.matmul %35, %37, %cst_48 {dimension_numbers = #tpu.dot_dimension_numbers<[1], [0], [0], [1], [0, 0, 1, 1], [], []>} : vector<64x4xf32>, vector<4x4xf32>, vector<64x4xf32> -> vector<64x4xf32>
    %39 = arith.addf %32, %38 : vector<64x4xf32>
    %c1_49 = arith.constant 1 : index
    %c1_50 = arith.constant 1 : index
    %c0_51 = arith.constant 0 : index
    %c8_52 = arith.constant 8 : index
    %c0_53 = arith.constant 0 : index
    %40 = vector.load %arg6[%c1_49, %c1_50, %c0_51, %c8_52, %c0_53] : memref<2x2x9x16x4xf32, #tpu.memory_space<vmem>>, vector<1x1x8x8x4xf32>
    %41 = vector.shape_cast %40 : vector<1x1x8x8x4xf32> to vector<8x8x4xf32>
    %42 = vector.shape_cast %41 : vector<8x8x4xf32> to vector<64x4xf32>
    %c2 = arith.constant 2 : index
    %c0_54 = arith.constant 0 : index
    %c0_55 = arith.constant 0 : index
    %43 = vector.load %arg2[%c2, %c0_54, %c0_55] : memref<9x4x4xf32, #tpu.memory_space<vmem>>, vector<1x4x4xf32>
    %44 = vector.shape_cast %43 : vector<1x4x4xf32> to vector<4x4xf32>
    %cst_56 = arith.constant dense<0.000000e+00> : vector<64x4xf32>
    %45 = tpu.matmul %42, %44, %cst_56 {dimension_numbers = #tpu.dot_dimension_numbers<[1], [0], [0], [1], [0, 0, 1, 1], [], []>} : vector<64x4xf32>, vector<4x4xf32>, vector<64x4xf32> -> vector<64x4xf32>
    %46 = arith.addf %39, %45 : vector<64x4xf32>
    %c0_57 = arith.constant 0 : index
    %c1_58 = arith.constant 1 : index
    %c1_59 = arith.constant 1 : index
    %c7_60 = arith.constant 7 : index
    %c0_61 = arith.constant 0 : index
    %47 = vector.load %arg6[%c0_57, %c1_58, %c1_59, %c7_60, %c0_61] : memref<2x2x9x16x4xf32, #tpu.memory_space<vmem>>, vector<1x1x8x8x4xf32>
    %48 = vector.shape_cast %47 : vector<1x1x8x8x4xf32> to vector<8x8x4xf32>
    %49 = vector.shape_cast %48 : vector<8x8x4xf32> to vector<64x4xf32>
    %c3 = arith.constant 3 : index
    %c0_62 = arith.constant 0 : index
    %c0_63 = arith.constant 0 : index
    %50 = vector.load %arg2[%c3, %c0_62, %c0_63] : memref<9x4x4xf32, #tpu.memory_space<vmem>>, vector<1x4x4xf32>
    %51 = vector.shape_cast %50 : vector<1x4x4xf32> to vector<4x4xf32>
    %cst_64 = arith.constant dense<0.000000e+00> : vector<64x4xf32>
    %52 = tpu.matmul %49, %51, %cst_64 {dimension_numbers = #tpu.dot_dimension_numbers<[1], [0], [0], [1], [0, 0, 1, 1], [], []>} : vector<64x4xf32>, vector<4x4xf32>, vector<64x4xf32> -> vector<64x4xf32>
    %53 = arith.addf %46, %52 : vector<64x4xf32>
    %c0_65 = arith.constant 0 : index
    %c0_66 = arith.constant 0 : index
    %c1_67 = arith.constant 1 : index
    %c8_68 = arith.constant 8 : index
    %c0_69 = arith.constant 0 : index
    %54 = vector.load %arg6[%c0_65, %c0_66, %c1_67, %c8_68, %c0_69] : memref<2x2x9x16x4xf32, #tpu.memory_space<vmem>>, vector<1x1x8x8x4xf32>
    %55 = vector.shape_cast %54 : vector<1x1x8x8x4xf32> to vector<8x8x4xf32>
    %56 = vector.shape_cast %55 : vector<8x8x4xf32> to vector<64x4xf32>
    %c4 = arith.constant 4 : index
    %c0_70 = arith.constant 0 : index
    %c0_71 = arith.constant 0 : index
    %57 = vector.load %arg2[%c4, %c0_70, %c0_71] : memref<9x4x4xf32, #tpu.memory_space<vmem>>, vector<1x4x4xf32>
    %58 = vector.shape_cast %57 : vector<1x4x4xf32> to vector<4x4xf32>
    %cst_72 = arith.constant dense<0.000000e+00> : vector<64x4xf32>
    %59 = tpu.matmul %56, %58, %cst_72 {dimension_numbers = #tpu.dot_dimension_numbers<[1], [0], [0], [1], [0, 0, 1, 1], [], []>} : vector<64x4xf32>, vector<4x4xf32>, vector<64x4xf32> -> vector<64x4xf32>
    %60 = arith.addf %53, %59 : vector<64x4xf32>
    %c0_73 = arith.constant 0 : index
    %c1_74 = arith.constant 1 : index
    %c1_75 = arith.constant 1 : index
    %c8_76 = arith.constant 8 : index
    %c0_77 = arith.constant 0 : index
    %61 = vector.load %arg6[%c0_73, %c1_74, %c1_75, %c8_76, %c0_77] : memref<2x2x9x16x4xf32, #tpu.memory_space<vmem>>, vector<1x1x8x8x4xf32>
    %62 = vector.shape_cast %61 : vector<1x1x8x8x4xf32> to vector<8x8x4xf32>
    %63 = vector.shape_cast %62 : vector<8x8x4xf32> to vector<64x4xf32>
    %c5 = arith.constant 5 : index
    %c0_78 = arith.constant 0 : index
    %c0_79 = arith.constant 0 : index
    %64 = vector.load %arg2[%c5, %c0_78, %c0_79] : memref<9x4x4xf32, #tpu.memory_space<vmem>>, vector<1x4x4xf32>
    %65 = vector.shape_cast %64 : vector<1x4x4xf32> to vector<4x4xf32>
    %cst_80 = arith.constant dense<0.000000e+00> : vector<64x4xf32>
    %66 = tpu.matmul %63, %65, %cst_80 {dimension_numbers = #tpu.dot_dimension_numbers<[1], [0], [0], [1], [0, 0, 1, 1], [], []>} : vector<64x4xf32>, vector<4x4xf32>, vector<64x4xf32> -> vector<64x4xf32>
    %67 = arith.addf %60, %66 : vector<64x4xf32>
    %c1_81 = arith.constant 1 : index
    %c1_82 = arith.constant 1 : index
    %c1_83 = arith.constant 1 : index
    %c7_84 = arith.constant 7 : index
    %c0_85 = arith.constant 0 : index
    %68 = vector.load %arg6[%c1_81, %c1_82, %c1_83, %c7_84, %c0_85] : memref<2x2x9x16x4xf32, #tpu.memory_space<vmem>>, vector<1x1x8x8x4xf32>
    %69 = vector.shape_cast %68 : vector<1x1x8x8x4xf32> to vector<8x8x4xf32>
    %70 = vector.shape_cast %69 : vector<8x8x4xf32> to vector<64x4xf32>
    %c6 = arith.constant 6 : index
    %c0_86 = arith.constant 0 : index
    %c0_87 = arith.constant 0 : index
    %71 = vector.load %arg2[%c6, %c0_86, %c0_87] : memref<9x4x4xf32, #tpu.memory_space<vmem>>, vector<1x4x4xf32>
    %72 = vector.shape_cast %71 : vector<1x4x4xf32> to vector<4x4xf32>
    %cst_88 = arith.constant dense<0.000000e+00> : vector<64x4xf32>
    %73 = tpu.matmul %70, %72, %cst_88 {dimension_numbers = #tpu.dot_dimension_numbers<[1], [0], [0], [1], [0, 0, 1, 1], [], []>} : vector<64x4xf32>, vector<4x4xf32>, vector<64x4xf32> -> vector<64x4xf32>
    %74 = arith.addf %67, %73 : vector<64x4xf32>
    %c1_89 = arith.constant 1 : index
    %c0_90 = arith.constant 0 : index
    %c1_91 = arith.constant 1 : index
    %c8_92 = arith.constant 8 : index
    %c0_93 = arith.constant 0 : index
    %75 = vector.load %arg6[%c1_89, %c0_90, %c1_91, %c8_92, %c0_93] : memref<2x2x9x16x4xf32, #tpu.memory_space<vmem>>, vector<1x1x8x8x4xf32>
    %76 = vector.shape_cast %75 : vector<1x1x8x8x4xf32> to vector<8x8x4xf32>
    %77 = vector.shape_cast %76 : vector<8x8x4xf32> to vector<64x4xf32>
    %c7_94 = arith.constant 7 : index
    %c0_95 = arith.constant 0 : index
    %c0_96 = arith.constant 0 : index
    %78 = vector.load %arg2[%c7_94, %c0_95, %c0_96] : memref<9x4x4xf32, #tpu.memory_space<vmem>>, vector<1x4x4xf32>
    %79 = vector.shape_cast %78 : vector<1x4x4xf32> to vector<4x4xf32>
    %cst_97 = arith.constant dense<0.000000e+00> : vector<64x4xf32>
    %80 = tpu.matmul %77, %79, %cst_97 {dimension_numbers = #tpu.dot_dimension_numbers<[1], [0], [0], [1], [0, 0, 1, 1], [], []>} : vector<64x4xf32>, vector<4x4xf32>, vector<64x4xf32> -> vector<64x4xf32>
    %81 = arith.addf %74, %80 : vector<64x4xf32>
    %c1_98 = arith.constant 1 : index
    %c1_99 = arith.constant 1 : index
    %c1_100 = arith.constant 1 : index
    %c8_101 = arith.constant 8 : index
    %c0_102 = arith.constant 0 : index
    %82 = vector.load %arg6[%c1_98, %c1_99, %c1_100, %c8_101, %c0_102] : memref<2x2x9x16x4xf32, #tpu.memory_space<vmem>>, vector<1x1x8x8x4xf32>
    %83 = vector.shape_cast %82 : vector<1x1x8x8x4xf32> to vector<8x8x4xf32>
    %84 = vector.shape_cast %83 : vector<8x8x4xf32> to vector<64x4xf32>
    %c8_103 = arith.constant 8 : index
    %c0_104 = arith.constant 0 : index
    %c0_105 = arith.constant 0 : index
    %85 = vector.load %arg2[%c8_103, %c0_104, %c0_105] : memref<9x4x4xf32, #tpu.memory_space<vmem>>, vector<1x4x4xf32>
    %86 = vector.shape_cast %85 : vector<1x4x4xf32> to vector<4x4xf32>
    %cst_106 = arith.constant dense<0.000000e+00> : vector<64x4xf32>
    %87 = tpu.matmul %84, %86, %cst_106 {dimension_numbers = #tpu.dot_dimension_numbers<[1], [0], [0], [1], [0, 0, 1, 1], [], []>} : vector<64x4xf32>, vector<4x4xf32>, vector<64x4xf32> -> vector<64x4xf32>
    %88 = arith.addf %81, %87 : vector<64x4xf32>
    %89 = vector.shape_cast %88 : vector<64x4xf32> to vector<8x8x4xf32>
    %c0_107 = arith.constant 0 : index
    %c0_108 = arith.constant 0 : index
    %c0_109 = arith.constant 0 : index
    %c0_110 = arith.constant 0 : index
    %90 = vector.load %arg3[%c0_107, %c0_108, %c0_109, %c0_110] : memref<1x8x8x4xf32, #tpu.memory_space<vmem>>, vector<1x8x8x4xf32>
    %91 = vector.shape_cast %90 : vector<1x8x8x4xf32> to vector<8x8x4xf32>
    %92 = vector.shape_cast %89 : vector<8x8x4xf32> to vector<1x8x8x4xf32>
    tpu.vector_store %arg3[%c0_107, %c0_108, %c0_109, %c0_110], %92 {strides = array<i32>} : memref<1x8x8x4xf32, #tpu.memory_space<vmem>>, vector<1x8x8x4xf32>,
    %cst_111 = arith.constant dense<0.000000e+00> : vector<4xf32>
    %93 = vector.multi_reduction <add>, %88, %cst_111 [0] : vector<64x4xf32> to vector<4xf32>
    %94 = vector.shape_cast %93 : vector<4xf32> to vector<1x4xf32>
    %c0_112 = arith.constant 0 : index
    %c0_113 = arith.constant 0 : index
    %c0_114 = arith.constant 0 : index
    %95 = vector.load %arg4[%c0_112, %c0_113, %c0_114] : memref<1x1x4xf32, #tpu.memory_space<vmem>>, vector<1x1x4xf32>
    %96 = vector.shape_cast %95 : vector<1x1x4xf32> to vector<1x4xf32>
    %97 = vector.shape_cast %94 : vector<1x4xf32> to vector<1x1x4xf32>
    tpu.vector_store %arg4[%c0_112, %c0_113, %c0_114], %97 {strides = array<i32>} : memref<1x1x4xf32, #tpu.memory_space<vmem>>, vector<1x1x4xf32>,
    %98 = arith.mulf %88, %88 : vector<64x4xf32>
    %cst_115 = arith.constant dense<0.000000e+00> : vector<4xf32>
    %99 = vector.multi_reduction <add>, %98, %cst_115 [0] : vector<64x4xf32> to vector<4xf32>
    %100 = vector.shape_cast %99 : vector<4xf32> to vector<1x4xf32>
    %c0_116 = arith.constant 0 : index
    %c0_117 = arith.constant 0 : index
    %c0_118 = arith.constant 0 : index
    %101 = vector.load %arg5[%c0_116, %c0_117, %c0_118] : memref<1x1x4xf32, #tpu.memory_space<vmem>>, vector<1x1x4xf32>
    %102 = vector.shape_cast %101 : vector<1x1x4xf32> to vector<1x4xf32>
    %103 = vector.shape_cast %100 : vector<1x4xf32> to vector<1x1x4xf32>
    tpu.vector_store %arg5[%c0_116, %c0_117, %c0_118], %103 {strides = array<i32>} : memref<1x1x4xf32, #tpu.memory_space<vmem>>, vector<1x1x4xf32>,
    return
  }
  func.func @transform_0(%arg0: i32) -> (i32, i32, i32, i32) {
    %c0_i32 = arith.constant 0 : i32
    %c0_i32_0 = arith.constant 0 : i32
    %c0_i32_1 = arith.constant 0 : i32
    %c0_i32_2 = arith.constant 0 : i32
    return %arg0, %c0_i32, %c0_i32_0, %c0_i32_1 : i32, i32, i32, i32
  }
  func.func @transform_1(%arg0: i32) -> (i32, i32, i32) {
    %c0_i32 = arith.constant 0 : i32
    %c0_i32_0 = arith.constant 0 : i32
    %c0_i32_1 = arith.constant 0 : i32
    %c0_i32_2 = arith.constant 0 : i32
    return %c0_i32, %c0_i32_0, %c0_i32_1 : i32, i32, i32
  }
  func.func @transform_2(%arg0: i32) -> (i32, i32, i32, i32) {
    %c0_i32 = arith.constant 0 : i32
    %c0_i32_0 = arith.constant 0 : i32
    %c0_i32_1 = arith.constant 0 : i32
    %c0_i32_2 = arith.constant 0 : i32
    return %arg0, %c0_i32, %c0_i32_0, %c0_i32_1 : i32, i32, i32, i32
  }
  func.func @transform_3(%arg0: i32) -> (i32, i32, i32) {
    %c0_i32 = arith.constant 0 : i32
    %c0_i32_0 = arith.constant 0 : i32
    %c0_i32_1 = arith.constant 0 : i32
    return %arg0, %c0_i32, %c0_i32_0 : i32, i32, i32
  }
  func.func @transform_4(%arg0: i32) -> (i32, i32, i32) {
    %c0_i32 = arith.constant 0 : i32
    %c0_i32_0 = arith.constant 0 : i32
    %c0_i32_1 = arith.constant 0 : i32
    return %arg0, %c0_i32, %c0_i32_0 : i32, i32, i32
  }
}

module attributes {stable_mosaic.version = 11 : i64} {
  func.func @_bn_conv_s1_kernel(%arg0: i32, %arg1: memref<1x8x8x4xf32, #tpu.memory_space<vmem>>, %arg2: memref<1x4xf32, #tpu.memory_space<vmem>>, %arg3: memref<1x4xf32, #tpu.memory_space<vmem>>, %arg4: memref<9x4x8xf32, #tpu.memory_space<vmem>>, %arg5: memref<1x8x8x8xf32, #tpu.memory_space<vmem>>, %arg6: memref<1x1x8xf32, #tpu.memory_space<vmem>>, %arg7: memref<1x1x8xf32, #tpu.memory_space<vmem>>, %arg8: memref<10x24x4xf32, #tpu.memory_space<vmem>>) attributes {dimension_semantics = [#tpu.dimension_semantics<parallel>], iteration_bounds = array<i64: 2>, scalar_prefetch = 0 : i64, scratch_operands = 1 : i64, tpu.core_type = #tpu.core_type<tc>, window_params = [{transform_indices = @transform_0, window_bounds = array<i64: 1, 8, 8, 4>}, {pipeline_mode = #tpu.pipeline_mode<synchronous>, transform_indices = @transform_1, window_bounds = array<i64: 1, 4>}, {pipeline_mode = #tpu.pipeline_mode<synchronous>, transform_indices = @transform_2, window_bounds = array<i64: 1, 4>}, {pipeline_mode = #tpu.pipeline_mode<synchronous>, transform_indices = @transform_3, window_bounds = array<i64: 9, 4, 8>}, {transform_indices = @transform_4, window_bounds = array<i64: 1, 8, 8, 8>}, {transform_indices = @transform_5, window_bounds = array<i64: 1, 1, 8>}, {transform_indices = @transform_6, window_bounds = array<i64: 1, 1, 8>}]} {
    %c0 = arith.constant 0 : index
    %c0_0 = arith.constant 0 : index
    %c0_1 = arith.constant 0 : index
    %c0_2 = arith.constant 0 : index
    %0 = vector.load %arg1[%c0, %c0_0, %c0_1, %c0_2] : memref<1x8x8x4xf32, #tpu.memory_space<vmem>>, vector<1x8x8x4xf32>
    %1 = vector.shape_cast %0 : vector<1x8x8x4xf32> to vector<8x8x4xf32>
    %c0_3 = arith.constant 0 : index
    %c0_4 = arith.constant 0 : index
    %2 = vector.load %arg2[%c0_3, %c0_4] : memref<1x4xf32, #tpu.memory_space<vmem>>, vector<1x4xf32>
    %3 = vector.shape_cast %2 : vector<1x4xf32> to vector<1x1x4xf32>
    %4 = vector.broadcast %3 : vector<1x1x4xf32> to vector<8x8x4xf32>
    %5 = arith.mulf %1, %4 : vector<8x8x4xf32>
    %c0_5 = arith.constant 0 : index
    %c0_6 = arith.constant 0 : index
    %6 = vector.load %arg3[%c0_5, %c0_6] : memref<1x4xf32, #tpu.memory_space<vmem>>, vector<1x4xf32>
    %7 = vector.shape_cast %6 : vector<1x4xf32> to vector<1x1x4xf32>
    %8 = vector.broadcast %7 : vector<1x1x4xf32> to vector<8x8x4xf32>
    %9 = arith.addf %5, %8 : vector<8x8x4xf32>
    %cst = arith.constant 0.000000e+00 : f32
    %10 = vector.broadcast %cst : f32 to vector<8x8x4xf32>
    %11 = arith.maximumf %9, %10 : vector<8x8x4xf32>
    %cst_7 = arith.constant 0.000000e+00 : f32
    %12 = vector.broadcast %cst_7 : f32 to vector<1x24x4xf32>
    %cst_8 = arith.constant 0.000000e+00 : f32
    %13 = vector.broadcast %cst_8 : f32 to vector<10x8x4xf32>
    %c0_9 = arith.constant 0 : index
    %c0_10 = arith.constant 0 : index
    %c0_11 = arith.constant 0 : index
    %14 = vector.load %arg8[%c0_9, %c0_10, %c0_11] : memref<10x24x4xf32, #tpu.memory_space<vmem>>, vector<1x24x4xf32>
    tpu.vector_store %arg8[%c0_9, %c0_10, %c0_11], %12 {strides = array<i32>} : memref<10x24x4xf32, #tpu.memory_space<vmem>>, vector<1x24x4xf32>,
    %c9 = arith.constant 9 : index
    %c0_12 = arith.constant 0 : index
    %c0_13 = arith.constant 0 : index
    %15 = vector.load %arg8[%c9, %c0_12, %c0_13] : memref<10x24x4xf32, #tpu.memory_space<vmem>>, vector<1x24x4xf32>
    tpu.vector_store %arg8[%c9, %c0_12, %c0_13], %12 {strides = array<i32>} : memref<10x24x4xf32, #tpu.memory_space<vmem>>, vector<1x24x4xf32>,
    %c0_14 = arith.constant 0 : index
    %c0_15 = arith.constant 0 : index
    %c0_16 = arith.constant 0 : index
    %16 = vector.load %arg8[%c0_14, %c0_15, %c0_16] : memref<10x24x4xf32, #tpu.memory_space<vmem>>, vector<10x8x4xf32>
    tpu.vector_store %arg8[%c0_14, %c0_15, %c0_16], %13 {strides = array<i32>} : memref<10x24x4xf32, #tpu.memory_space<vmem>>, vector<10x8x4xf32>,
    %c0_17 = arith.constant 0 : index
    %c16 = arith.constant 16 : index
    %c0_18 = arith.constant 0 : index
    %17 = vector.load %arg8[%c0_17, %c16, %c0_18] : memref<10x24x4xf32, #tpu.memory_space<vmem>>, vector<10x8x4xf32>
    tpu.vector_store %arg8[%c0_17, %c16, %c0_18], %13 {strides = array<i32>} : memref<10x24x4xf32, #tpu.memory_space<vmem>>, vector<10x8x4xf32>,
    %c1 = arith.constant 1 : index
    %c8 = arith.constant 8 : index
    %c0_19 = arith.constant 0 : index
    %18 = vector.load %arg8[%c1, %c8, %c0_19] : memref<10x24x4xf32, #tpu.memory_space<vmem>>, vector<8x8x4xf32>
    tpu.vector_store %arg8[%c1, %c8, %c0_19], %11 {strides = array<i32>} : memref<10x24x4xf32, #tpu.memory_space<vmem>>, vector<8x8x4xf32>,
    %c0_20 = arith.constant 0 : index
    %c7 = arith.constant 7 : index
    %c0_21 = arith.constant 0 : index
    %19 = vector.load %arg8[%c0_20, %c7, %c0_21] : memref<10x24x4xf32, #tpu.memory_space<vmem>>, vector<8x8x4xf32>
    %20 = vector.shape_cast %19 : vector<8x8x4xf32> to vector<64x4xf32>
    %c0_22 = arith.constant 0 : index
    %c0_23 = arith.constant 0 : index
    %c0_24 = arith.constant 0 : index
    %21 = vector.load %arg4[%c0_22, %c0_23, %c0_24] : memref<9x4x8xf32, #tpu.memory_space<vmem>>, vector<1x4x8xf32>
    %22 = vector.shape_cast %21 : vector<1x4x8xf32> to vector<4x8xf32>
    %cst_25 = arith.constant dense<0.000000e+00> : vector<64x8xf32>
    %23 = tpu.matmul %20, %22, %cst_25 {dimension_numbers = #tpu.dot_dimension_numbers<[1], [0], [0], [1], [0, 0, 1, 1], [], []>} : vector<64x4xf32>, vector<4x8xf32>, vector<64x8xf32> -> vector<64x8xf32>
    %c0_26 = arith.constant 0 : index
    %c8_27 = arith.constant 8 : index
    %c0_28 = arith.constant 0 : index
    %24 = vector.load %arg8[%c0_26, %c8_27, %c0_28] : memref<10x24x4xf32, #tpu.memory_space<vmem>>, vector<8x8x4xf32>
    %25 = vector.shape_cast %24 : vector<8x8x4xf32> to vector<64x4xf32>
    %c1_29 = arith.constant 1 : index
    %c0_30 = arith.constant 0 : index
    %c0_31 = arith.constant 0 : index
    %26 = vector.load %arg4[%c1_29, %c0_30, %c0_31] : memref<9x4x8xf32, #tpu.memory_space<vmem>>, vector<1x4x8xf32>
    %27 = vector.shape_cast %26 : vector<1x4x8xf32> to vector<4x8xf32>
    %cst_32 = arith.constant dense<0.000000e+00> : vector<64x8xf32>
    %28 = tpu.matmul %25, %27, %cst_32 {dimension_numbers = #tpu.dot_dimension_numbers<[1], [0], [0], [1], [0, 0, 1, 1], [], []>} : vector<64x4xf32>, vector<4x8xf32>, vector<64x8xf32> -> vector<64x8xf32>
    %29 = arith.addf %23, %28 : vector<64x8xf32>
    %c0_33 = arith.constant 0 : index
    %c9_34 = arith.constant 9 : index
    %c0_35 = arith.constant 0 : index
    %30 = vector.load %arg8[%c0_33, %c9_34, %c0_35] : memref<10x24x4xf32, #tpu.memory_space<vmem>>, vector<8x8x4xf32>
    %31 = vector.shape_cast %30 : vector<8x8x4xf32> to vector<64x4xf32>
    %c2 = arith.constant 2 : index
    %c0_36 = arith.constant 0 : index
    %c0_37 = arith.constant 0 : index
    %32 = vector.load %arg4[%c2, %c0_36, %c0_37] : memref<9x4x8xf32, #tpu.memory_space<vmem>>, vector<1x4x8xf32>
    %33 = vector.shape_cast %32 : vector<1x4x8xf32> to vector<4x8xf32>
    %cst_38 = arith.constant dense<0.000000e+00> : vector<64x8xf32>
    %34 = tpu.matmul %31, %33, %cst_38 {dimension_numbers = #tpu.dot_dimension_numbers<[1], [0], [0], [1], [0, 0, 1, 1], [], []>} : vector<64x4xf32>, vector<4x8xf32>, vector<64x8xf32> -> vector<64x8xf32>
    %35 = arith.addf %29, %34 : vector<64x8xf32>
    %c1_39 = arith.constant 1 : index
    %c7_40 = arith.constant 7 : index
    %c0_41 = arith.constant 0 : index
    %36 = vector.load %arg8[%c1_39, %c7_40, %c0_41] : memref<10x24x4xf32, #tpu.memory_space<vmem>>, vector<8x8x4xf32>
    %37 = vector.shape_cast %36 : vector<8x8x4xf32> to vector<64x4xf32>
    %c3 = arith.constant 3 : index
    %c0_42 = arith.constant 0 : index
    %c0_43 = arith.constant 0 : index
    %38 = vector.load %arg4[%c3, %c0_42, %c0_43] : memref<9x4x8xf32, #tpu.memory_space<vmem>>, vector<1x4x8xf32>
    %39 = vector.shape_cast %38 : vector<1x4x8xf32> to vector<4x8xf32>
    %cst_44 = arith.constant dense<0.000000e+00> : vector<64x8xf32>
    %40 = tpu.matmul %37, %39, %cst_44 {dimension_numbers = #tpu.dot_dimension_numbers<[1], [0], [0], [1], [0, 0, 1, 1], [], []>} : vector<64x4xf32>, vector<4x8xf32>, vector<64x8xf32> -> vector<64x8xf32>
    %41 = arith.addf %35, %40 : vector<64x8xf32>
    %c1_45 = arith.constant 1 : index
    %c8_46 = arith.constant 8 : index
    %c0_47 = arith.constant 0 : index
    %42 = vector.load %arg8[%c1_45, %c8_46, %c0_47] : memref<10x24x4xf32, #tpu.memory_space<vmem>>, vector<8x8x4xf32>
    %43 = vector.shape_cast %42 : vector<8x8x4xf32> to vector<64x4xf32>
    %c4 = arith.constant 4 : index
    %c0_48 = arith.constant 0 : index
    %c0_49 = arith.constant 0 : index
    %44 = vector.load %arg4[%c4, %c0_48, %c0_49] : memref<9x4x8xf32, #tpu.memory_space<vmem>>, vector<1x4x8xf32>
    %45 = vector.shape_cast %44 : vector<1x4x8xf32> to vector<4x8xf32>
    %cst_50 = arith.constant dense<0.000000e+00> : vector<64x8xf32>
    %46 = tpu.matmul %43, %45, %cst_50 {dimension_numbers = #tpu.dot_dimension_numbers<[1], [0], [0], [1], [0, 0, 1, 1], [], []>} : vector<64x4xf32>, vector<4x8xf32>, vector<64x8xf32> -> vector<64x8xf32>
    %47 = arith.addf %41, %46 : vector<64x8xf32>
    %c1_51 = arith.constant 1 : index
    %c9_52 = arith.constant 9 : index
    %c0_53 = arith.constant 0 : index
    %48 = vector.load %arg8[%c1_51, %c9_52, %c0_53] : memref<10x24x4xf32, #tpu.memory_space<vmem>>, vector<8x8x4xf32>
    %49 = vector.shape_cast %48 : vector<8x8x4xf32> to vector<64x4xf32>
    %c5 = arith.constant 5 : index
    %c0_54 = arith.constant 0 : index
    %c0_55 = arith.constant 0 : index
    %50 = vector.load %arg4[%c5, %c0_54, %c0_55] : memref<9x4x8xf32, #tpu.memory_space<vmem>>, vector<1x4x8xf32>
    %51 = vector.shape_cast %50 : vector<1x4x8xf32> to vector<4x8xf32>
    %cst_56 = arith.constant dense<0.000000e+00> : vector<64x8xf32>
    %52 = tpu.matmul %49, %51, %cst_56 {dimension_numbers = #tpu.dot_dimension_numbers<[1], [0], [0], [1], [0, 0, 1, 1], [], []>} : vector<64x4xf32>, vector<4x8xf32>, vector<64x8xf32> -> vector<64x8xf32>
    %53 = arith.addf %47, %52 : vector<64x8xf32>
    %c2_57 = arith.constant 2 : index
    %c7_58 = arith.constant 7 : index
    %c0_59 = arith.constant 0 : index
    %54 = vector.load %arg8[%c2_57, %c7_58, %c0_59] : memref<10x24x4xf32, #tpu.memory_space<vmem>>, vector<8x8x4xf32>
    %55 = vector.shape_cast %54 : vector<8x8x4xf32> to vector<64x4xf32>
    %c6 = arith.constant 6 : index
    %c0_60 = arith.constant 0 : index
    %c0_61 = arith.constant 0 : index
    %56 = vector.load %arg4[%c6, %c0_60, %c0_61] : memref<9x4x8xf32, #tpu.memory_space<vmem>>, vector<1x4x8xf32>
    %57 = vector.shape_cast %56 : vector<1x4x8xf32> to vector<4x8xf32>
    %cst_62 = arith.constant dense<0.000000e+00> : vector<64x8xf32>
    %58 = tpu.matmul %55, %57, %cst_62 {dimension_numbers = #tpu.dot_dimension_numbers<[1], [0], [0], [1], [0, 0, 1, 1], [], []>} : vector<64x4xf32>, vector<4x8xf32>, vector<64x8xf32> -> vector<64x8xf32>
    %59 = arith.addf %53, %58 : vector<64x8xf32>
    %c2_63 = arith.constant 2 : index
    %c8_64 = arith.constant 8 : index
    %c0_65 = arith.constant 0 : index
    %60 = vector.load %arg8[%c2_63, %c8_64, %c0_65] : memref<10x24x4xf32, #tpu.memory_space<vmem>>, vector<8x8x4xf32>
    %61 = vector.shape_cast %60 : vector<8x8x4xf32> to vector<64x4xf32>
    %c7_66 = arith.constant 7 : index
    %c0_67 = arith.constant 0 : index
    %c0_68 = arith.constant 0 : index
    %62 = vector.load %arg4[%c7_66, %c0_67, %c0_68] : memref<9x4x8xf32, #tpu.memory_space<vmem>>, vector<1x4x8xf32>
    %63 = vector.shape_cast %62 : vector<1x4x8xf32> to vector<4x8xf32>
    %cst_69 = arith.constant dense<0.000000e+00> : vector<64x8xf32>
    %64 = tpu.matmul %61, %63, %cst_69 {dimension_numbers = #tpu.dot_dimension_numbers<[1], [0], [0], [1], [0, 0, 1, 1], [], []>} : vector<64x4xf32>, vector<4x8xf32>, vector<64x8xf32> -> vector<64x8xf32>
    %65 = arith.addf %59, %64 : vector<64x8xf32>
    %c2_70 = arith.constant 2 : index
    %c9_71 = arith.constant 9 : index
    %c0_72 = arith.constant 0 : index
    %66 = vector.load %arg8[%c2_70, %c9_71, %c0_72] : memref<10x24x4xf32, #tpu.memory_space<vmem>>, vector<8x8x4xf32>
    %67 = vector.shape_cast %66 : vector<8x8x4xf32> to vector<64x4xf32>
    %c8_73 = arith.constant 8 : index
    %c0_74 = arith.constant 0 : index
    %c0_75 = arith.constant 0 : index
    %68 = vector.load %arg4[%c8_73, %c0_74, %c0_75] : memref<9x4x8xf32, #tpu.memory_space<vmem>>, vector<1x4x8xf32>
    %69 = vector.shape_cast %68 : vector<1x4x8xf32> to vector<4x8xf32>
    %cst_76 = arith.constant dense<0.000000e+00> : vector<64x8xf32>
    %70 = tpu.matmul %67, %69, %cst_76 {dimension_numbers = #tpu.dot_dimension_numbers<[1], [0], [0], [1], [0, 0, 1, 1], [], []>} : vector<64x4xf32>, vector<4x8xf32>, vector<64x8xf32> -> vector<64x8xf32>
    %71 = arith.addf %65, %70 : vector<64x8xf32>
    %72 = vector.shape_cast %71 : vector<64x8xf32> to vector<8x8x8xf32>
    %c0_77 = arith.constant 0 : index
    %c0_78 = arith.constant 0 : index
    %c0_79 = arith.constant 0 : index
    %c0_80 = arith.constant 0 : index
    %73 = vector.load %arg5[%c0_77, %c0_78, %c0_79, %c0_80] : memref<1x8x8x8xf32, #tpu.memory_space<vmem>>, vector<1x8x8x8xf32>
    %74 = vector.shape_cast %73 : vector<1x8x8x8xf32> to vector<8x8x8xf32>
    %75 = vector.shape_cast %72 : vector<8x8x8xf32> to vector<1x8x8x8xf32>
    tpu.vector_store %arg5[%c0_77, %c0_78, %c0_79, %c0_80], %75 {strides = array<i32>} : memref<1x8x8x8xf32, #tpu.memory_space<vmem>>, vector<1x8x8x8xf32>,
    %cst_81 = arith.constant dense<0.000000e+00> : vector<8xf32>
    %76 = vector.multi_reduction <add>, %71, %cst_81 [0] : vector<64x8xf32> to vector<8xf32>
    %77 = vector.shape_cast %76 : vector<8xf32> to vector<1x8xf32>
    %c0_82 = arith.constant 0 : index
    %c0_83 = arith.constant 0 : index
    %c0_84 = arith.constant 0 : index
    %78 = vector.load %arg6[%c0_82, %c0_83, %c0_84] : memref<1x1x8xf32, #tpu.memory_space<vmem>>, vector<1x1x8xf32>
    %79 = vector.shape_cast %78 : vector<1x1x8xf32> to vector<1x8xf32>
    %80 = vector.shape_cast %77 : vector<1x8xf32> to vector<1x1x8xf32>
    tpu.vector_store %arg6[%c0_82, %c0_83, %c0_84], %80 {strides = array<i32>} : memref<1x1x8xf32, #tpu.memory_space<vmem>>, vector<1x1x8xf32>,
    %81 = arith.mulf %71, %71 : vector<64x8xf32>
    %cst_85 = arith.constant dense<0.000000e+00> : vector<8xf32>
    %82 = vector.multi_reduction <add>, %81, %cst_85 [0] : vector<64x8xf32> to vector<8xf32>
    %83 = vector.shape_cast %82 : vector<8xf32> to vector<1x8xf32>
    %c0_86 = arith.constant 0 : index
    %c0_87 = arith.constant 0 : index
    %c0_88 = arith.constant 0 : index
    %84 = vector.load %arg7[%c0_86, %c0_87, %c0_88] : memref<1x1x8xf32, #tpu.memory_space<vmem>>, vector<1x1x8xf32>
    %85 = vector.shape_cast %84 : vector<1x1x8xf32> to vector<1x8xf32>
    %86 = vector.shape_cast %83 : vector<1x8xf32> to vector<1x1x8xf32>
    tpu.vector_store %arg7[%c0_86, %c0_87, %c0_88], %86 {strides = array<i32>} : memref<1x1x8xf32, #tpu.memory_space<vmem>>, vector<1x1x8xf32>,
    return
  }
  func.func @transform_0(%arg0: i32) -> (i32, i32, i32, i32) {
    %c0_i32 = arith.constant 0 : i32
    %c0_i32_0 = arith.constant 0 : i32
    %c0_i32_1 = arith.constant 0 : i32
    %c0_i32_2 = arith.constant 0 : i32
    return %arg0, %c0_i32, %c0_i32_0, %c0_i32_1 : i32, i32, i32, i32
  }
  func.func @transform_1(%arg0: i32) -> (i32, i32) {
    %c0_i32 = arith.constant 0 : i32
    %c0_i32_0 = arith.constant 0 : i32
    %c0_i32_1 = arith.constant 0 : i32
    return %c0_i32, %c0_i32_0 : i32, i32
  }
  func.func @transform_2(%arg0: i32) -> (i32, i32) {
    %c0_i32 = arith.constant 0 : i32
    %c0_i32_0 = arith.constant 0 : i32
    %c0_i32_1 = arith.constant 0 : i32
    return %c0_i32, %c0_i32_0 : i32, i32
  }
  func.func @transform_3(%arg0: i32) -> (i32, i32, i32) {
    %c0_i32 = arith.constant 0 : i32
    %c0_i32_0 = arith.constant 0 : i32
    %c0_i32_1 = arith.constant 0 : i32
    %c0_i32_2 = arith.constant 0 : i32
    return %c0_i32, %c0_i32_0, %c0_i32_1 : i32, i32, i32
  }
  func.func @transform_4(%arg0: i32) -> (i32, i32, i32, i32) {
    %c0_i32 = arith.constant 0 : i32
    %c0_i32_0 = arith.constant 0 : i32
    %c0_i32_1 = arith.constant 0 : i32
    %c0_i32_2 = arith.constant 0 : i32
    return %arg0, %c0_i32, %c0_i32_0, %c0_i32_1 : i32, i32, i32, i32
  }
  func.func @transform_5(%arg0: i32) -> (i32, i32, i32) {
    %c0_i32 = arith.constant 0 : i32
    %c0_i32_0 = arith.constant 0 : i32
    %c0_i32_1 = arith.constant 0 : i32
    return %arg0, %c0_i32, %c0_i32_0 : i32, i32, i32
  }
  func.func @transform_6(%arg0: i32) -> (i32, i32, i32) {
    %c0_i32 = arith.constant 0 : i32
    %c0_i32_0 = arith.constant 0 : i32
    %c0_i32_1 = arith.constant 0 : i32
    return %arg0, %c0_i32, %c0_i32_0 : i32, i32, i32
  }
}

module attributes {stable_mosaic.version = 11 : i64} {
  func.func @_bn_relu_kernel(%arg0: i32, %arg1: memref<8x128xf32, #tpu.memory_space<vmem>>, %arg2: memref<1x128xf32, #tpu.memory_space<vmem>>, %arg3: memref<1x128xf32, #tpu.memory_space<vmem>>, %arg4: memref<8x128xf32, #tpu.memory_space<vmem>>) attributes {dimension_semantics = [#tpu.dimension_semantics<parallel>], iteration_bounds = array<i64: 1>, scalar_prefetch = 0 : i64, scratch_operands = 0 : i64, tpu.core_type = #tpu.core_type<tc>, window_params = [{transform_indices = @transform_0, window_bounds = array<i64: 8, 128>}, {pipeline_mode = #tpu.pipeline_mode<synchronous>, transform_indices = @transform_1, window_bounds = array<i64: 1, 128>}, {pipeline_mode = #tpu.pipeline_mode<synchronous>, transform_indices = @transform_2, window_bounds = array<i64: 1, 128>}, {transform_indices = @transform_3, window_bounds = array<i64: 8, 128>}]} {
    %c0 = arith.constant 0 : index
    %c0_0 = arith.constant 0 : index
    %0 = vector.load %arg1[%c0, %c0_0] : memref<8x128xf32, #tpu.memory_space<vmem>>, vector<8x128xf32>
    %c0_1 = arith.constant 0 : index
    %c0_2 = arith.constant 0 : index
    %1 = vector.load %arg2[%c0_1, %c0_2] : memref<1x128xf32, #tpu.memory_space<vmem>>, vector<1x128xf32>
    %2 = vector.broadcast %1 : vector<1x128xf32> to vector<8x128xf32>
    %3 = arith.mulf %0, %2 : vector<8x128xf32>
    %c0_3 = arith.constant 0 : index
    %c0_4 = arith.constant 0 : index
    %4 = vector.load %arg3[%c0_3, %c0_4] : memref<1x128xf32, #tpu.memory_space<vmem>>, vector<1x128xf32>
    %5 = vector.broadcast %4 : vector<1x128xf32> to vector<8x128xf32>
    %6 = arith.addf %3, %5 : vector<8x128xf32>
    %cst = arith.constant 0.000000e+00 : f32
    %7 = vector.broadcast %cst : f32 to vector<8x128xf32>
    %8 = arith.maximumf %6, %7 : vector<8x128xf32>
    %c0_5 = arith.constant 0 : index
    %c0_6 = arith.constant 0 : index
    %9 = vector.load %arg4[%c0_5, %c0_6] : memref<8x128xf32, #tpu.memory_space<vmem>>, vector<8x128xf32>
    tpu.vector_store %arg4[%c0_5, %c0_6], %8 {strides = array<i32>} : memref<8x128xf32, #tpu.memory_space<vmem>>, vector<8x128xf32>,
    return
  }
  func.func @transform_0(%arg0: i32) -> (i32, i32) {
    %c0_i32 = arith.constant 0 : i32
    %c0_i32_0 = arith.constant 0 : i32
    return %arg0, %c0_i32 : i32, i32
  }
  func.func @transform_1(%arg0: i32) -> (i32, i32) {
    %c0_i32 = arith.constant 0 : i32
    %c0_i32_0 = arith.constant 0 : i32
    %c0_i32_1 = arith.constant 0 : i32
    return %c0_i32, %c0_i32_0 : i32, i32
  }
  func.func @transform_2(%arg0: i32) -> (i32, i32) {
    %c0_i32 = arith.constant 0 : i32
    %c0_i32_0 = arith.constant 0 : i32
    %c0_i32_1 = arith.constant 0 : i32
    return %c0_i32, %c0_i32_0 : i32, i32
  }
  func.func @transform_3(%arg0: i32) -> (i32, i32) {
    %c0_i32 = arith.constant 0 : i32
    %c0_i32_0 = arith.constant 0 : i32
    return %arg0, %c0_i32 : i32, i32
  }
}

</mosaic_0001>

<llo_original>
// kernel: sep_conv_forward.5
$region0: #{sep_conv_forward.5}
  #allocation0 [shape = 'u32[]', space=smem, size = 0x4, offset = 0x4, fixed_abs, tag = 'smem constant byte address 0x4 - core index']
  #allocation1 [shape = 'u32[72,128]{1,0:T(1,128)}', space=vmem, size = 0x9000, scoped, tag = 'internal scratch']
  %s0 = inlined_call_operand.vmem [shape: f32[8,128], index: 0, kind: input, shape index: {}]
  %s1 = inlined_call_operand.vmem [shape: f32[1,128], index: 1, kind: input, shape index: {}]
  %s2 = inlined_call_operand.vmem [shape: f32[1,128], index: 2, kind: input, shape index: {}]
  %s3 = inlined_call_operand.vmem [shape: f32[8,128], index: 3, kind: output, shape index: {}]
  %s4 = sld [smem:[#allocation0]]
  $region22: #{sep_conv_forward.5} parent=0
    _
  %s6 = ssub.s32 1, %s4
  %s7 = scalar_select 0, %s6, %s4
  // Predicated region
  $region2: #{sep_conv_forward.5} parent=0 // pred_check
    _
  $region3: #{sep_conv_forward.5} parent=0 // pred_check_branch
    %9 = sbr.rel (0) target = $region5
  $region4: #{sep_conv_forward.5} parent=0 // pred_region
    _
  $region5: #{sep_conv_forward.5} parent=0 // pred_fallthru
    _
  // Predicated region
  $region6: #{sep_conv_forward.5} parent=0 // pred_check
    _
  $region7: #{sep_conv_forward.5} parent=0 // pred_check_branch
    %11 = sbr.rel (0) target = $region9
  $region8: #{sep_conv_forward.5} parent=0 // pred_region
    _
  $region9: #{sep_conv_forward.5} parent=0 // pred_fallthru
    _
  // Predicated region
  $region10: #{sep_conv_forward.5} parent=0 // pred_check
    _
  $region11: #{sep_conv_forward.5} parent=0 // pred_check_branch
    %13 = sbr.rel (0) target = $region13
  $region12: #{sep_conv_forward.5} parent=0 // pred_region
    _
  $region13: #{sep_conv_forward.5} parent=0 // pred_fallthru
    _
  %v14 = vld [vmem:[%s0] sm:$0xff]
  %v15 = vld [vmem:[%s1] sm:$0x1]
  %v17 = vperm.slane %v15, 0
  %v19 = vmul.f32 %v14, %v17
  %v20 = vld [vmem:[%s2] sm:$0x1]
  %v22 = vperm.slane %v20, 0
  %v24 = vadd.f32 %v19, %v22
  %v25 = vmax.f32 %v24, 0.0
  %26 = vst [vmem:[%s3] sm:$0xff] %v25
  // Predicated region
  $region14: #{sep_conv_forward.5} parent=0 // pred_check
    _
  $region15: #{sep_conv_forward.5} parent=0 // pred_check_branch
    %28 = sbr.rel (0) target = $region17
  $region16: #{sep_conv_forward.5} parent=0 // pred_region
    _
  $region17: #{sep_conv_forward.5} parent=0 // pred_fallthru
    _
  // Predicated region
  $region18: #{sep_conv_forward.5} parent=0 // pred_check
    _
  $region19: #{sep_conv_forward.5} parent=0 // pred_check_branch
    %30 = sbr.rel (0) target = $region21
  $region20: #{sep_conv_forward.5} parent=0 // pred_region
    _
  $region21: #{sep_conv_forward.5} parent=0 // pred_fallthru
    _

// kernel: sep_conv_forward.4
$region0: #{sep_conv_forward.4}
  #allocation0 [shape = 'u32[]', space=smem, size = 0x4, offset = 0x4, fixed_abs, tag = 'smem constant byte address 0x4 - core index']
  #allocation1 [shape = 'u32[72,128]{1,0:T(1,128)}', space=vmem, size = 0x9000, scoped, tag = 'internal scratch']
  #allocation2 [shape = 'f32[10,24,4]{2,1,0:T(8,128)}', space=vmem, size = 0x1e000, scoped, tag = 'scratch operand']
  %s0 = inlined_call_operand.vmem [shape: f32[2,8,8,4], index: 0, kind: input, shape index: {}]
  %s1 = inlined_call_operand.vmem [shape: f32[1,4], index: 1, kind: input, shape index: {}]
  %s2 = inlined_call_operand.vmem [shape: f32[1,4], index: 2, kind: input, shape index: {}]
  %s3 = inlined_call_operand.vmem [shape: f32[9,4,8], index: 3, kind: input, shape index: {}]
  %s4 = inlined_call_operand.vmem [shape: f32[2,8,8,8], index: 4, kind: output, shape index: {0}]
  %s5 = inlined_call_operand.vmem [shape: f32[2,1,8], index: 5, kind: output, shape index: {1}]
  %s6 = inlined_call_operand.vmem [shape: f32[2,1,8], index: 6, kind: output, shape index: {2}]
  %7 = xla_tuple %s4, %s5, %s6
  %s8 = sld [smem:[#allocation0]]
  $region65: #{sep_conv_forward.4} parent=0
    _
  %s10 = ssub.s32 1, %s8
  %s11 = scalar_select 0, %s10, %s8
  loop: start=0, step=1, limit=4
  $region2: #{sep_conv_forward.4} parent=0 // loop_pre_header
    _
  $region3: #{sep_conv_forward.4} parent=0 // loop_header
    %s13 = sphi 0, %s17
    %p14 = scmp.ge.s32.totalorder %s13, 4
    %s23 = sphi 0, %s25
    %s26 = sphi 0, %s23
    %s27 = sphi 0, %s26
    %s43 = sphi 0, %s27
    %s47 = sphi 0, %s47
    %s49 = sphi 0, %s47
    %s50 = sphi 0, %s49
    %s64 = sphi 0, %s50
    %s68 = sphi 0, %s68
    %s70 = sphi 0, %s68
    %s71 = sphi 0, %s70
    %s85 = sphi 0, %s71
    %s89 = sphi 0, %s89
    %s91 = sphi 0, %s89
    %s92 = sphi 0, %s91
    %s106 = sphi 0, %s92
    %s112 = sphi 0, %s114
    %s115 = sphi 0, %s112
    %s116 = sphi 0, %s115
    %s132 = sphi 0, %s116
    %s138 = sphi 0, %s140
    %s141 = sphi 0, %s138
    %s142 = sphi 0, %s141
    %s158 = sphi 0, %s142
    %s164 = sphi 0, %s166
    %s167 = sphi 0, %s164
    %s168 = sphi 0, %s167
    %s184 = sphi 0, %s168
  $region4: #{sep_conv_forward.4} parent=0 // loop_header_branch
    %16 = sbr.rel (%p14) target = $region8
  $region5: #{sep_conv_forward.4} parent=0 // loop_body
    %s18 = ssub.s32 %s13, 1
    %s19 = ssub.s32 %s13, 2
    %s20 = sadd.s32 %s13, 1
    %s21 = ssub.s32 %s13, %s20
    %p22 = scmp.eq.s32.totalorder %s21, 0
    %s24 = sadd.s32 %s23, 1
    %s25 = scalar_select %p22, %s23, %s24
    %p28 = pneg %p22
    %p29 = scmp.eq.s32.totalorder %s13, 1
    %p30 = por %p28, %p29
    %p31 = scmp.ne.s32.totalorder %s23, %s26
    %p32 = scmp.eq.s32.totalorder %s13, 0
    %p33 = por %p31, %p32
    %p34 = scmp.ne.s32.totalorder %s23, %s26
    %p35 = scmp.eq.s32.totalorder %s18, 1
    %p36 = por %p34, %p35
    %p37 = scmp.ne.s32.totalorder %s26, %s27
    %p38 = scmp.eq.s32.totalorder %s18, 0
    %p39 = por %p37, %p38
    %p40 = scmp.ne.s32.totalorder %s26, %s27
    %p41 = scmp.eq.s32.totalorder %s19, 1
    %p42 = por %p40, %p41
    %p44 = scmp.ne.s32.totalorder %s27, %s43
    %p45 = scmp.eq.s32.totalorder %s19, 0
    %p46 = por %p44, %p45
    %s48 = sadd.s32 %s47, 1
    %p51 = scmp.eq.s32.totalorder %s13, 1
    %p52 = scmp.ne.s32.totalorder %s47, %s49
    %p53 = scmp.eq.s32.totalorder %s13, 0
    %p54 = por %p52, %p53
    %p55 = scmp.ne.s32.totalorder %s47, %s49
    %p56 = scmp.eq.s32.totalorder %s18, 1
    %p57 = por %p55, %p56
    %p58 = scmp.ne.s32.totalorder %s49, %s50
    %p59 = scmp.eq.s32.totalorder %s18, 0
    %p60 = por %p58, %p59
    %p61 = scmp.ne.s32.totalorder %s49, %s50
    %p62 = scmp.eq.s32.totalorder %s19, 1
    %p63 = por %p61, %p62
    %p65 = scmp.ne.s32.totalorder %s50, %s64
    %p66 = scmp.eq.s32.totalorder %s19, 0
    %p67 = por %p65, %p66
    %s69 = sadd.s32 %s68, 1
    %p72 = scmp.eq.s32.totalorder %s13, 1
    %p73 = scmp.ne.s32.totalorder %s68, %s70
    %p74 = scmp.eq.s32.totalorder %s13, 0
    %p75 = por %p73, %p74
    %p76 = scmp.ne.s32.totalorder %s68, %s70
    %p77 = scmp.eq.s32.totalorder %s18, 1
    %p78 = por %p76, %p77
    %p79 = scmp.ne.s32.totalorder %s70, %s71
    %p80 = scmp.eq.s32.totalorder %s18, 0
    %p81 = por %p79, %p80
    %p82 = scmp.ne.s32.totalorder %s70, %s71
    %p83 = scmp.eq.s32.totalorder %s19, 1
    %p84 = por %p82, %p83
    %p86 = scmp.ne.s32.totalorder %s71, %s85
    %p87 = scmp.eq.s32.totalorder %s19, 0
    %p88 = por %p86, %p87
    %s90 = sadd.s32 %s89, 1
    %p93 = scmp.eq.s32.totalorder %s13, 1
    %p94 = scmp.ne.s32.totalorder %s89, %s91
    %p95 = scmp.eq.s32.totalorder %s13, 0
    %p96 = por %p94, %p95
    %p97 = scmp.ne.s32.totalorder %s89, %s91
    %p98 = scmp.eq.s32.totalorder %s18, 1
    %p99 = por %p97, %p98
    %p100 = scmp.ne.s32.totalorder %s91, %s92
    %p101 = scmp.eq.s32.totalorder %s18, 0
    %p102 = por %p100, %p101
    %p103 = scmp.ne.s32.totalorder %s91, %s92
    %p104 = scmp.eq.s32.totalorder %s19, 1
    %p105 = por %p103, %p104
    %p107 = scmp.ne.s32.totalorder %s92, %s106
    %p108 = scmp.eq.s32.totalorder %s19, 0
    %p109 = por %p107, %p108
    %s110 = ssub.s32 %s13, %s20
    %p111 = scmp.eq.s32.totalorder %s110, 0
    %s113 = sadd.s32 %s112, 1
    %s114 = scalar_select %p111, %s112, %s113
    %p117 = pneg %p111
    %p118 = scmp.eq.s32.totalorder %s13, 1
    %p119 = por %p117, %p118
    %p120 = scmp.ne.s32.totalorder %s112, %s115
    %p121 = scmp.eq.s32.totalorder %s13, 0
    %p122 = por %p120, %p121
    %p123 = scmp.ne.s32.totalorder %s112, %s115
    %p124 = scmp.eq.s32.totalorder %s18, 1
    %p125 = por %p123, %p124
    %p126 = scmp.ne.s32.totalorder %s115, %s116
    %p127 = scmp.eq.s32.totalorder %s18, 0
    %p128 = por %p126, %p127
    %p129 = scmp.ne.s32.totalorder %s115, %s116
    %p130 = scmp.eq.s32.totalorder %s19, 1
    %p131 = por %p129, %p130
    %p133 = scmp.ne.s32.totalorder %s116, %s132
    %p134 = scmp.eq.s32.totalorder %s19, 0
    %p135 = por %p133, %p134
    %s136 = ssub.s32 %s13, %s20
    %p137 = scmp.eq.s32.totalorder %s136, 0
    %s139 = sadd.s32 %s138, 1
    %s140 = scalar_select %p137, %s138, %s139
    %p143 = pneg %p137
    %p144 = scmp.eq.s32.totalorder %s13, 1
    %p145 = por %p143, %p144
    %p146 = scmp.ne.s32.totalorder %s138, %s141
    %p147 = scmp.eq.s32.totalorder %s13, 0
    %p148 = por %p146, %p147
    %p149 = scmp.ne.s32.totalorder %s138, %s141
    %p150 = scmp.eq.s32.totalorder %s18, 1
    %p151 = por %p149, %p150
    %p152 = scmp.ne.s32.totalorder %s141, %s142
    %p153 = scmp.eq.s32.totalorder %s18, 0
    %p154 = por %p152, %p153
    %p155 = scmp.ne.s32.totalorder %s141, %s142
    %p156 = scmp.eq.s32.totalorder %s19, 1
    %p157 = por %p155, %p156
    %p159 = scmp.ne.s32.totalorder %s142, %s158
    %p160 = scmp.eq.s32.totalorder %s19, 0
    %p161 = por %p159, %p160
    %s162 = ssub.s32 %s13, %s20
    %p163 = scmp.eq.s32.totalorder %s162, 0
    %s165 = sadd.s32 %s164, 1
    %s166 = scalar_select %p163, %s164, %s165
    %p169 = pneg %p163
    %p170 = scmp.eq.s32.totalorder %s13, 1
    %p171 = por %p169, %p170
    %p172 = scmp.ne.s32.totalorder %s164, %s167
    %p173 = scmp.eq.s32.totalorder %s13, 0
    %p174 = por %p172, %p173
    %p175 = scmp.ne.s32.totalorder %s164, %s167
    %p176 = scmp.eq.s32.totalorder %s18, 1
    %p177 = por %p175, %p176
    %p178 = scmp.ne.s32.totalorder %s167, %s168
    %p179 = scmp.eq.s32.totalorder %s18, 0
    %p180 = por %p178, %p179
    %p181 = scmp.ne.s32.totalorder %s167, %s168
    %p182 = scmp.eq.s32.totalorder %s19, 1
    %p183 = por %p181, %p182
    %p185 = scmp.ne.s32.totalorder %s168, %s184
    %p186 = scmp.eq.s32.totalorder %s19, 0
    %p187 = por %p185, %p186
    %p188 = scmp.le.s32.totalorder 1, %s13
    %p189 = scmp.lt.s32.totalorder %s13, 3
    %p190 = pnand %p188, %p189
    %p191 = pneg %p190
    // Predicated region
    $region9: #{sep_conv_forward.4} parent=5 // pred_check
      _
    $region10: #{sep_conv_forward.4} parent=5 // pred_check_branch
      %193 = sbr.rel (%p190) target = $region12
    $region11: #{sep_conv_forward.4} parent=5 // pred_region
      %s194 = ssub.s32 %s13, 1
      // Predicated region
      $region13: #{sep_conv_forward.4} parent=11 // pred_check
        %p195 = pneg %p60
      $region14: #{sep_conv_forward.4} parent=11 // pred_check_branch
        %197 = sbr.rel (%p195) target = $region16
      $region15: #{sep_conv_forward.4} parent=11 // pred_region
        _
      $region16: #{sep_conv_forward.4} parent=11 // pred_fallthru
        _
      // Predicated region
      $region17: #{sep_conv_forward.4} parent=11 // pred_check
        %p198 = pneg %p81
      $region18: #{sep_conv_forward.4} parent=11 // pred_check_branch
        %200 = sbr.rel (%p198) target = $region20
      $region19: #{sep_conv_forward.4} parent=11 // pred_region
        _
      $region20: #{sep_conv_forward.4} parent=11 // pred_fallthru
        _
      // Predicated region
      $region21: #{sep_conv_forward.4} parent=11 // pred_check
        %p201 = pneg %p102
      $region22: #{sep_conv_forward.4} parent=11 // pred_check_branch
        %203 = sbr.rel (%p201) target = $region24
      $region23: #{sep_conv_forward.4} parent=11 // pred_region
        _
      $region24: #{sep_conv_forward.4} parent=11 // pred_fallthru
        _
    $region12: #{sep_conv_forward.4} parent=5 // pred_fallthru
      _
    %p204 = scmp.lt.s32.totalorder %s13, 2
    // Predicated region
    $region25: #{sep_conv_forward.4} parent=5 // pred_check
      %p205 = pneg %p204
    $region26: #{sep_conv_forward.4} parent=5 // pred_check_branch
      %207 = sbr.rel (%p205) target = $region28
    $region27: #{sep_conv_forward.4} parent=5 // pred_region
      // Predicated region
      $region29: #{sep_conv_forward.4} parent=27 // pred_check
        %p208 = pneg %p33
      $region30: #{sep_conv_forward.4} parent=27 // pred_check_branch
        %210 = sbr.rel (%p208) target = $region32
      $region31: #{sep_conv_forward.4} parent=27 // pred_region
        %p211 = scmp.lt.s32.totalorder %s13, 1
        %s212 = scalar_select %p211, %s13, 1
        %s213 = smul.addr %s212, 8
        %s214 = smul.addr %s213, 8
        %s215 = scalar_lea.vmem %s0, %s214
      $region32: #{sep_conv_forward.4} parent=27 // pred_fallthru
        _
    $region28: #{sep_conv_forward.4} parent=5 // pred_fallthru
      _
    %p216 = scmp.le.s32.totalorder 1, %s13
    %p217 = scmp.lt.s32.totalorder %s13, 3
    %p218 = pnand %p216, %p217
    %p219 = pneg %p218
    // Predicated region
    $region33: #{sep_conv_forward.4} parent=5 // pred_check
      _
    $region34: #{sep_conv_forward.4} parent=5 // pred_check_branch
      %221 = sbr.rel (%p218) target = $region36
    $region35: #{sep_conv_forward.4} parent=5 // pred_region
      %s222 = ssub.s32 %s13, 1
      %p223 = scmp.lt.s32.totalorder %s18, 1
      %s224 = scalar_select %p223, %s18, 1
      %s225 = smul.addr %s224, 8
      %s226 = smul.addr %s225, 8
      %s227 = scalar_lea.vmem %s0, %s226
      %p228 = pneg %p39
      %p229 = pneg %p36
      %p230 = pneg %p60
      %p231 = pneg %p57
      %p232 = pneg %p81
      %p233 = pneg %p78
      %p234 = pneg %p102
      %p235 = pneg %p99
      %p236 = pneg %p128
      %p237 = pneg %p125
      %p238 = scmp.lt.s32.totalorder %s18, 1
      %s239 = scalar_select %p238, %s18, 1
      %s240 = smul.addr %s239, 8
      %s241 = smul.addr %s240, 8
      %s242 = scalar_lea.vmem %s4, %s241
      %p243 = pneg %p154
      %p244 = pneg %p151
      %p245 = scmp.lt.s32.totalorder %s18, 1
      %s246 = scalar_select %p245, %s18, 1
      %s247 = scalar_lea.vmem %s5, %s246
      %p248 = pneg %p180
      %p249 = pneg %p177
      %p250 = scmp.lt.s32.totalorder %s18, 1
      %s251 = scalar_select %p250, %s18, 1
      %s252 = scalar_lea.vmem %s6, %s251
      %p253 = scmp.lt.s32.totalorder %s18, 1
      %s254 = scalar_select %p253, %s18, 1
      %s255 = smul.addr %s254, 8
      %s256 = smul.addr %s255, 8
      %s257 = scalar_lea.vmem %s0, %s256
      %p258 = scmp.lt.s32.totalorder %s18, 1
      %s259 = scalar_select %p258, %s18, 1
      %s260 = smul.addr %s259, 8
      %s261 = smul.addr %s260, 8
      %s262 = scalar_lea.vmem %s4, %s261
      %p263 = scmp.lt.s32.totalorder %s18, 1
      %s264 = scalar_select %p263, %s18, 1
      %s265 = scalar_lea.vmem %s5, %s264
      %p266 = scmp.lt.s32.totalorder %s18, 1
      %s267 = scalar_select %p266, %s18, 1
      %s268 = scalar_lea.vmem %s6, %s267
      %v269 = vld [vmem:[%s257] sm:$0xff]
      %v270 = vld [vmem:[%s257 + $0x8] sm:$0xff]
      %v271 = vld [vmem:[%s257 + $0x10] sm:$0xff]
      %v272 = vld [vmem:[%s257 + $0x18] sm:$0xff]
      %v273 = vld [vmem:[%s257 + $0x20] sm:$0xff]
      %v274 = vld [vmem:[%s257 + $0x28] sm:$0xff]
      %v275 = vld [vmem:[%s257 + $0x30] sm:$0xff]
      %v276 = vld [vmem:[%s257 + $0x38] sm:$0xff]
      %v277 = vld [vmem:[%s1] sm:$0x1]
      %v279 = vperm.slane %v277, 0
      %v281 = vmul.f32 %v269, %v279
      %v282 = vmul.f32 %v270, %v279
      %v283 = vmul.f32 %v271, %v279
      %v284 = vmul.f32 %v272, %v279
      %v285 = vmul.f32 %v273, %v279
      %v286 = vmul.f32 %v274, %v279
      %v287 = vmul.f32 %v275, %v279
      %v288 = vmul.f32 %v276, %v279
      %v289 = vld [vmem:[%s2] sm:$0x1]
      %v291 = vperm.slane %v289, 0
      %v293 = vadd.f32 %v281, %v291
      %v294 = vadd.f32 %v282, %v291
      %v295 = vadd.f32 %v283, %v291
      %v296 = vadd.f32 %v284, %v291
      %v297 = vadd.f32 %v285, %v291
      %v298 = vadd.f32 %v286, %v291
      %v299 = vadd.f32 %v287, %v291
      %v300 = vadd.f32 %v288, %v291
      %v301 = vmax.f32 %v293, 0.0
      %v302 = vmax.f32 %v294, 0.0
      %v303 = vmax.f32 %v295, 0.0
      %v304 = vmax.f32 %v296, 0.0
      %v305 = vmax.f32 %v297, 0.0
      %v306 = vmax.f32 %v298, 0.0
      %v307 = vmax.f32 %v299, 0.0
      %v308 = vmax.f32 %v300, 0.0
      %vm309 = vcmask 31744
      %310 = vst.msk [vmem:[#allocation2] sm:$0xff] %vm309, 0.0
      %311 = vst.msk [vmem:[#allocation2 + $0x8] sm:$0xff] %vm309, 0.0
      %312 = vst.msk [vmem:[#allocation2 + $0x10] sm:$0xff] %vm309, 0.0
      %s313 = scalar_lea.vmem [#allocation2], 216
      %314 = vst.msk [vmem:[%s313] sm:$0xff] %vm309, 0.0
      %315 = vst.msk [vmem:[%s313 + $0x8] sm:$0xff] %vm309, 0.0
      %316 = vst.msk [vmem:[%s313 + $0x10] sm:$0xff] %vm309, 0.0
      %317 = vst.msk [vmem:[#allocation2] sm:$0xff] %vm309, 0.0
      %318 = vst.msk [vmem:[#allocation2 + $0x18] sm:$0xff] %vm309, 0.0
      %319 = vst.msk [vmem:[#allocation2 + $0x30] sm:$0xff] %vm309, 0.0
      %320 = vst.msk [vmem:[#allocation2 + $0x48] sm:$0xff] %vm309, 0.0
      %321 = vst.msk [vmem:[#allocation2 + $0x60] sm:$0xff] %vm309, 0.0
      %322 = vst.msk [vmem:[#allocation2 + $0x78] sm:$0xff] %vm309, 0.0
      %323 = vst.msk [vmem:[#allocation2 + $0x90] sm:$0xff] %vm309, 0.0
      %324 = vst.msk [vmem:[#allocation2 + $0xa8] sm:$0xff] %vm309, 0.0
      %325 = vst.msk [vmem:[#allocation2 + $0xc0] sm:$0xff] %vm309, 0.0
      %326 = vst.msk [vmem:[#allocation2 + $0xd8] sm:$0xff] %vm309, 0.0
      %327 = vst.msk [vmem:[#allocation2 + $0x10] sm:$0xff] %vm309, 0.0
      %328 = vst.msk [vmem:[#allocation2 + $0x28] sm:$0xff] %vm309, 0.0
      %329 = vst.msk [vmem:[#allocation2 + $0x40] sm:$0xff] %vm309, 0.0
      %330 = vst.msk [vmem:[#allocation2 + $0x58] sm:$0xff] %vm309, 0.0
      %331 = vst.msk [vmem:[#allocation2 + $0x70] sm:$0xff] %vm309, 0.0
      %332 = vst.msk [vmem:[#allocation2 + $0x88] sm:$0xff] %vm309, 0.0
      %333 = vst.msk [vmem:[#allocation2 + $0xa0] sm:$0xff] %vm309, 0.0
      %334 = vst.msk [vmem:[#allocation2 + $0xb8] sm:$0xff] %vm309, 0.0
      %335 = vst.msk [vmem:[#allocation2 + $0xd0] sm:$0xff] %vm309, 0.0
      %336 = vst.msk [vmem:[#allocation2 + $0xe8] sm:$0xff] %vm309, 0.0
      %s337 = scalar_lea.vmem [#allocation2], 24
      %338 = vst.msk [vmem:[%s337 + $0x8] sm:$0xff] %vm309, %v301
      %339 = vst.msk [vmem:[%s337 + $0x20] sm:$0xff] %vm309, %v302
      %340 = vst.msk [vmem:[%s337 + $0x38] sm:$0xff] %vm309, %v303
      %341 = vst.msk [vmem:[%s337 + $0x50] sm:$0xff] %vm309, %v304
      %342 = vst.msk [vmem:[%s337 + $0x68] sm:$0xff] %vm309, %v305
      %343 = vst.msk [vmem:[%s337 + $0x80] sm:$0xff] %vm309, %v306
      %344 = vst.msk [vmem:[%s337 + $0x98] sm:$0xff] %vm309, %v307
      %345 = vst.msk [vmem:[%s337 + $0xb0] sm:$0xff] %vm309, %v308
      %v346 = vld [vmem:[#allocation2 + $0x7] sm:$0xff]
      %v347 = vld [vmem:[#allocation2 + $0x1f] sm:$0xff]
      %v348 = vld [vmem:[#allocation2 + $0x37] sm:$0xff]
      %v349 = vld [vmem:[#allocation2 + $0x4f] sm:$0xff]
      %v350 = vld [vmem:[#allocation2 + $0x67] sm:$0xff]
      %v351 = vld [vmem:[#allocation2 + $0x7f] sm:$0xff]
      %v352 = vld [vmem:[#allocation2 + $0x97] sm:$0xff]
      %v353 = vld [vmem:[#allocation2 + $0xaf] sm:$0xff]
      %v354 = vld [vmem:[%s3] sm:$0xf]
      %v355 = vld [vmem:[#allocation2 + $0x8] sm:$0xff]
      %v356 = vld [vmem:[#allocation2 + $0x20] sm:$0xff]
      %v357 = vld [vmem:[#allocation2 + $0x38] sm:$0xff]
      %v358 = vld [vmem:[#allocation2 + $0x50] sm:$0xff]
      %v359 = vld [vmem:[#allocation2 + $0x68] sm:$0xff]
      %v360 = vld [vmem:[#allocation2 + $0x80] sm:$0xff]
      %v361 = vld [vmem:[#allocation2 + $0x98] sm:$0xff]
      %v362 = vld [vmem:[#allocation2 + $0xb0] sm:$0xff]
      %s363 = scalar_lea.vmem %s3, 4
      %v364 = vld [vmem:[%s363] sm:$0xf]
      %v366 = vsel %vm309, %v355, 0
      %v369 = vsel %vm309, %v356, 0
      %v372 = vsel %vm309, %v357, 0
      %v375 = vsel %vm309, %v358, 0
      %v378 = vsel %vm309, %v359, 0
      %v381 = vsel %vm309, %v360, 0
      %v384 = vsel %vm309, %v361, 0
      %v387 = vsel %vm309, %v362, 0
      %vm389 = vcmask 1043456
      %v391 = vsel %vm389, %v364, 0
      %393 = vmatpush.msra.mxu0 0.0
      %394 = vmatpush.msra.mxu0 0.0
      %395 = vmatpush.msra.mxu0 0.0
      %396 = vmatpush.msra.mxu0 0.0
      %397 = vmatpush.msra.mxu0 0.0
      %398 = vmatpush.msra.mxu0 0.0
      %399 = vmatpush.msra.mxu0 0.0
      %400 = vmatpush.msra.mxu0 0.0
      %401 = vmatpush.msra.mxu0 0.0
      %402 = vmatpush.msra.mxu0 0.0
      %403 = vmatpush.msra.mxu0 0.0
      %404 = vmatpush.msra.mxu0 0.0
      %405 = vmatpush.msra.mxu0 0.0
      %406 = vmatpush.msra.mxu0 0.0
      %407 = vmatpush.msra.mxu0 0.0
      %408 = vmatpush.msra.mxu0 %v391
      %409 = vmatmul.f32.gmra.mxu0 %v366
      %v410 = vpop.f32.mrf.mxu0
      %v411 = vadd.f32 0.0, %v410
      %412 = vmatmul.f32.gmra.mxu0 %v369
      %v413 = vpop.f32.mrf.mxu0
      %v414 = vadd.f32 0.0, %v413
      %415 = vmatmul.f32.gmra.mxu0 %v372
      %v416 = vpop.f32.mrf.mxu0
      %v417 = vadd.f32 0.0, %v416
      %418 = vmatmul.f32.gmra.mxu0 %v375
      %v419 = vpop.f32.mrf.mxu0
      %v420 = vadd.f32 0.0, %v419
      %421 = vmatmul.f32.gmra.mxu0 %v378
      %v422 = vpop.f32.mrf.mxu0
      %v423 = vadd.f32 0.0, %v422
      %424 = vmatmul.f32.gmra.mxu0 %v381
      %v425 = vpop.f32.mrf.mxu0
      %v426 = vadd.f32 0.0, %v425
      %427 = vmatmul.f32.gmra.mxu0 %v384
      %v428 = vpop.f32.mrf.mxu0
      %v429 = vadd.f32 0.0, %v428
      %430 = vmatmul.f32.gmra.mxu0 %v387
      %v431 = vpop.f32.mrf.mxu0
      %v432 = vadd.f32 0.0, %v431
      %433 = vdwg.mxu0
      %v435 = vsel %vm309, %v346, 0
      %v438 = vsel %vm309, %v347, 0
      %v441 = vsel %vm309, %v348, 0
      %v444 = vsel %vm309, %v349, 0
      %v447 = vsel %vm309, %v350, 0
      %v450 = vsel %vm309, %v351, 0
      %v453 = vsel %vm309, %v352, 0
      %v456 = vsel %vm309, %v353, 0
      %v459 = vsel %vm389, %v354, 0
      %461 = vmatpush.msra.mxu0 0.0
      %462 = vmatpush.msra.mxu0 0.0
      %463 = vmatpush.msra.mxu0 0.0
      %464 = vmatpush.msra.mxu0 0.0
      %465 = vmatpush.msra.mxu0 0.0
      %466 = vmatpush.msra.mxu0 0.0
      %467 = vmatpush.msra.mxu0 0.0
      %468 = vmatpush.msra.mxu0 0.0
      %469 = vmatpush.msra.mxu0 0.0
      %470 = vmatpush.msra.mxu0 0.0
      %471 = vmatpush.msra.mxu0 0.0
      %472 = vmatpush.msra.mxu0 0.0
      %473 = vmatpush.msra.mxu0 0.0
      %474 = vmatpush.msra.mxu0 0.0
      %475 = vmatpush.msra.mxu0 0.0
      %476 = vmatpush.msra.mxu0 %v459
      %477 = vmatmul.f32.gmra.mxu0 %v435
      %v478 = vpop.f32.mrf.mxu0
      %v479 = vadd.f32 %v411, %v478
      %480 = vmatmul.f32.gmra.mxu0 %v438
      %v481 = vpop.f32.mrf.mxu0
      %v482 = vadd.f32 %v414, %v481
      %483 = vmatmul.f32.gmra.mxu0 %v441
      %v484 = vpop.f32.mrf.mxu0
      %v485 = vadd.f32 %v417, %v484
      %486 = vmatmul.f32.gmra.mxu0 %v444
      %v487 = vpop.f32.mrf.mxu0
      %v488 = vadd.f32 %v420, %v487
      %489 = vmatmul.f32.gmra.mxu0 %v447
      %v490 = vpop.f32.mrf.mxu0
      %v491 = vadd.f32 %v423, %v490
      %492 = vmatmul.f32.gmra.mxu0 %v450
      %v493 = vpop.f32.mrf.mxu0
      %v494 = vadd.f32 %v426, %v493
      %495 = vmatmul.f32.gmra.mxu0 %v453
      %v496 = vpop.f32.mrf.mxu0
      %v497 = vadd.f32 %v429, %v496
      %498 = vmatmul.f32.gmra.mxu0 %v456
      %v499 = vpop.f32.mrf.mxu0
      %v500 = vadd.f32 %v432, %v499
      %501 = vdwg.mxu0
      %v502 = vld [vmem:[#allocation2 + $0x9] sm:$0xff]
      %v503 = vld [vmem:[#allocation2 + $0x21] sm:$0xff]
      %v504 = vld [vmem:[#allocation2 + $0x39] sm:$0xff]
      %v505 = vld [vmem:[#allocation2 + $0x51] sm:$0xff]
      %v506 = vld [vmem:[#allocation2 + $0x69] sm:$0xff]
      %v507 = vld [vmem:[#allocation2 + $0x81] sm:$0xff]
      %v508 = vld [vmem:[#allocation2 + $0x99] sm:$0xff]
      %v509 = vld [vmem:[#allocation2 + $0xb1] sm:$0xff]
      %s510 = scalar_lea.vmem %s3, 8
      %v511 = vld [vmem:[%s510] sm:$0xf]
      %v513 = vsel %vm309, %v502, 0
      %v516 = vsel %vm309, %v503, 0
      %v519 = vsel %vm309, %v504, 0
      %v522 = vsel %vm309, %v505, 0
      %v525 = vsel %vm309, %v506, 0
      %v528 = vsel %vm309, %v507, 0
      %v531 = vsel %vm309, %v508, 0
      %v534 = vsel %vm309, %v509, 0
      %v537 = vsel %vm389, %v511, 0
      %539 = vmatpush.msra.mxu0 0.0
      %540 = vmatpush.msra.mxu0 0.0
      %541 = vmatpush.msra.mxu0 0.0
      %542 = vmatpush.msra.mxu0 0.0
      %543 = vmatpush.msra.mxu0 0.0
      %544 = vmatpush.msra.mxu0 0.0
      %545 = vmatpush.msra.mxu0 0.0
      %546 = vmatpush.msra.mxu0 0.0
      %547 = vmatpush.msra.mxu0 0.0
      %548 = vmatpush.msra.mxu0 0.0
      %549 = vmatpush.msra.mxu0 0.0
      %550 = vmatpush.msra.mxu0 0.0
      %551 = vmatpush.msra.mxu0 0.0
      %552 = vmatpush.msra.mxu0 0.0
      %553 = vmatpush.msra.mxu0 0.0
      %554 = vmatpush.msra.mxu0 %v537
      %555 = vmatmul.f32.gmra.mxu0 %v513
      %v556 = vpop.f32.mrf.mxu0
      %v557 = vadd.f32 0.0, %v556
      %558 = vmatmul.f32.gmra.mxu0 %v516
      %v559 = vpop.f32.mrf.mxu0
      %v560 = vadd.f32 0.0, %v559
      %561 = vmatmul.f32.gmra.mxu0 %v519
      %v562 = vpop.f32.mrf.mxu0
      %v563 = vadd.f32 0.0, %v562
      %564 = vmatmul.f32.gmra.mxu0 %v522
      %v565 = vpop.f32.mrf.mxu0
      %v566 = vadd.f32 0.0, %v565
      %567 = vmatmul.f32.gmra.mxu0 %v525
      %v568 = vpop.f32.mrf.mxu0
      %v569 = vadd.f32 0.0, %v568
      %570 = vmatmul.f32.gmra.mxu0 %v528
      %v571 = vpop.f32.mrf.mxu0
      %v572 = vadd.f32 0.0, %v571
      %573 = vmatmul.f32.gmra.mxu0 %v531
      %v574 = vpop.f32.mrf.mxu0
      %v575 = vadd.f32 0.0, %v574
      %576 = vmatmul.f32.gmra.mxu0 %v534
      %v577 = vpop.f32.mrf.mxu0
      %v578 = vadd.f32 0.0, %v577
      %579 = vdwg.mxu0
      %v580 = vadd.f32 %v479, %v557
      %v581 = vadd.f32 %v482, %v560
      %v582 = vadd.f32 %v485, %v563
      %v583 = vadd.f32 %v488, %v566
      %v584 = vadd.f32 %v491, %v569
      %v585 = vadd.f32 %v494, %v572
      %v586 = vadd.f32 %v497, %v575
      %v587 = vadd.f32 %v500, %v578
      %v588 = vld [vmem:[%s337 + $0x7] sm:$0xff]
      %v589 = vld [vmem:[%s337 + $0x1f] sm:$0xff]
      %v590 = vld [vmem:[%s337 + $0x37] sm:$0xff]
      %v591 = vld [vmem:[%s337 + $0x4f] sm:$0xff]
      %v592 = vld [vmem:[%s337 + $0x67] sm:$0xff]
      %v593 = vld [vmem:[%s337 + $0x7f] sm:$0xff]
      %v594 = vld [vmem:[%s337 + $0x97] sm:$0xff]
      %v595 = vld [vmem:[%s337 + $0xaf] sm:$0xff]
      %s596 = scalar_lea.vmem %s3, 12
      %v597 = vld [vmem:[%s596] sm:$0xf]
      %v599 = vsel %vm309, %v588, 0
      %v602 = vsel %vm309, %v589, 0
      %v605 = vsel %vm309, %v590, 0
      %v608 = vsel %vm309, %v591, 0
      %v611 = vsel %vm309, %v592, 0
      %v614 = vsel %vm309, %v593, 0
      %v617 = vsel %vm309, %v594, 0
      %v620 = vsel %vm309, %v595, 0
      %v623 = vsel %vm389, %v597, 0
      %625 = vmatpush.msra.mxu0 0.0
      %626 = vmatpush.msra.mxu0 0.0
      %627 = vmatpush.msra.mxu0 0.0
      %628 = vmatpush.msra.mxu0 0.0
      %629 = vmatpush.msra.mxu0 0.0
      %630 = vmatpush.msra.mxu0 0.0
      %631 = vmatpush.msra.mxu0 0.0
      %632 = vmatpush.msra.mxu0 0.0
      %633 = vmatpush.msra.mxu0 0.0
      %634 = vmatpush.msra.mxu0 0.0
      %635 = vmatpush.msra.mxu0 0.0
      %636 = vmatpush.msra.mxu0 0.0
      %637 = vmatpush.msra.mxu0 0.0
      %638 = vmatpush.msra.mxu0 0.0
      %639 = vmatpush.msra.mxu0 0.0
      %640 = vmatpush.msra.mxu0 %v623
      %641 = vmatmul.f32.gmra.mxu0 %v599
      %v642 = vpop.f32.mrf.mxu0
      %v643 = vadd.f32 0.0, %v642
      %644 = vmatmul.f32.gmra.mxu0 %v602
      %v645 = vpop.f32.mrf.mxu0
      %v646 = vadd.f32 0.0, %v645
      %647 = vmatmul.f32.gmra.mxu0 %v605
      %v648 = vpop.f32.mrf.mxu0
      %v649 = vadd.f32 0.0, %v648
      %650 = vmatmul.f32.gmra.mxu0 %v608
      %v651 = vpop.f32.mrf.mxu0
      %v652 = vadd.f32 0.0, %v651
      %653 = vmatmul.f32.gmra.mxu0 %v611
      %v654 = vpop.f32.mrf.mxu0
      %v655 = vadd.f32 0.0, %v654
      %656 = vmatmul.f32.gmra.mxu0 %v614
      %v657 = vpop.f32.mrf.mxu0
      %v658 = vadd.f32 0.0, %v657
      %659 = vmatmul.f32.gmra.mxu0 %v617
      %v660 = vpop.f32.mrf.mxu0
      %v661 = vadd.f32 0.0, %v660
      %662 = vmatmul.f32.gmra.mxu0 %v620
      %v663 = vpop.f32.mrf.mxu0
      %v664 = vadd.f32 0.0, %v663
      %665 = vdwg.mxu0
      %v666 = vadd.f32 %v580, %v643
      %v667 = vadd.f32 %v581, %v646
      %v668 = vadd.f32 %v582, %v649
      %v669 = vadd.f32 %v583, %v652
      %v670 = vadd.f32 %v584, %v655
      %v671 = vadd.f32 %v585, %v658
      %v672 = vadd.f32 %v586, %v661
      %v673 = vadd.f32 %v587, %v664
      %v674 = vld [vmem:[%s337 + $0x8] sm:$0xff]
      %v675 = vld [vmem:[%s337 + $0x20] sm:$0xff]
      %v676 = vld [vmem:[%s337 + $0x38] sm:$0xff]
      %v677 = vld [vmem:[%s337 + $0x50] sm:$0xff]
      %v678 = vld [vmem:[%s337 + $0x68] sm:$0xff]
      %v679 = vld [vmem:[%s337 + $0x80] sm:$0xff]
      %v680 = vld [vmem:[%s337 + $0x98] sm:$0xff]
      %v681 = vld [vmem:[%s337 + $0xb0] sm:$0xff]
      %s682 = scalar_lea.vmem %s3, 16
      %v683 = vld [vmem:[%s682] sm:$0xf]
      %v685 = vsel %vm309, %v674, 0
      %v688 = vsel %vm309, %v675, 0
      %v691 = vsel %vm309, %v676, 0
      %v694 = vsel %vm309, %v677, 0
      %v697 = vsel %vm309, %v678, 0
      %v700 = vsel %vm309, %v679, 0
      %v703 = vsel %vm309, %v680, 0
      %v706 = vsel %vm309, %v681, 0
      %v709 = vsel %vm389, %v683, 0
      %711 = vmatpush.msra.mxu0 0.0
      %712 = vmatpush.msra.mxu0 0.0
      %713 = vmatpush.msra.mxu0 0.0
      %714 = vmatpush.msra.mxu0 0.0
      %715 = vmatpush.msra.mxu0 0.0
      %716 = vmatpush.msra.mxu0 0.0
      %717 = vmatpush.msra.mxu0 0.0
      %718 = vmatpush.msra.mxu0 0.0
      %719 = vmatpush.msra.mxu0 0.0
      %720 = vmatpush.msra.mxu0 0.0
      %721 = vmatpush.msra.mxu0 0.0
      %722 = vmatpush.msra.mxu0 0.0
      %723 = vmatpush.msra.mxu0 0.0
      %724 = vmatpush.msra.mxu0 0.0
      %725 = vmatpush.msra.mxu0 0.0
      %726 = vmatpush.msra.mxu0 %v709
      %727 = vmatmul.f32.gmra.mxu0 %v685
      %v728 = vpop.f32.mrf.mxu0
      %v729 = vadd.f32 0.0, %v728
      %730 = vmatmul.f32.gmra.mxu0 %v688
      %v731 = vpop.f32.mrf.mxu0
      %v732 = vadd.f32 0.0, %v731
      %733 = vmatmul.f32.gmra.mxu0 %v691
      %v734 = vpop.f32.mrf.mxu0
      %v735 = vadd.f32 0.0, %v734
      %736 = vmatmul.f32.gmra.mxu0 %v694
      %v737 = vpop.f32.mrf.mxu0
      %v738 = vadd.f32 0.0, %v737
      %739 = vmatmul.f32.gmra.mxu0 %v697
      %v740 = vpop.f32.mrf.mxu0
      %v741 = vadd.f32 0.0, %v740
      %742 = vmatmul.f32.gmra.mxu0 %v700
      %v743 = vpop.f32.mrf.mxu0
      %v744 = vadd.f32 0.0, %v743
      %745 = vmatmul.f32.gmra.mxu0 %v703
      %v746 = vpop.f32.mrf.mxu0
      %v747 = vadd.f32 0.0, %v746
      %748 = vmatmul.f32.gmra.mxu0 %v706
      %v749 = vpop.f32.mrf.mxu0
      %v750 = vadd.f32 0.0, %v749
      %751 = vdwg.mxu0
      %v752 = vadd.f32 %v666, %v729
      %v753 = vadd.f32 %v667, %v732
      %v754 = vadd.f32 %v668, %v735
      %v755 = vadd.f32 %v669, %v738
      %v756 = vadd.f32 %v670, %v741
      %v757 = vadd.f32 %v671, %v744
      %v758 = vadd.f32 %v672, %v747
      %v759 = vadd.f32 %v673, %v750
      %v760 = vld [vmem:[%s337 + $0x9] sm:$0xff]
      %v761 = vld [vmem:[%s337 + $0x21] sm:$0xff]
      %v762 = vld [vmem:[%s337 + $0x39] sm:$0xff]
      %v763 = vld [vmem:[%s337 + $0x51] sm:$0xff]
      %v764 = vld [vmem:[%s337 + $0x69] sm:$0xff]
      %v765 = vld [vmem:[%s337 + $0x81] sm:$0xff]
      %v766 = vld [vmem:[%s337 + $0x99] sm:$0xff]
      %v767 = vld [vmem:[%s337 + $0xb1] sm:$0xff]
      %s768 = scalar_lea.vmem %s3, 20
      %v769 = vld [vmem:[%s768] sm:$0xf]
      %v771 = vsel %vm309, %v760, 0
      %v774 = vsel %vm309, %v761, 0
      %v777 = vsel %vm309, %v762, 0
      %v780 = vsel %vm309, %v763, 0
      %v783 = vsel %vm309, %v764, 0
      %v786 = vsel %vm309, %v765, 0
      %v789 = vsel %vm309, %v766, 0
      %v792 = vsel %vm309, %v767, 0
      %v795 = vsel %vm389, %v769, 0
      %797 = vmatpush.msra.mxu0 0.0
      %798 = vmatpush.msra.mxu0 0.0
      %799 = vmatpush.msra.mxu0 0.0
      %800 = vmatpush.msra.mxu0 0.0
      %801 = vmatpush.msra.mxu0 0.0
      %802 = vmatpush.msra.mxu0 0.0
      %803 = vmatpush.msra.mxu0 0.0
      %804 = vmatpush.msra.mxu0 0.0
      %805 = vmatpush.msra.mxu0 0.0
      %806 = vmatpush.msra.mxu0 0.0
      %807 = vmatpush.msra.mxu0 0.0
      %808 = vmatpush.msra.mxu0 0.0
      %809 = vmatpush.msra.mxu0 0.0
      %810 = vmatpush.msra.mxu0 0.0
      %811 = vmatpush.msra.mxu0 0.0
      %812 = vmatpush.msra.mxu0 %v795
      %813 = vmatmul.f32.gmra.mxu0 %v771
      %v814 = vpop.f32.mrf.mxu0
      %v815 = vadd.f32 0.0, %v814
      %816 = vmatmul.f32.gmra.mxu0 %v774
      %v817 = vpop.f32.mrf.mxu0
      %v818 = vadd.f32 0.0, %v817
      %819 = vmatmul.f32.gmra.mxu0 %v777
      %v820 = vpop.f32.mrf.mxu0
      %v821 = vadd.f32 0.0, %v820
      %822 = vmatmul.f32.gmra.mxu0 %v780
      %v823 = vpop.f32.mrf.mxu0
      %v824 = vadd.f32 0.0, %v823
      %825 = vmatmul.f32.gmra.mxu0 %v783
      %v826 = vpop.f32.mrf.mxu0
      %v827 = vadd.f32 0.0, %v826
      %828 = vmatmul.f32.gmra.mxu0 %v786
      %v829 = vpop.f32.mrf.mxu0
      %v830 = vadd.f32 0.0, %v829
      %831 = vmatmul.f32.gmra.mxu0 %v789
      %v832 = vpop.f32.mrf.mxu0
      %v833 = vadd.f32 0.0, %v832
      %834 = vmatmul.f32.gmra.mxu0 %v792
      %v835 = vpop.f32.mrf.mxu0
      %v836 = vadd.f32 0.0, %v835
      %837 = vdwg.mxu0
      %v838 = vadd.f32 %v752, %v815
      %v839 = vadd.f32 %v753, %v818
      %v840 = vadd.f32 %v754, %v821
      %v841 = vadd.f32 %v755, %v824
      %v842 = vadd.f32 %v756, %v827
      %v843 = vadd.f32 %v757, %v830
      %v844 = vadd.f32 %v758, %v833
      %v845 = vadd.f32 %v759, %v836
      %s846 = scalar_lea.vmem [#allocation2], 48
      %v847 = vld [vmem:[%s846 + $0x7] sm:$0xff]
      %v848 = vld [vmem:[%s846 + $0x1f] sm:$0xff]
      %v849 = vld [vmem:[%s846 + $0x37] sm:$0xff]
      %v850 = vld [vmem:[%s846 + $0x4f] sm:$0xff]
      %v851 = vld [vmem:[%s846 + $0x67] sm:$0xff]
      %v852 = vld [vmem:[%s846 + $0x7f] sm:$0xff]
      %v853 = vld [vmem:[%s846 + $0x97] sm:$0xff]
      %v854 = vld [vmem:[%s846 + $0xaf] sm:$0xff]
      %s855 = scalar_lea.vmem %s3, 24
      %v856 = vld [vmem:[%s855] sm:$0xf]
      %v858 = vsel %vm309, %v847, 0
      %v861 = vsel %vm309, %v848, 0
      %v864 = vsel %vm309, %v849, 0
      %v867 = vsel %vm309, %v850, 0
      %v870 = vsel %vm309, %v851, 0
      %v873 = vsel %vm309, %v852, 0
      %v876 = vsel %vm309, %v853, 0
      %v879 = vsel %vm309, %v854, 0
      %v882 = vsel %vm389, %v856, 0
      %884 = vmatpush.msra.mxu0 0.0
      %885 = vmatpush.msra.mxu0 0.0
      %886 = vmatpush.msra.mxu0 0.0
      %887 = vmatpush.msra.mxu0 0.0
      %888 = vmatpush.msra.mxu0 0.0
      %889 = vmatpush.msra.mxu0 0.0
      %890 = vmatpush.msra.mxu0 0.0
      %891 = vmatpush.msra.mxu0 0.0
      %892 = vmatpush.msra.mxu0 0.0
      %893 = vmatpush.msra.mxu0 0.0
      %894 = vmatpush.msra.mxu0 0.0
      %895 = vmatpush.msra.mxu0 0.0
      %896 = vmatpush.msra.mxu0 0.0
      %897 = vmatpush.msra.mxu0 0.0
      %898 = vmatpush.msra.mxu0 0.0
      %899 = vmatpush.msra.mxu0 %v882
      %900 = vmatmul.f32.gmra.mxu0 %v858
      %v901 = vpop.f32.mrf.mxu0
      %v902 = vadd.f32 0.0, %v901
      %903 = vmatmul.f32.gmra.mxu0 %v861
      %v904 = vpop.f32.mrf.mxu0
      %v905 = vadd.f32 0.0, %v904
      %906 = vmatmul.f32.gmra.mxu0 %v864
      %v907 = vpop.f32.mrf.mxu0
      %v908 = vadd.f32 0.0, %v907
      %909 = vmatmul.f32.gmra.mxu0 %v867
      %v910 = vpop.f32.mrf.mxu0
      %v911 = vadd.f32 0.0, %v910
      %912 = vmatmul.f32.gmra.mxu0 %v870
      %v913 = vpop.f32.mrf.mxu0
      %v914 = vadd.f32 0.0, %v913
      %915 = vmatmul.f32.gmra.mxu0 %v873
      %v916 = vpop.f32.mrf.mxu0
      %v917 = vadd.f32 0.0, %v916
      %918 = vmatmul.f32.gmra.mxu0 %v876
      %v919 = vpop.f32.mrf.mxu0
      %v920 = vadd.f32 0.0, %v919
      %921 = vmatmul.f32.gmra.mxu0 %v879
      %v922 = vpop.f32.mrf.mxu0
      %v923 = vadd.f32 0.0, %v922
      %924 = vdwg.mxu0
      %v925 = vadd.f32 %v838, %v902
      %v926 = vadd.f32 %v839, %v905
      %v927 = vadd.f32 %v840, %v908
      %v928 = vadd.f32 %v841, %v911
      %v929 = vadd.f32 %v842, %v914
      %v930 = vadd.f32 %v843, %v917
      %v931 = vadd.f32 %v844, %v920
      %v932 = vadd.f32 %v845, %v923
      %v933 = vld [vmem:[%s846 + $0x8] sm:$0xff]
      %v934 = vld [vmem:[%s846 + $0x20] sm:$0xff]
      %v935 = vld [vmem:[%s846 + $0x38] sm:$0xff]
      %v936 = vld [vmem:[%s846 + $0x50] sm:$0xff]
      %v937 = vld [vmem:[%s846 + $0x68] sm:$0xff]
      %v938 = vld [vmem:[%s846 + $0x80] sm:$0xff]
      %v939 = vld [vmem:[%s846 + $0x98] sm:$0xff]
      %v940 = vld [vmem:[%s846 + $0xb0] sm:$0xff]
      %s941 = scalar_lea.vmem %s3, 28
      %v942 = vld [vmem:[%s941] sm:$0xf]
      %v944 = vsel %vm309, %v933, 0
      %v947 = vsel %vm309, %v934, 0
      %v950 = vsel %vm309, %v935, 0
      %v953 = vsel %vm309, %v936, 0
      %v956 = vsel %vm309, %v937, 0
      %v959 = vsel %vm309, %v938, 0
      %v962 = vsel %vm309, %v939, 0
      %v965 = vsel %vm309, %v940, 0
      %v968 = vsel %vm389, %v942, 0
      %970 = vmatpush.msra.mxu0 0.0
      %971 = vmatpush.msra.mxu0 0.0
      %972 = vmatpush.msra.mxu0 0.0
      %973 = vmatpush.msra.mxu0 0.0
      %974 = vmatpush.msra.mxu0 0.0
      %975 = vmatpush.msra.mxu0 0.0
      %976 = vmatpush.msra.mxu0 0.0
      %977 = vmatpush.msra.mxu0 0.0
      %978 = vmatpush.msra.mxu0 0.0
      %979 = vmatpush.msra.mxu0 0.0
      %980 = vmatpush.msra.mxu0 0.0
      %981 = vmatpush.msra.mxu0 0.0
      %982 = vmatpush.msra.mxu0 0.0
      %983 = vmatpush.msra.mxu0 0.0
      %984 = vmatpush.msra.mxu0 0.0
      %985 = vmatpush.msra.mxu0 %v968
      %986 = vmatmul.f32.gmra.mxu0 %v944
      %v987 = vpop.f32.mrf.mxu0
      %v988 = vadd.f32 0.0, %v987
      %989 = vmatmul.f32.gmra.mxu0 %v947
      %v990 = vpop.f32.mrf.mxu0
      %v991 = vadd.f32 0.0, %v990
      %992 = vmatmul.f32.gmra.mxu0 %v950
      %v993 = vpop.f32.mrf.mxu0
      %v994 = vadd.f32 0.0, %v993
      %995 = vmatmul.f32.gmra.mxu0 %v953
      %v996 = vpop.f32.mrf.mxu0
      %v997 = vadd.f32 0.0, %v996
      %998 = vmatmul.f32.gmra.mxu0 %v956
      %v999 = vpop.f32.mrf.mxu0
      %v1000 = vadd.f32 0.0, %v999
      %1001 = vmatmul.f32.gmra.mxu0 %v959
      %v1002 = vpop.f32.mrf.mxu0
      %v1003 = vadd.f32 0.0, %v1002
      %1004 = vmatmul.f32.gmra.mxu0 %v962
      %v1005 = vpop.f32.mrf.mxu0
      %v1006 = vadd.f32 0.0, %v1005
      %1007 = vmatmul.f32.gmra.mxu0 %v965
      %v1008 = vpop.f32.mrf.mxu0
      %v1009 = vadd.f32 0.0, %v1008
      %1010 = vdwg.mxu0
      %v1011 = vadd.f32 %v925, %v988
      %v1012 = vadd.f32 %v926, %v991
      %v1013 = vadd.f32 %v927, %v994
      %v1014 = vadd.f32 %v928, %v997
      %v1015 = vadd.f32 %v929, %v1000
      %v1016 = vadd.f32 %v930, %v1003
      %v1017 = vadd.f32 %v931, %v1006
      %v1018 = vadd.f32 %v932, %v1009
      %v1019 = vld [vmem:[%s846 + $0x9] sm:$0xff]
      %v1020 = vld [vmem:[%s846 + $0x21] sm:$0xff]
      %v1021 = vld [vmem:[%s846 + $0x39] sm:$0xff]
      %v1022 = vld [vmem:[%s846 + $0x51] sm:$0xff]
      %v1023 = vld [vmem:[%s846 + $0x69] sm:$0xff]
      %v1024 = vld [vmem:[%s846 + $0x81] sm:$0xff]
      %v1025 = vld [vmem:[%s846 + $0x99] sm:$0xff]
      %v1026 = vld [vmem:[%s846 + $0xb1] sm:$0xff]
      %s1027 = scalar_lea.vmem %s3, 32
      %v1028 = vld [vmem:[%s1027] sm:$0xf]
      %v1030 = vsel %vm309, %v1019, 0
      %v1033 = vsel %vm309, %v1020, 0
      %v1036 = vsel %vm309, %v1021, 0
      %v1039 = vsel %vm309, %v1022, 0
      %v1042 = vsel %vm309, %v1023, 0
      %v1045 = vsel %vm309, %v1024, 0
      %v1048 = vsel %vm309, %v1025, 0
      %v1051 = vsel %vm309, %v1026, 0
      %v1054 = vsel %vm389, %v1028, 0
      %1056 = vmatpush.msra.mxu0 0.0
      %1057 = vmatpush.msra.mxu0 0.0
      %1058 = vmatpush.msra.mxu0 0.0
      %1059 = vmatpush.msra.mxu0 0.0
      %1060 = vmatpush.msra.mxu0 0.0
      %1061 = vmatpush.msra.mxu0 0.0
      %1062 = vmatpush.msra.mxu0 0.0
      %1063 = vmatpush.msra.mxu0 0.0
      %1064 = vmatpush.msra.mxu0 0.0
      %1065 = vmatpush.msra.mxu0 0.0
      %1066 = vmatpush.msra.mxu0 0.0
      %1067 = vmatpush.msra.mxu0 0.0
      %1068 = vmatpush.msra.mxu0 0.0
      %1069 = vmatpush.msra.mxu0 0.0
      %1070 = vmatpush.msra.mxu0 0.0
      %1071 = vmatpush.msra.mxu0 %v1054
      %1072 = vmatmul.f32.gmra.mxu0 %v1030
      %v1073 = vpop.f32.mrf.mxu0
      %v1074 = vadd.f32 0.0, %v1073
      %1075 = vmatmul.f32.gmra.mxu0 %v1033
      %v1076 = vpop.f32.mrf.mxu0
      %v1077 = vadd.f32 0.0, %v1076
      %1078 = vmatmul.f32.gmra.mxu0 %v1036
      %v1079 = vpop.f32.mrf.mxu0
      %v1080 = vadd.f32 0.0, %v1079
      %1081 = vmatmul.f32.gmra.mxu0 %v1039
      %v1082 = vpop.f32.mrf.mxu0
      %v1083 = vadd.f32 0.0, %v1082
      %1084 = vmatmul.f32.gmra.mxu0 %v1042
      %v1085 = vpop.f32.mrf.mxu0
      %v1086 = vadd.f32 0.0, %v1085
      %1087 = vmatmul.f32.gmra.mxu0 %v1045
      %v1088 = vpop.f32.mrf.mxu0
      %v1089 = vadd.f32 0.0, %v1088
      %1090 = vmatmul.f32.gmra.mxu0 %v1048
      %v1091 = vpop.f32.mrf.mxu0
      %v1092 = vadd.f32 0.0, %v1091
      %1093 = vmatmul.f32.gmra.mxu0 %v1051
      %v1094 = vpop.f32.mrf.mxu0
      %v1095 = vadd.f32 0.0, %v1094
      %1096 = vdwg.mxu0
      %v1097 = vadd.f32 %v1011, %v1074
      %v1098 = vadd.f32 %v1012, %v1077
      %v1099 = vadd.f32 %v1013, %v1080
      %v1100 = vadd.f32 %v1014, %v1083
      %v1101 = vadd.f32 %v1015, %v1086
      %v1102 = vadd.f32 %v1016, %v1089
      %v1103 = vadd.f32 %v1017, %v1092
      %v1104 = vadd.f32 %v1018, %v1095
      %vm1105 = vcmask 64512
      %1106 = vst.msk [vmem:[%s262] sm:$0xff] %vm1105, %v1097
      %1107 = vst.msk [vmem:[%s262 + $0x8] sm:$0xff] %vm1105, %v1098
      %1108 = vst.msk [vmem:[%s262 + $0x10] sm:$0xff] %vm1105, %v1099
      %1109 = vst.msk [vmem:[%s262 + $0x18] sm:$0xff] %vm1105, %v1100
      %1110 = vst.msk [vmem:[%s262 + $0x20] sm:$0xff] %vm1105, %v1101
      %1111 = vst.msk [vmem:[%s262 + $0x28] sm:$0xff] %vm1105, %v1102
      %1112 = vst.msk [vmem:[%s262 + $0x30] sm:$0xff] %vm1105, %v1103
      %1113 = vst.msk [vmem:[%s262 + $0x38] sm:$0xff] %vm1105, %v1104
      %v1114 = vsel %vm1105, %v1097, 0.0
      %v1115 = vsel %vm1105, %v1098, 0.0
      %v1116 = vadd.f32 %v1114, %v1115
      %v1117 = vsel %vm1105, %v1099, 0.0
      %v1118 = vadd.f32 %v1116, %v1117
      %v1119 = vsel %vm1105, %v1100, 0.0
      %v1120 = vadd.f32 %v1118, %v1119
      %v1121 = vsel %vm1105, %v1101, 0.0
      %v1122 = vadd.f32 %v1120, %v1121
      %v1123 = vsel %vm1105, %v1102, 0.0
      %v1124 = vadd.f32 %v1122, %v1123
      %v1125 = vsel %vm1105, %v1103, 0.0
      %v1126 = vadd.f32 %v1124, %v1125
      %v1127 = vsel %vm1105, %v1104, 0.0
      %v1128 = vadd.f32 %v1126, %v1127
      %v1129 = vrot.slane %v1128, 4
      %v1130 = vadd.f32 %v1128, %v1129
      %v1131 = vrot.slane %v1130, 2
      %v1132 = vadd.f32 %v1130, %v1131
      %v1133 = vrot.slane %v1132, 1
      %v1134 = vadd.f32 %v1132, %v1133
      %vm1135 = vcmask 57344
      %1136 = vst.msk [vmem:[%s265] sm:$0x1] %vm1135, %v1134
      %v1137 = vmul.f32 %v1097, %v1097
      %v1138 = vmul.f32 %v1098, %v1098
      %v1139 = vmul.f32 %v1099, %v1099
      %v1140 = vmul.f32 %v1100, %v1100
      %v1141 = vmul.f32 %v1101, %v1101
      %v1142 = vmul.f32 %v1102, %v1102
      %v1143 = vmul.f32 %v1103, %v1103
      %v1144 = vmul.f32 %v1104, %v1104
      %v1145 = vsel %vm1105, %v1137, 0.0
      %v1146 = vsel %vm1105, %v1138, 0.0
      %v1147 = vadd.f32 %v1145, %v1146
      %v1148 = vsel %vm1105, %v1139, 0.0
      %v1149 = vadd.f32 %v1147, %v1148
      %v1150 = vsel %vm1105, %v1140, 0.0
      %v1151 = vadd.f32 %v1149, %v1150
      %v1152 = vsel %vm1105, %v1141, 0.0
      %v1153 = vadd.f32 %v1151, %v1152
      %v1154 = vsel %vm1105, %v1142, 0.0
      %v1155 = vadd.f32 %v1153, %v1154
      %v1156 = vsel %vm1105, %v1143, 0.0
      %v1157 = vadd.f32 %v1155, %v1156
      %v1158 = vsel %vm1105, %v1144, 0.0
      %v1159 = vadd.f32 %v1157, %v1158
      %v1160 = vrot.slane %v1159, 4
      %v1161 = vadd.f32 %v1159, %v1160
      %v1162 = vrot.slane %v1161, 2
      %v1163 = vadd.f32 %v1161, %v1162
      %v1164 = vrot.slane %v1163, 1
      %v1165 = vadd.f32 %v1163, %v1164
      %1166 = vst.msk [vmem:[%s268] sm:$0x1] %vm1135, %v1165
      %p1167 = scmp.lt.s32.totalorder %s18, 1
      %s1168 = scalar_select %p1167, %s18, 1
      %s1169 = smul.addr %s1168, 8
      %s1170 = smul.addr %s1169, 8
      %s1171 = scalar_lea.vmem %s4, %s1170
      %p1172 = scmp.lt.s32.totalorder %s18, 1
      %s1173 = scalar_select %p1172, %s18, 1
      %s1174 = scalar_lea.vmem %s5, %s1173
      %p1175 = scmp.lt.s32.totalorder %s18, 1
      %s1176 = scalar_select %p1175, %s18, 1
      %s1177 = scalar_lea.vmem %s6, %s1176
      // Predicated region
      $region37: #{sep_conv_forward.4} parent=35 // pred_check
        %p1178 = pneg %p125
      $region38: #{sep_conv_forward.4} parent=35 // pred_check_branch
        %1180 = sbr.rel (%p1178) target = $region40
      $region39: #{sep_conv_forward.4} parent=35 // pred_region
        _
      $region40: #{sep_conv_forward.4} parent=35 // pred_fallthru
        _
      // Predicated region
      $region41: #{sep_conv_forward.4} parent=35 // pred_check
        %p1181 = pneg %p151
      $region42: #{sep_conv_forward.4} parent=35 // pred_check_branch
        %1183 = sbr.rel (%p1181) target = $region44
      $region43: #{sep_conv_forward.4} parent=35 // pred_region
        _
      $region44: #{sep_conv_forward.4} parent=35 // pred_fallthru
        _
      // Predicated region
      $region45: #{sep_conv_forward.4} parent=35 // pred_check
        %p1184 = pneg %p177
      $region46: #{sep_conv_forward.4} parent=35 // pred_check_branch
        %1186 = sbr.rel (%p1184) target = $region48
      $region47: #{sep_conv_forward.4} parent=35 // pred_region
        _
      $region48: #{sep_conv_forward.4} parent=35 // pred_fallthru
        _
    $region36: #{sep_conv_forward.4} parent=5 // pred_fallthru
      _
    %p1187 = scmp.le.s32.totalorder 2, %s13
    // Predicated region
    $region49: #{sep_conv_forward.4} parent=5 // pred_check
      %p1188 = pneg %p1187
    $region50: #{sep_conv_forward.4} parent=5 // pred_check_branch
      %1190 = sbr.rel (%p1188) target = $region52
    $region51: #{sep_conv_forward.4} parent=5 // pred_region
      %s1191 = ssub.s32 %s13, 2
      // Predicated region
      $region53: #{sep_conv_forward.4} parent=51 // pred_check
        %p1192 = pneg %p131
      $region54: #{sep_conv_forward.4} parent=51 // pred_check_branch
        %1194 = sbr.rel (%p1192) target = $region56
      $region55: #{sep_conv_forward.4} parent=51 // pred_region
        %p1195 = scmp.lt.s32.totalorder %s19, 1
        %s1196 = scalar_select %p1195, %s19, 1
        %s1197 = smul.addr %s1196, 8
        %s1198 = smul.addr %s1197, 8
        %s1199 = scalar_lea.vmem %s4, %s1198
      $region56: #{sep_conv_forward.4} parent=51 // pred_fallthru
        _
      // Predicated region
      $region57: #{sep_conv_forward.4} parent=51 // pred_check
        %p1200 = pneg %p157
      $region58: #{sep_conv_forward.4} parent=51 // pred_check_branch
        %1202 = sbr.rel (%p1200) target = $region60
      $region59: #{sep_conv_forward.4} parent=51 // pred_region
        %p1203 = scmp.lt.s32.totalorder %s19, 1
        %s1204 = scalar_select %p1203, %s19, 1
        %s1205 = scalar_lea.vmem %s5, %s1204
      $region60: #{sep_conv_forward.4} parent=51 // pred_fallthru
        _
      // Predicated region
      $region61: #{sep_conv_forward.4} parent=51 // pred_check
        %p1206 = pneg %p183
      $region62: #{sep_conv_forward.4} parent=51 // pred_check_branch
        %1208 = sbr.rel (%p1206) target = $region64
      $region63: #{sep_conv_forward.4} parent=51 // pred_region
        %p1209 = scmp.lt.s32.totalorder %s19, 1
        %s1210 = scalar_select %p1209, %s19, 1
        %s1211 = scalar_lea.vmem %s6, %s1210
      $region64: #{sep_conv_forward.4} parent=51 // pred_fallthru
        _
    $region52: #{sep_conv_forward.4} parent=5 // pred_fallthru
      _
  $region6: #{sep_conv_forward.4} parent=0 // loop_footer
    %s17 = sadd.s32 1, %s13
  $region7: #{sep_conv_forward.4} parent=0 // loop_footer_branch
    %12 = sbr.rel target = $region3
  $region8: #{sep_conv_forward.4} parent=0 // loop_exit
    _

// kernel: sep_conv_forward.3
$region0: #{sep_conv_forward.3}
  #allocation0 [shape = 'u32[]', space=smem, size = 0x4, offset = 0x4, fixed_abs, tag = 'smem constant byte address 0x4 - core index']
  #allocation1 [shape = 'u32[72,128]{1,0:T(1,128)}', space=vmem, size = 0x9000, scoped, tag = 'internal scratch']
  #allocation2 [shape = 'f32[2,2,9,16,4]{4,3,2,1,0:T(8,128)}', space=vmem, size = 0x48000, scoped, tag = 'scratch operand']
  %s0 = inlined_call_operand.vmem [shape: f32[2,16,8,8], index: 0, kind: input, shape index: {}]
  %s1 = inlined_call_operand.vmem [shape: f32[9,4,4], index: 1, kind: input, shape index: {}]
  %s2 = inlined_call_operand.vmem [shape: f32[2,8,8,4], index: 2, kind: output, shape index: {0}]
  %s3 = inlined_call_operand.vmem [shape: f32[2,1,4], index: 3, kind: output, shape index: {1}]
  %s4 = inlined_call_operand.vmem [shape: f32[2,1,4], index: 4, kind: output, shape index: {2}]
  %5 = xla_tuple %s2, %s3, %s4
  %s6 = sld [smem:[#allocation0]]
  $region57: #{sep_conv_forward.3} parent=0
    _
  %s8 = ssub.s32 1, %s6
  %s9 = scalar_select 0, %s8, %s6
  loop: start=0, step=1, limit=4
  $region2: #{sep_conv_forward.3} parent=0 // loop_pre_header
    _
  $region3: #{sep_conv_forward.3} parent=0 // loop_header
    %s11 = sphi 0, %s15
    %p12 = scmp.ge.s32.totalorder %s11, 4
    %s21 = sphi 0, %s23
    %s24 = sphi 0, %s21
    %s25 = sphi 0, %s24
    %s41 = sphi 0, %s25
    %s45 = sphi 0, %s45
    %s47 = sphi 0, %s45
    %s48 = sphi 0, %s47
    %s62 = sphi 0, %s48
    %s68 = sphi 0, %s70
    %s71 = sphi 0, %s68
    %s72 = sphi 0, %s71
    %s88 = sphi 0, %s72
    %s94 = sphi 0, %s96
    %s97 = sphi 0, %s94
    %s98 = sphi 0, %s97
    %s114 = sphi 0, %s98
    %s120 = sphi 0, %s122
    %s123 = sphi 0, %s120
    %s124 = sphi 0, %s123
    %s140 = sphi 0, %s124
  $region4: #{sep_conv_forward.3} parent=0 // loop_header_branch
    %14 = sbr.rel (%p12) target = $region8
  $region5: #{sep_conv_forward.3} parent=0 // loop_body
    %s16 = ssub.s32 %s11, 1
    %s17 = ssub.s32 %s11, 2
    %s18 = sadd.s32 %s11, 1
    %s19 = ssub.s32 %s11, %s18
    %p20 = scmp.eq.s32.totalorder %s19, 0
    %s22 = sadd.s32 %s21, 1
    %s23 = scalar_select %p20, %s21, %s22
    %p26 = pneg %p20
    %p27 = scmp.eq.s32.totalorder %s11, 1
    %p28 = por %p26, %p27
    %p29 = scmp.ne.s32.totalorder %s21, %s24
    %p30 = scmp.eq.s32.totalorder %s11, 0
    %p31 = por %p29, %p30
    %p32 = scmp.ne.s32.totalorder %s21, %s24
    %p33 = scmp.eq.s32.totalorder %s16, 1
    %p34 = por %p32, %p33
    %p35 = scmp.ne.s32.totalorder %s24, %s25
    %p36 = scmp.eq.s32.totalorder %s16, 0
    %p37 = por %p35, %p36
    %p38 = scmp.ne.s32.totalorder %s24, %s25
    %p39 = scmp.eq.s32.totalorder %s17, 1
    %p40 = por %p38, %p39
    %p42 = scmp.ne.s32.totalorder %s25, %s41
    %p43 = scmp.eq.s32.totalorder %s17, 0
    %p44 = por %p42, %p43
    %s46 = sadd.s32 %s45, 1
    %p49 = scmp.eq.s32.totalorder %s11, 1
    %p50 = scmp.ne.s32.totalorder %s45, %s47
    %p51 = scmp.eq.s32.totalorder %s11, 0
    %p52 = por %p50, %p51
    %p53 = scmp.ne.s32.totalorder %s45, %s47
    %p54 = scmp.eq.s32.totalorder %s16, 1
    %p55 = por %p53, %p54
    %p56 = scmp.ne.s32.totalorder %s47, %s48
    %p57 = scmp.eq.s32.totalorder %s16, 0
    %p58 = por %p56, %p57
    %p59 = scmp.ne.s32.totalorder %s47, %s48
    %p60 = scmp.eq.s32.totalorder %s17, 1
    %p61 = por %p59, %p60
    %p63 = scmp.ne.s32.totalorder %s48, %s62
    %p64 = scmp.eq.s32.totalorder %s17, 0
    %p65 = por %p63, %p64
    %s66 = ssub.s32 %s11, %s18
    %p67 = scmp.eq.s32.totalorder %s66, 0
    %s69 = sadd.s32 %s68, 1
    %s70 = scalar_select %p67, %s68, %s69
    %p73 = pneg %p67
    %p74 = scmp.eq.s32.totalorder %s11, 1
    %p75 = por %p73, %p74
    %p76 = scmp.ne.s32.totalorder %s68, %s71
    %p77 = scmp.eq.s32.totalorder %s11, 0
    %p78 = por %p76, %p77
    %p79 = scmp.ne.s32.totalorder %s68, %s71
    %p80 = scmp.eq.s32.totalorder %s16, 1
    %p81 = por %p79, %p80
    %p82 = scmp.ne.s32.totalorder %s71, %s72
    %p83 = scmp.eq.s32.totalorder %s16, 0
    %p84 = por %p82, %p83
    %p85 = scmp.ne.s32.totalorder %s71, %s72
    %p86 = scmp.eq.s32.totalorder %s17, 1
    %p87 = por %p85, %p86
    %p89 = scmp.ne.s32.totalorder %s72, %s88
    %p90 = scmp.eq.s32.totalorder %s17, 0
    %p91 = por %p89, %p90
    %s92 = ssub.s32 %s11, %s18
    %p93 = scmp.eq.s32.totalorder %s92, 0
    %s95 = sadd.s32 %s94, 1
    %s96 = scalar_select %p93, %s94, %s95
    %p99 = pneg %p93
    %p100 = scmp.eq.s32.totalorder %s11, 1
    %p101 = por %p99, %p100
    %p102 = scmp.ne.s32.totalorder %s94, %s97
    %p103 = scmp.eq.s32.totalorder %s11, 0
    %p104 = por %p102, %p103
    %p105 = scmp.ne.s32.totalorder %s94, %s97
    %p106 = scmp.eq.s32.totalorder %s16, 1
    %p107 = por %p105, %p106
    %p108 = scmp.ne.s32.totalorder %s97, %s98
    %p109 = scmp.eq.s32.totalorder %s16, 0
    %p110 = por %p108, %p109
    %p111 = scmp.ne.s32.totalorder %s97, %s98
    %p112 = scmp.eq.s32.totalorder %s17, 1
    %p113 = por %p111, %p112
    %p115 = scmp.ne.s32.totalorder %s98, %s114
    %p116 = scmp.eq.s32.totalorder %s17, 0
    %p117 = por %p115, %p116
    %s118 = ssub.s32 %s11, %s18
    %p119 = scmp.eq.s32.totalorder %s118, 0
    %s121 = sadd.s32 %s120, 1
    %s122 = scalar_select %p119, %s120, %s121
    %p125 = pneg %p119
    %p126 = scmp.eq.s32.totalorder %s11, 1
    %p127 = por %p125, %p126
    %p128 = scmp.ne.s32.totalorder %s120, %s123
    %p129 = scmp.eq.s32.totalorder %s11, 0
    %p130 = por %p128, %p129
    %p131 = scmp.ne.s32.totalorder %s120, %s123
    %p132 = scmp.eq.s32.totalorder %s16, 1
    %p133 = por %p131, %p132
    %p134 = scmp.ne.s32.totalorder %s123, %s124
    %p135 = scmp.eq.s32.totalorder %s16, 0
    %p136 = por %p134, %p135
    %p137 = scmp.ne.s32.totalorder %s123, %s124
    %p138 = scmp.eq.s32.totalorder %s17, 1
    %p139 = por %p137, %p138
    %p141 = scmp.ne.s32.totalorder %s124, %s140
    %p142 = scmp.eq.s32.totalorder %s17, 0
    %p143 = por %p141, %p142
    %p144 = scmp.le.s32.totalorder 1, %s11
    %p145 = scmp.lt.s32.totalorder %s11, 3
    %p146 = pnand %p144, %p145
    %p147 = pneg %p146
    // Predicated region
    $region9: #{sep_conv_forward.3} parent=5 // pred_check
      _
    $region10: #{sep_conv_forward.3} parent=5 // pred_check_branch
      %149 = sbr.rel (%p146) target = $region12
    $region11: #{sep_conv_forward.3} parent=5 // pred_region
      %s150 = ssub.s32 %s11, 1
      // Predicated region
      $region13: #{sep_conv_forward.3} parent=11 // pred_check
        %p151 = pneg %p58
      $region14: #{sep_conv_forward.3} parent=11 // pred_check_branch
        %153 = sbr.rel (%p151) target = $region16
      $region15: #{sep_conv_forward.3} parent=11 // pred_region
        _
      $region16: #{sep_conv_forward.3} parent=11 // pred_fallthru
        _
    $region12: #{sep_conv_forward.3} parent=5 // pred_fallthru
      _
    %p154 = scmp.lt.s32.totalorder %s11, 2
    // Predicated region
    $region17: #{sep_conv_forward.3} parent=5 // pred_check
      %p155 = pneg %p154
    $region18: #{sep_conv_forward.3} parent=5 // pred_check_branch
      %157 = sbr.rel (%p155) target = $region20
    $region19: #{sep_conv_forward.3} parent=5 // pred_region
      // Predicated region
      $region21: #{sep_conv_forward.3} parent=19 // pred_check
        %p158 = pneg %p31
      $region22: #{sep_conv_forward.3} parent=19 // pred_check_branch
        %160 = sbr.rel (%p158) target = $region24
      $region23: #{sep_conv_forward.3} parent=19 // pred_region
        %p161 = scmp.lt.s32.totalorder %s11, 1
        %s162 = scalar_select %p161, %s11, 1
        %s163 = smul.addr %s162, 16
        %s164 = smul.addr %s163, 8
        %s165 = scalar_lea.vmem %s0, %s164
      $region24: #{sep_conv_forward.3} parent=19 // pred_fallthru
        _
    $region20: #{sep_conv_forward.3} parent=5 // pred_fallthru
      _
    %p166 = scmp.le.s32.totalorder 1, %s11
    %p167 = scmp.lt.s32.totalorder %s11, 3
    %p168 = pnand %p166, %p167
    %p169 = pneg %p168
    // Predicated region
    $region25: #{sep_conv_forward.3} parent=5 // pred_check
      _
    $region26: #{sep_conv_forward.3} parent=5 // pred_check_branch
      %171 = sbr.rel (%p168) target = $region28
    $region27: #{sep_conv_forward.3} parent=5 // pred_region
      %s172 = ssub.s32 %s11, 1
      %p173 = scmp.lt.s32.totalorder %s16, 1
      %s174 = scalar_select %p173, %s16, 1
      %s175 = smul.addr %s174, 16
      %s176 = smul.addr %s175, 8
      %s177 = scalar_lea.vmem %s0, %s176
      %p178 = pneg %p37
      %p179 = pneg %p34
      %p180 = pneg %p58
      %p181 = pneg %p55
      %p182 = pneg %p84
      %p183 = pneg %p81
      %p184 = scmp.lt.s32.totalorder %s16, 1
      %s185 = scalar_select %p184, %s16, 1
      %s186 = smul.addr %s185, 8
      %s187 = smul.addr %s186, 8
      %s188 = scalar_lea.vmem %s2, %s187
      %p189 = pneg %p110
      %p190 = pneg %p107
      %p191 = scmp.lt.s32.totalorder %s16, 1
      %s192 = scalar_select %p191, %s16, 1
      %s193 = scalar_lea.vmem %s3, %s192
      %p194 = pneg %p136
      %p195 = pneg %p133
      %p196 = scmp.lt.s32.totalorder %s16, 1
      %s197 = scalar_select %p196, %s16, 1
      %s198 = scalar_lea.vmem %s4, %s197
      %p199 = scmp.lt.s32.totalorder %s16, 1
      %s200 = scalar_select %p199, %s16, 1
      %s201 = smul.addr %s200, 16
      %s202 = smul.addr %s201, 8
      %s203 = scalar_lea.vmem %s0, %s202
      %p204 = scmp.lt.s32.totalorder %s16, 1
      %s205 = scalar_select %p204, %s16, 1
      %s206 = smul.addr %s205, 8
      %s207 = smul.addr %s206, 8
      %s208 = scalar_lea.vmem %s2, %s207
      %p209 = scmp.lt.s32.totalorder %s16, 1
      %s210 = scalar_select %p209, %s16, 1
      %s211 = scalar_lea.vmem %s3, %s210
      %p212 = scmp.lt.s32.totalorder %s16, 1
      %s213 = scalar_select %p212, %s16, 1
      %s214 = scalar_lea.vmem %s4, %s213
      %vm215 = vcmask 31744
      %216 = vst.msk [vmem:[#allocation2] sm:$0xff] %vm215, 0.0
      %217 = vst.msk [vmem:[#allocation2 + $0x8] sm:$0xff] %vm215, 0.0
      %218 = vst.msk [vmem:[#allocation2 + $0x90] sm:$0xff] %vm215, 0.0
      %219 = vst.msk [vmem:[#allocation2 + $0x98] sm:$0xff] %vm215, 0.0
      %220 = vst.msk [vmem:[#allocation2 + $0x120] sm:$0xff] %vm215, 0.0
      %221 = vst.msk [vmem:[#allocation2 + $0x128] sm:$0xff] %vm215, 0.0
      %222 = vst.msk [vmem:[#allocation2 + $0x1b0] sm:$0xff] %vm215, 0.0
      %223 = vst.msk [vmem:[#allocation2 + $0x1b8] sm:$0xff] %vm215, 0.0
      %224 = vst.msk [vmem:[#allocation2] sm:$0xff] %vm215, 0.0
      %225 = vst.msk [vmem:[#allocation2 + $0x10] sm:$0xff] %vm215, 0.0
      %226 = vst.msk [vmem:[#allocation2 + $0x20] sm:$0xff] %vm215, 0.0
      %227 = vst.msk [vmem:[#allocation2 + $0x30] sm:$0xff] %vm215, 0.0
      %228 = vst.msk [vmem:[#allocation2 + $0x40] sm:$0xff] %vm215, 0.0
      %229 = vst.msk [vmem:[#allocation2 + $0x50] sm:$0xff] %vm215, 0.0
      %230 = vst.msk [vmem:[#allocation2 + $0x60] sm:$0xff] %vm215, 0.0
      %231 = vst.msk [vmem:[#allocation2 + $0x70] sm:$0xff] %vm215, 0.0
      %232 = vst.msk [vmem:[#allocation2 + $0x80] sm:$0xff] %vm215, 0.0
      %233 = vst.msk [vmem:[#allocation2 + $0x90] sm:$0xff] %vm215, 0.0
      %234 = vst.msk [vmem:[#allocation2 + $0xa0] sm:$0xff] %vm215, 0.0
      %235 = vst.msk [vmem:[#allocation2 + $0xb0] sm:$0xff] %vm215, 0.0
      %236 = vst.msk [vmem:[#allocation2 + $0xc0] sm:$0xff] %vm215, 0.0
      %237 = vst.msk [vmem:[#allocation2 + $0xd0] sm:$0xff] %vm215, 0.0
      %238 = vst.msk [vmem:[#allocation2 + $0xe0] sm:$0xff] %vm215, 0.0
      %239 = vst.msk [vmem:[#allocation2 + $0xf0] sm:$0xff] %vm215, 0.0
      %240 = vst.msk [vmem:[#allocation2 + $0x100] sm:$0xff] %vm215, 0.0
      %241 = vst.msk [vmem:[#allocation2 + $0x110] sm:$0xff] %vm215, 0.0
      %242 = vst.msk [vmem:[#allocation2 + $0x120] sm:$0xff] %vm215, 0.0
      %243 = vst.msk [vmem:[#allocation2 + $0x130] sm:$0xff] %vm215, 0.0
      %244 = vst.msk [vmem:[#allocation2 + $0x140] sm:$0xff] %vm215, 0.0
      %245 = vst.msk [vmem:[#allocation2 + $0x150] sm:$0xff] %vm215, 0.0
      %246 = vst.msk [vmem:[#allocation2 + $0x160] sm:$0xff] %vm215, 0.0
      %247 = vst.msk [vmem:[#allocation2 + $0x170] sm:$0xff] %vm215, 0.0
      %248 = vst.msk [vmem:[#allocation2 + $0x180] sm:$0xff] %vm215, 0.0
      %249 = vst.msk [vmem:[#allocation2 + $0x190] sm:$0xff] %vm215, 0.0
      %250 = vst.msk [vmem:[#allocation2 + $0x1a0] sm:$0xff] %vm215, 0.0
      %251 = vst.msk [vmem:[#allocation2 + $0x1b0] sm:$0xff] %vm215, 0.0
      %252 = vst.msk [vmem:[#allocation2 + $0x1c0] sm:$0xff] %vm215, 0.0
      %253 = vst.msk [vmem:[#allocation2 + $0x1d0] sm:$0xff] %vm215, 0.0
      %254 = vst.msk [vmem:[#allocation2 + $0x1e0] sm:$0xff] %vm215, 0.0
      %255 = vst.msk [vmem:[#allocation2 + $0x1f0] sm:$0xff] %vm215, 0.0
      %256 = vst.msk [vmem:[#allocation2 + $0x200] sm:$0xff] %vm215, 0.0
      %257 = vst.msk [vmem:[#allocation2 + $0x210] sm:$0xff] %vm215, 0.0
      %258 = vst.msk [vmem:[#allocation2 + $0x220] sm:$0xff] %vm215, 0.0
      %259 = vst.msk [vmem:[#allocation2 + $0x230] sm:$0xff] %vm215, 0.0
      %v260 = vld [vmem:[%s203] sm:$0xff]
      %v261 = vld [vmem:[%s203 + $0x8] sm:$0xff]
      %v262 = vld [vmem:[%s203 + $0x10] sm:$0xff]
      %v263 = vld [vmem:[%s203 + $0x18] sm:$0xff]
      %v264 = vld [vmem:[%s203 + $0x20] sm:$0xff]
      %v265 = vld [vmem:[%s203 + $0x28] sm:$0xff]
      %v266 = vld [vmem:[%s203 + $0x30] sm:$0xff]
      %v267 = vld [vmem:[%s203 + $0x38] sm:$0xff]
      %v268 = vld [vmem:[%s203 + $0x40] sm:$0xff]
      %v269 = vld [vmem:[%s203 + $0x48] sm:$0xff]
      %v270 = vld [vmem:[%s203 + $0x50] sm:$0xff]
      %v271 = vld [vmem:[%s203 + $0x58] sm:$0xff]
      %v272 = vld [vmem:[%s203 + $0x60] sm:$0xff]
      %v273 = vld [vmem:[%s203 + $0x68] sm:$0xff]
      %v274 = vld [vmem:[%s203 + $0x70] sm:$0xff]
      %v275 = vld [vmem:[%s203 + $0x78] sm:$0xff]
      %s276 = scalar_lea.vmem [#allocation2], 16
      %277 = vst.msk [vmem:[%s276 + $0x8] sm:$0xff] %vm215, %v260
      %278 = vst.msk [vmem:[%s276 + $0x18] sm:$0xff] %vm215, %v262
      %279 = vst.msk [vmem:[%s276 + $0x28] sm:$0xff] %vm215, %v264
      %280 = vst.msk [vmem:[%s276 + $0x38] sm:$0xff] %vm215, %v266
      %281 = vst.msk [vmem:[%s276 + $0x48] sm:$0xff] %vm215, %v268
      %282 = vst.msk [vmem:[%s276 + $0x58] sm:$0xff] %vm215, %v270
      %283 = vst.msk [vmem:[%s276 + $0x68] sm:$0xff] %vm215, %v272
      %284 = vst.msk [vmem:[%s276 + $0x78] sm:$0xff] %vm215, %v274
      %293 = vrot.lane.b32.xlu0 %v260, 124
      %v294 = vpop.permute.xlu0 %293
      %295 = vrot.lane.b32.xlu0 %v262, 124
      %v296 = vpop.permute.xlu0 %295
      %297 = vrot.lane.b32.xlu0 %v264, 124
      %v298 = vpop.permute.xlu0 %297
      %299 = vrot.lane.b32.xlu0 %v266, 124
      %v300 = vpop.permute.xlu0 %299
      %301 = vrot.lane.b32.xlu0 %v268, 124
      %v302 = vpop.permute.xlu0 %301
      %303 = vrot.lane.b32.xlu0 %v270, 124
      %v304 = vpop.permute.xlu0 %303
      %305 = vrot.lane.b32.xlu0 %v272, 124
      %v306 = vpop.permute.xlu0 %305
      %307 = vrot.lane.b32.xlu0 %v274, 124
      %v308 = vpop.permute.xlu0 %307
      %s317 = scalar_lea.vmem [#allocation2], 160
      %318 = vst.msk [vmem:[%s317 + $0x8] sm:$0xff] %vm215, %v294
      %319 = vst.msk [vmem:[%s317 + $0x18] sm:$0xff] %vm215, %v296
      %320 = vst.msk [vmem:[%s317 + $0x28] sm:$0xff] %vm215, %v298
      %321 = vst.msk [vmem:[%s317 + $0x38] sm:$0xff] %vm215, %v300
      %322 = vst.msk [vmem:[%s317 + $0x48] sm:$0xff] %vm215, %v302
      %323 = vst.msk [vmem:[%s317 + $0x58] sm:$0xff] %vm215, %v304
      %324 = vst.msk [vmem:[%s317 + $0x68] sm:$0xff] %vm215, %v306
      %325 = vst.msk [vmem:[%s317 + $0x78] sm:$0xff] %vm215, %v308
      %s326 = scalar_lea.vmem [#allocation2], 304
      %327 = vst.msk [vmem:[%s326 + $0x8] sm:$0xff] %vm215, %v261
      %328 = vst.msk [vmem:[%s326 + $0x18] sm:$0xff] %vm215, %v263
      %329 = vst.msk [vmem:[%s326 + $0x28] sm:$0xff] %vm215, %v265
      %330 = vst.msk [vmem:[%s326 + $0x38] sm:$0xff] %vm215, %v267
      %331 = vst.msk [vmem:[%s326 + $0x48] sm:$0xff] %vm215, %v269
      %332 = vst.msk [vmem:[%s326 + $0x58] sm:$0xff] %vm215, %v271
      %333 = vst.msk [vmem:[%s326 + $0x68] sm:$0xff] %vm215, %v273
      %334 = vst.msk [vmem:[%s326 + $0x78] sm:$0xff] %vm215, %v275
      %343 = vrot.lane.b32.xlu0 %v261, 124
      %v344 = vpop.permute.xlu0 %343
      %345 = vrot.lane.b32.xlu0 %v263, 124
      %v346 = vpop.permute.xlu0 %345
      %347 = vrot.lane.b32.xlu0 %v265, 124
      %v348 = vpop.permute.xlu0 %347
      %349 = vrot.lane.b32.xlu0 %v267, 124
      %v350 = vpop.permute.xlu0 %349
      %351 = vrot.lane.b32.xlu0 %v269, 124
      %v352 = vpop.permute.xlu0 %351
      %353 = vrot.lane.b32.xlu0 %v271, 124
      %v354 = vpop.permute.xlu0 %353
      %355 = vrot.lane.b32.xlu0 %v273, 124
      %v356 = vpop.permute.xlu0 %355
      %357 = vrot.lane.b32.xlu0 %v275, 124
      %v358 = vpop.permute.xlu0 %357
      %s367 = scalar_lea.vmem [#allocation2], 448
      %368 = vst.msk [vmem:[%s367 + $0x8] sm:$0xff] %vm215, %v344
      %369 = vst.msk [vmem:[%s367 + $0x18] sm:$0xff] %vm215, %v346
      %370 = vst.msk [vmem:[%s367 + $0x28] sm:$0xff] %vm215, %v348
      %371 = vst.msk [vmem:[%s367 + $0x38] sm:$0xff] %vm215, %v350
      %372 = vst.msk [vmem:[%s367 + $0x48] sm:$0xff] %vm215, %v352
      %373 = vst.msk [vmem:[%s367 + $0x58] sm:$0xff] %vm215, %v354
      %374 = vst.msk [vmem:[%s367 + $0x68] sm:$0xff] %vm215, %v356
      %375 = vst.msk [vmem:[%s367 + $0x78] sm:$0xff] %vm215, %v358
      %s376 = scalar_lea.vmem [#allocation2], 432
      %v377 = vld [vmem:[%s376 + $0x7] sm:$0xff]
      %v378 = vld [vmem:[%s376 + $0x17] sm:$0xff]
      %v379 = vld [vmem:[%s376 + $0x27] sm:$0xff]
      %v380 = vld [vmem:[%s376 + $0x37] sm:$0xff]
      %v381 = vld [vmem:[%s376 + $0x47] sm:$0xff]
      %v382 = vld [vmem:[%s376 + $0x57] sm:$0xff]
      %v383 = vld [vmem:[%s376 + $0x67] sm:$0xff]
      %v384 = vld [vmem:[%s376 + $0x77] sm:$0xff]
      %v385 = vld [vmem:[%s1] sm:$0xf]
      %s386 = scalar_lea.vmem [#allocation2], 288
      %v387 = vld [vmem:[%s386 + $0x8] sm:$0xff]
      %v388 = vld [vmem:[%s386 + $0x18] sm:$0xff]
      %v389 = vld [vmem:[%s386 + $0x28] sm:$0xff]
      %v390 = vld [vmem:[%s386 + $0x38] sm:$0xff]
      %v391 = vld [vmem:[%s386 + $0x48] sm:$0xff]
      %v392 = vld [vmem:[%s386 + $0x58] sm:$0xff]
      %v393 = vld [vmem:[%s386 + $0x68] sm:$0xff]
      %v394 = vld [vmem:[%s386 + $0x78] sm:$0xff]
      %s395 = scalar_lea.vmem %s1, 4
      %v396 = vld [vmem:[%s395] sm:$0xf]
      %v398 = vsel %vm215, %v387, 0
      %v401 = vsel %vm215, %v388, 0
      %v404 = vsel %vm215, %v389, 0
      %v407 = vsel %vm215, %v390, 0
      %v410 = vsel %vm215, %v391, 0
      %v413 = vsel %vm215, %v392, 0
      %v416 = vsel %vm215, %v393, 0
      %v419 = vsel %vm215, %v394, 0
      %vm421 = vcmask 1043456
      %v423 = vsel %vm421, %v396, 0
      %425 = vmatpush.msra.mxu0 0.0
      %426 = vmatpush.msra.mxu0 0.0
      %427 = vmatpush.msra.mxu0 0.0
      %428 = vmatpush.msra.mxu0 0.0
      %429 = vmatpush.msra.mxu0 0.0
      %430 = vmatpush.msra.mxu0 0.0
      %431 = vmatpush.msra.mxu0 0.0
      %432 = vmatpush.msra.mxu0 0.0
      %433 = vmatpush.msra.mxu0 0.0
      %434 = vmatpush.msra.mxu0 0.0
      %435 = vmatpush.msra.mxu0 0.0
      %436 = vmatpush.msra.mxu0 0.0
      %437 = vmatpush.msra.mxu0 0.0
      %438 = vmatpush.msra.mxu0 0.0
      %439 = vmatpush.msra.mxu0 0.0
      %440 = vmatpush.msra.mxu0 %v423
      %441 = vmatmul.f32.gmra.mxu0 %v398
      %v442 = vpop.f32.mrf.mxu0
      %v443 = vadd.f32 0.0, %v442
      %444 = vmatmul.f32.gmra.mxu0 %v401
      %v445 = vpop.f32.mrf.mxu0
      %v446 = vadd.f32 0.0, %v445
      %447 = vmatmul.f32.gmra.mxu0 %v404
      %v448 = vpop.f32.mrf.mxu0
      %v449 = vadd.f32 0.0, %v448
      %450 = vmatmul.f32.gmra.mxu0 %v407
      %v451 = vpop.f32.mrf.mxu0
      %v452 = vadd.f32 0.0, %v451
      %453 = vmatmul.f32.gmra.mxu0 %v410
      %v454 = vpop.f32.mrf.mxu0
      %v455 = vadd.f32 0.0, %v454
      %456 = vmatmul.f32.gmra.mxu0 %v413
      %v457 = vpop.f32.mrf.mxu0
      %v458 = vadd.f32 0.0, %v457
      %459 = vmatmul.f32.gmra.mxu0 %v416
      %v460 = vpop.f32.mrf.mxu0
      %v461 = vadd.f32 0.0, %v460
      %462 = vmatmul.f32.gmra.mxu0 %v419
      %v463 = vpop.f32.mrf.mxu0
      %v464 = vadd.f32 0.0, %v463
      %465 = vdwg.mxu0
      %v467 = vsel %vm215, %v377, 0
      %v470 = vsel %vm215, %v378, 0
      %v473 = vsel %vm215, %v379, 0
      %v476 = vsel %vm215, %v380, 0
      %v479 = vsel %vm215, %v381, 0
      %v482 = vsel %vm215, %v382, 0
      %v485 = vsel %vm215, %v383, 0
      %v488 = vsel %vm215, %v384, 0
      %v491 = vsel %vm421, %v385, 0
      %493 = vmatpush.msra.mxu0 0.0
      %494 = vmatpush.msra.mxu0 0.0
      %495 = vmatpush.msra.mxu0 0.0
      %496 = vmatpush.msra.mxu0 0.0
      %497 = vmatpush.msra.mxu0 0.0
      %498 = vmatpush.msra.mxu0 0.0
      %499 = vmatpush.msra.mxu0 0.0
      %500 = vmatpush.msra.mxu0 0.0
      %501 = vmatpush.msra.mxu0 0.0
      %502 = vmatpush.msra.mxu0 0.0
      %503 = vmatpush.msra.mxu0 0.0
      %504 = vmatpush.msra.mxu0 0.0
      %505 = vmatpush.msra.mxu0 0.0
      %506 = vmatpush.msra.mxu0 0.0
      %507 = vmatpush.msra.mxu0 0.0
      %508 = vmatpush.msra.mxu0 %v491
      %509 = vmatmul.f32.gmra.mxu0 %v467
      %v510 = vpop.f32.mrf.mxu0
      %v511 = vadd.f32 %v443, %v510
      %512 = vmatmul.f32.gmra.mxu0 %v470
      %v513 = vpop.f32.mrf.mxu0
      %v514 = vadd.f32 %v446, %v513
      %515 = vmatmul.f32.gmra.mxu0 %v473
      %v516 = vpop.f32.mrf.mxu0
      %v517 = vadd.f32 %v449, %v516
      %518 = vmatmul.f32.gmra.mxu0 %v476
      %v519 = vpop.f32.mrf.mxu0
      %v520 = vadd.f32 %v452, %v519
      %521 = vmatmul.f32.gmra.mxu0 %v479
      %v522 = vpop.f32.mrf.mxu0
      %v523 = vadd.f32 %v455, %v522
      %524 = vmatmul.f32.gmra.mxu0 %v482
      %v525 = vpop.f32.mrf.mxu0
      %v526 = vadd.f32 %v458, %v525
      %527 = vmatmul.f32.gmra.mxu0 %v485
      %v528 = vpop.f32.mrf.mxu0
      %v529 = vadd.f32 %v461, %v528
      %530 = vmatmul.f32.gmra.mxu0 %v488
      %v531 = vpop.f32.mrf.mxu0
      %v532 = vadd.f32 %v464, %v531
      %533 = vdwg.mxu0
      %v534 = vld [vmem:[%s376 + $0x8] sm:$0xff]
      %v535 = vld [vmem:[%s376 + $0x18] sm:$0xff]
      %v536 = vld [vmem:[%s376 + $0x28] sm:$0xff]
      %v537 = vld [vmem:[%s376 + $0x38] sm:$0xff]
      %v538 = vld [vmem:[%s376 + $0x48] sm:$0xff]
      %v539 = vld [vmem:[%s376 + $0x58] sm:$0xff]
      %v540 = vld [vmem:[%s376 + $0x68] sm:$0xff]
      %v541 = vld [vmem:[%s376 + $0x78] sm:$0xff]
      %s542 = scalar_lea.vmem %s1, 8
      %v543 = vld [vmem:[%s542] sm:$0xf]
      %v545 = vsel %vm215, %v534, 0
      %v548 = vsel %vm215, %v535, 0
      %v551 = vsel %vm215, %v536, 0
      %v554 = vsel %vm215, %v537, 0
      %v557 = vsel %vm215, %v538, 0
      %v560 = vsel %vm215, %v539, 0
      %v563 = vsel %vm215, %v540, 0
      %v566 = vsel %vm215, %v541, 0
      %v569 = vsel %vm421, %v543, 0
      %571 = vmatpush.msra.mxu0 0.0
      %572 = vmatpush.msra.mxu0 0.0
      %573 = vmatpush.msra.mxu0 0.0
      %574 = vmatpush.msra.mxu0 0.0
      %575 = vmatpush.msra.mxu0 0.0
      %576 = vmatpush.msra.mxu0 0.0
      %577 = vmatpush.msra.mxu0 0.0
      %578 = vmatpush.msra.mxu0 0.0
      %579 = vmatpush.msra.mxu0 0.0
      %580 = vmatpush.msra.mxu0 0.0
      %581 = vmatpush.msra.mxu0 0.0
      %582 = vmatpush.msra.mxu0 0.0
      %583 = vmatpush.msra.mxu0 0.0
      %584 = vmatpush.msra.mxu0 0.0
      %585 = vmatpush.msra.mxu0 0.0
      %586 = vmatpush.msra.mxu0 %v569
      %587 = vmatmul.f32.gmra.mxu0 %v545
      %v588 = vpop.f32.mrf.mxu0
      %v589 = vadd.f32 0.0, %v588
      %590 = vmatmul.f32.gmra.mxu0 %v548
      %v591 = vpop.f32.mrf.mxu0
      %v592 = vadd.f32 0.0, %v591
      %593 = vmatmul.f32.gmra.mxu0 %v551
      %v594 = vpop.f32.mrf.mxu0
      %v595 = vadd.f32 0.0, %v594
      %596 = vmatmul.f32.gmra.mxu0 %v554
      %v597 = vpop.f32.mrf.mxu0
      %v598 = vadd.f32 0.0, %v597
      %599 = vmatmul.f32.gmra.mxu0 %v557
      %v600 = vpop.f32.mrf.mxu0
      %v601 = vadd.f32 0.0, %v600
      %602 = vmatmul.f32.gmra.mxu0 %v560
      %v603 = vpop.f32.mrf.mxu0
      %v604 = vadd.f32 0.0, %v603
      %605 = vmatmul.f32.gmra.mxu0 %v563
      %v606 = vpop.f32.mrf.mxu0
      %v607 = vadd.f32 0.0, %v606
      %608 = vmatmul.f32.gmra.mxu0 %v566
      %v609 = vpop.f32.mrf.mxu0
      %v610 = vadd.f32 0.0, %v609
      %611 = vdwg.mxu0
      %v612 = vadd.f32 %v511, %v589
      %v613 = vadd.f32 %v514, %v592
      %v614 = vadd.f32 %v517, %v595
      %v615 = vadd.f32 %v520, %v598
      %v616 = vadd.f32 %v523, %v601
      %v617 = vadd.f32 %v526, %v604
      %v618 = vadd.f32 %v529, %v607
      %v619 = vadd.f32 %v532, %v610
      %v620 = vld [vmem:[%s317 + $0x7] sm:$0xff]
      %v621 = vld [vmem:[%s317 + $0x17] sm:$0xff]
      %v622 = vld [vmem:[%s317 + $0x27] sm:$0xff]
      %v623 = vld [vmem:[%s317 + $0x37] sm:$0xff]
      %v624 = vld [vmem:[%s317 + $0x47] sm:$0xff]
      %v625 = vld [vmem:[%s317 + $0x57] sm:$0xff]
      %v626 = vld [vmem:[%s317 + $0x67] sm:$0xff]
      %v627 = vld [vmem:[%s317 + $0x77] sm:$0xff]
      %s628 = scalar_lea.vmem %s1, 12
      %v629 = vld [vmem:[%s628] sm:$0xf]
      %v631 = vsel %vm215, %v620, 0
      %v634 = vsel %vm215, %v621, 0
      %v637 = vsel %vm215, %v622, 0
      %v640 = vsel %vm215, %v623, 0
      %v643 = vsel %vm215, %v624, 0
      %v646 = vsel %vm215, %v625, 0
      %v649 = vsel %vm215, %v626, 0
      %v652 = vsel %vm215, %v627, 0
      %v655 = vsel %vm421, %v629, 0
      %657 = vmatpush.msra.mxu0 0.0
      %658 = vmatpush.msra.mxu0 0.0
      %659 = vmatpush.msra.mxu0 0.0
      %660 = vmatpush.msra.mxu0 0.0
      %661 = vmatpush.msra.mxu0 0.0
      %662 = vmatpush.msra.mxu0 0.0
      %663 = vmatpush.msra.mxu0 0.0
      %664 = vmatpush.msra.mxu0 0.0
      %665 = vmatpush.msra.mxu0 0.0
      %666 = vmatpush.msra.mxu0 0.0
      %667 = vmatpush.msra.mxu0 0.0
      %668 = vmatpush.msra.mxu0 0.0
      %669 = vmatpush.msra.mxu0 0.0
      %670 = vmatpush.msra.mxu0 0.0
      %671 = vmatpush.msra.mxu0 0.0
      %672 = vmatpush.msra.mxu0 %v655
      %673 = vmatmul.f32.gmra.mxu0 %v631
      %v674 = vpop.f32.mrf.mxu0
      %v675 = vadd.f32 0.0, %v674
      %676 = vmatmul.f32.gmra.mxu0 %v634
      %v677 = vpop.f32.mrf.mxu0
      %v678 = vadd.f32 0.0, %v677
      %679 = vmatmul.f32.gmra.mxu0 %v637
      %v680 = vpop.f32.mrf.mxu0
      %v681 = vadd.f32 0.0, %v680
      %682 = vmatmul.f32.gmra.mxu0 %v640
      %v683 = vpop.f32.mrf.mxu0
      %v684 = vadd.f32 0.0, %v683
      %685 = vmatmul.f32.gmra.mxu0 %v643
      %v686 = vpop.f32.mrf.mxu0
      %v687 = vadd.f32 0.0, %v686
      %688 = vmatmul.f32.gmra.mxu0 %v646
      %v689 = vpop.f32.mrf.mxu0
      %v690 = vadd.f32 0.0, %v689
      %691 = vmatmul.f32.gmra.mxu0 %v649
      %v692 = vpop.f32.mrf.mxu0
      %v693 = vadd.f32 0.0, %v692
      %694 = vmatmul.f32.gmra.mxu0 %v652
      %v695 = vpop.f32.mrf.mxu0
      %v696 = vadd.f32 0.0, %v695
      %697 = vdwg.mxu0
      %v698 = vadd.f32 %v612, %v675
      %v699 = vadd.f32 %v613, %v678
      %v700 = vadd.f32 %v614, %v681
      %v701 = vadd.f32 %v615, %v684
      %v702 = vadd.f32 %v616, %v687
      %v703 = vadd.f32 %v617, %v690
      %v704 = vadd.f32 %v618, %v693
      %v705 = vadd.f32 %v619, %v696
      %v706 = vld [vmem:[%s276 + $0x8] sm:$0xff]
      %v707 = vld [vmem:[%s276 + $0x18] sm:$0xff]
      %v708 = vld [vmem:[%s276 + $0x28] sm:$0xff]
      %v709 = vld [vmem:[%s276 + $0x38] sm:$0xff]
      %v710 = vld [vmem:[%s276 + $0x48] sm:$0xff]
      %v711 = vld [vmem:[%s276 + $0x58] sm:$0xff]
      %v712 = vld [vmem:[%s276 + $0x68] sm:$0xff]
      %v713 = vld [vmem:[%s276 + $0x78] sm:$0xff]
      %s714 = scalar_lea.vmem %s1, 16
      %v715 = vld [vmem:[%s714] sm:$0xf]
      %v717 = vsel %vm215, %v706, 0
      %v720 = vsel %vm215, %v707, 0
      %v723 = vsel %vm215, %v708, 0
      %v726 = vsel %vm215, %v709, 0
      %v729 = vsel %vm215, %v710, 0
      %v732 = vsel %vm215, %v711, 0
      %v735 = vsel %vm215, %v712, 0
      %v738 = vsel %vm215, %v713, 0
      %v741 = vsel %vm421, %v715, 0
      %743 = vmatpush.msra.mxu0 0.0
      %744 = vmatpush.msra.mxu0 0.0
      %745 = vmatpush.msra.mxu0 0.0
      %746 = vmatpush.msra.mxu0 0.0
      %747 = vmatpush.msra.mxu0 0.0
      %748 = vmatpush.msra.mxu0 0.0
      %749 = vmatpush.msra.mxu0 0.0
      %750 = vmatpush.msra.mxu0 0.0
      %751 = vmatpush.msra.mxu0 0.0
      %752 = vmatpush.msra.mxu0 0.0
      %753 = vmatpush.msra.mxu0 0.0
      %754 = vmatpush.msra.mxu0 0.0
      %755 = vmatpush.msra.mxu0 0.0
      %756 = vmatpush.msra.mxu0 0.0
      %757 = vmatpush.msra.mxu0 0.0
      %758 = vmatpush.msra.mxu0 %v741
      %759 = vmatmul.f32.gmra.mxu0 %v717
      %v760 = vpop.f32.mrf.mxu0
      %v761 = vadd.f32 0.0, %v760
      %762 = vmatmul.f32.gmra.mxu0 %v720
      %v763 = vpop.f32.mrf.mxu0
      %v764 = vadd.f32 0.0, %v763
      %765 = vmatmul.f32.gmra.mxu0 %v723
      %v766 = vpop.f32.mrf.mxu0
      %v767 = vadd.f32 0.0, %v766
      %768 = vmatmul.f32.gmra.mxu0 %v726
      %v769 = vpop.f32.mrf.mxu0
      %v770 = vadd.f32 0.0, %v769
      %771 = vmatmul.f32.gmra.mxu0 %v729
      %v772 = vpop.f32.mrf.mxu0
      %v773 = vadd.f32 0.0, %v772
      %774 = vmatmul.f32.gmra.mxu0 %v732
      %v775 = vpop.f32.mrf.mxu0
      %v776 = vadd.f32 0.0, %v775
      %777 = vmatmul.f32.gmra.mxu0 %v735
      %v778 = vpop.f32.mrf.mxu0
      %v779 = vadd.f32 0.0, %v778
      %780 = vmatmul.f32.gmra.mxu0 %v738
      %v781 = vpop.f32.mrf.mxu0
      %v782 = vadd.f32 0.0, %v781
      %783 = vdwg.mxu0
      %v784 = vadd.f32 %v698, %v761
      %v785 = vadd.f32 %v699, %v764
      %v786 = vadd.f32 %v700, %v767
      %v787 = vadd.f32 %v701, %v770
      %v788 = vadd.f32 %v702, %v773
      %v789 = vadd.f32 %v703, %v776
      %v790 = vadd.f32 %v704, %v779
      %v791 = vadd.f32 %v705, %v782
      %v792 = vld [vmem:[%s317 + $0x8] sm:$0xff]
      %v793 = vld [vmem:[%s317 + $0x18] sm:$0xff]
      %v794 = vld [vmem:[%s317 + $0x28] sm:$0xff]
      %v795 = vld [vmem:[%s317 + $0x38] sm:$0xff]
      %v796 = vld [vmem:[%s317 + $0x48] sm:$0xff]
      %v797 = vld [vmem:[%s317 + $0x58] sm:$0xff]
      %v798 = vld [vmem:[%s317 + $0x68] sm:$0xff]
      %v799 = vld [vmem:[%s317 + $0x78] sm:$0xff]
      %s800 = scalar_lea.vmem %s1, 20
      %v801 = vld [vmem:[%s800] sm:$0xf]
      %v803 = vsel %vm215, %v792, 0
      %v806 = vsel %vm215, %v793, 0
      %v809 = vsel %vm215, %v794, 0
      %v812 = vsel %vm215, %v795, 0
      %v815 = vsel %vm215, %v796, 0
      %v818 = vsel %vm215, %v797, 0
      %v821 = vsel %vm215, %v798, 0
      %v824 = vsel %vm215, %v799, 0
      %v827 = vsel %vm421, %v801, 0
      %829 = vmatpush.msra.mxu0 0.0
      %830 = vmatpush.msra.mxu0 0.0
      %831 = vmatpush.msra.mxu0 0.0
      %832 = vmatpush.msra.mxu0 0.0
      %833 = vmatpush.msra.mxu0 0.0
      %834 = vmatpush.msra.mxu0 0.0
      %835 = vmatpush.msra.mxu0 0.0
      %836 = vmatpush.msra.mxu0 0.0
      %837 = vmatpush.msra.mxu0 0.0
      %838 = vmatpush.msra.mxu0 0.0
      %839 = vmatpush.msra.mxu0 0.0
      %840 = vmatpush.msra.mxu0 0.0
      %841 = vmatpush.msra.mxu0 0.0
      %842 = vmatpush.msra.mxu0 0.0
      %843 = vmatpush.msra.mxu0 0.0
      %844 = vmatpush.msra.mxu0 %v827
      %845 = vmatmul.f32.gmra.mxu0 %v803
      %v846 = vpop.f32.mrf.mxu0
      %v847 = vadd.f32 0.0, %v846
      %848 = vmatmul.f32.gmra.mxu0 %v806
      %v849 = vpop.f32.mrf.mxu0
      %v850 = vadd.f32 0.0, %v849
      %851 = vmatmul.f32.gmra.mxu0 %v809
      %v852 = vpop.f32.mrf.mxu0
      %v853 = vadd.f32 0.0, %v852
      %854 = vmatmul.f32.gmra.mxu0 %v812
      %v855 = vpop.f32.mrf.mxu0
      %v856 = vadd.f32 0.0, %v855
      %857 = vmatmul.f32.gmra.mxu0 %v815
      %v858 = vpop.f32.mrf.mxu0
      %v859 = vadd.f32 0.0, %v858
      %860 = vmatmul.f32.gmra.mxu0 %v818
      %v861 = vpop.f32.mrf.mxu0
      %v862 = vadd.f32 0.0, %v861
      %863 = vmatmul.f32.gmra.mxu0 %v821
      %v864 = vpop.f32.mrf.mxu0
      %v865 = vadd.f32 0.0, %v864
      %866 = vmatmul.f32.gmra.mxu0 %v824
      %v867 = vpop.f32.mrf.mxu0
      %v868 = vadd.f32 0.0, %v867
      %869 = vdwg.mxu0
      %v870 = vadd.f32 %v784, %v847
      %v871 = vadd.f32 %v785, %v850
      %v872 = vadd.f32 %v786, %v853
      %v873 = vadd.f32 %v787, %v856
      %v874 = vadd.f32 %v788, %v859
      %v875 = vadd.f32 %v789, %v862
      %v876 = vadd.f32 %v790, %v865
      %v877 = vadd.f32 %v791, %v868
      %v878 = vld [vmem:[%s367 + $0x7] sm:$0xff]
      %v879 = vld [vmem:[%s367 + $0x17] sm:$0xff]
      %v880 = vld [vmem:[%s367 + $0x27] sm:$0xff]
      %v881 = vld [vmem:[%s367 + $0x37] sm:$0xff]
      %v882 = vld [vmem:[%s367 + $0x47] sm:$0xff]
      %v883 = vld [vmem:[%s367 + $0x57] sm:$0xff]
      %v884 = vld [vmem:[%s367 + $0x67] sm:$0xff]
      %v885 = vld [vmem:[%s367 + $0x77] sm:$0xff]
      %s886 = scalar_lea.vmem %s1, 24
      %v887 = vld [vmem:[%s886] sm:$0xf]
      %v889 = vsel %vm215, %v878, 0
      %v892 = vsel %vm215, %v879, 0
      %v895 = vsel %vm215, %v880, 0
      %v898 = vsel %vm215, %v881, 0
      %v901 = vsel %vm215, %v882, 0
      %v904 = vsel %vm215, %v883, 0
      %v907 = vsel %vm215, %v884, 0
      %v910 = vsel %vm215, %v885, 0
      %v913 = vsel %vm421, %v887, 0
      %915 = vmatpush.msra.mxu0 0.0
      %916 = vmatpush.msra.mxu0 0.0
      %917 = vmatpush.msra.mxu0 0.0
      %918 = vmatpush.msra.mxu0 0.0
      %919 = vmatpush.msra.mxu0 0.0
      %920 = vmatpush.msra.mxu0 0.0
      %921 = vmatpush.msra.mxu0 0.0
      %922 = vmatpush.msra.mxu0 0.0
      %923 = vmatpush.msra.mxu0 0.0
      %924 = vmatpush.msra.mxu0 0.0
      %925 = vmatpush.msra.mxu0 0.0
      %926 = vmatpush.msra.mxu0 0.0
      %927 = vmatpush.msra.mxu0 0.0
      %928 = vmatpush.msra.mxu0 0.0
      %929 = vmatpush.msra.mxu0 0.0
      %930 = vmatpush.msra.mxu0 %v913
      %931 = vmatmul.f32.gmra.mxu0 %v889
      %v932 = vpop.f32.mrf.mxu0
      %v933 = vadd.f32 0.0, %v932
      %934 = vmatmul.f32.gmra.mxu0 %v892
      %v935 = vpop.f32.mrf.mxu0
      %v936 = vadd.f32 0.0, %v935
      %937 = vmatmul.f32.gmra.mxu0 %v895
      %v938 = vpop.f32.mrf.mxu0
      %v939 = vadd.f32 0.0, %v938
      %940 = vmatmul.f32.gmra.mxu0 %v898
      %v941 = vpop.f32.mrf.mxu0
      %v942 = vadd.f32 0.0, %v941
      %943 = vmatmul.f32.gmra.mxu0 %v901
      %v944 = vpop.f32.mrf.mxu0
      %v945 = vadd.f32 0.0, %v944
      %946 = vmatmul.f32.gmra.mxu0 %v904
      %v947 = vpop.f32.mrf.mxu0
      %v948 = vadd.f32 0.0, %v947
      %949 = vmatmul.f32.gmra.mxu0 %v907
      %v950 = vpop.f32.mrf.mxu0
      %v951 = vadd.f32 0.0, %v950
      %952 = vmatmul.f32.gmra.mxu0 %v910
      %v953 = vpop.f32.mrf.mxu0
      %v954 = vadd.f32 0.0, %v953
      %955 = vdwg.mxu0
      %v956 = vadd.f32 %v870, %v933
      %v957 = vadd.f32 %v871, %v936
      %v958 = vadd.f32 %v872, %v939
      %v959 = vadd.f32 %v873, %v942
      %v960 = vadd.f32 %v874, %v945
      %v961 = vadd.f32 %v875, %v948
      %v962 = vadd.f32 %v876, %v951
      %v963 = vadd.f32 %v877, %v954
      %v964 = vld [vmem:[%s326 + $0x8] sm:$0xff]
      %v965 = vld [vmem:[%s326 + $0x18] sm:$0xff]
      %v966 = vld [vmem:[%s326 + $0x28] sm:$0xff]
      %v967 = vld [vmem:[%s326 + $0x38] sm:$0xff]
      %v968 = vld [vmem:[%s326 + $0x48] sm:$0xff]
      %v969 = vld [vmem:[%s326 + $0x58] sm:$0xff]
      %v970 = vld [vmem:[%s326 + $0x68] sm:$0xff]
      %v971 = vld [vmem:[%s326 + $0x78] sm:$0xff]
      %s972 = scalar_lea.vmem %s1, 28
      %v973 = vld [vmem:[%s972] sm:$0xf]
      %v975 = vsel %vm215, %v964, 0
      %v978 = vsel %vm215, %v965, 0
      %v981 = vsel %vm215, %v966, 0
      %v984 = vsel %vm215, %v967, 0
      %v987 = vsel %vm215, %v968, 0
      %v990 = vsel %vm215, %v969, 0
      %v993 = vsel %vm215, %v970, 0
      %v996 = vsel %vm215, %v971, 0
      %v999 = vsel %vm421, %v973, 0
      %1001 = vmatpush.msra.mxu0 0.0
      %1002 = vmatpush.msra.mxu0 0.0
      %1003 = vmatpush.msra.mxu0 0.0
      %1004 = vmatpush.msra.mxu0 0.0
      %1005 = vmatpush.msra.mxu0 0.0
      %1006 = vmatpush.msra.mxu0 0.0
      %1007 = vmatpush.msra.mxu0 0.0
      %1008 = vmatpush.msra.mxu0 0.0
      %1009 = vmatpush.msra.mxu0 0.0
      %1010 = vmatpush.msra.mxu0 0.0
      %1011 = vmatpush.msra.mxu0 0.0
      %1012 = vmatpush.msra.mxu0 0.0
      %1013 = vmatpush.msra.mxu0 0.0
      %1014 = vmatpush.msra.mxu0 0.0
      %1015 = vmatpush.msra.mxu0 0.0
      %1016 = vmatpush.msra.mxu0 %v999
      %1017 = vmatmul.f32.gmra.mxu0 %v975
      %v1018 = vpop.f32.mrf.mxu0
      %v1019 = vadd.f32 0.0, %v1018
      %1020 = vmatmul.f32.gmra.mxu0 %v978
      %v1021 = vpop.f32.mrf.mxu0
      %v1022 = vadd.f32 0.0, %v1021
      %1023 = vmatmul.f32.gmra.mxu0 %v981
      %v1024 = vpop.f32.mrf.mxu0
      %v1025 = vadd.f32 0.0, %v1024
      %1026 = vmatmul.f32.gmra.mxu0 %v984
      %v1027 = vpop.f32.mrf.mxu0
      %v1028 = vadd.f32 0.0, %v1027
      %1029 = vmatmul.f32.gmra.mxu0 %v987
      %v1030 = vpop.f32.mrf.mxu0
      %v1031 = vadd.f32 0.0, %v1030
      %1032 = vmatmul.f32.gmra.mxu0 %v990
      %v1033 = vpop.f32.mrf.mxu0
      %v1034 = vadd.f32 0.0, %v1033
      %1035 = vmatmul.f32.gmra.mxu0 %v993
      %v1036 = vpop.f32.mrf.mxu0
      %v1037 = vadd.f32 0.0, %v1036
      %1038 = vmatmul.f32.gmra.mxu0 %v996
      %v1039 = vpop.f32.mrf.mxu0
      %v1040 = vadd.f32 0.0, %v1039
      %1041 = vdwg.mxu0
      %v1042 = vadd.f32 %v956, %v1019
      %v1043 = vadd.f32 %v957, %v1022
      %v1044 = vadd.f32 %v958, %v1025
      %v1045 = vadd.f32 %v959, %v1028
      %v1046 = vadd.f32 %v960, %v1031
      %v1047 = vadd.f32 %v961, %v1034
      %v1048 = vadd.f32 %v962, %v1037
      %v1049 = vadd.f32 %v963, %v1040
      %v1050 = vld [vmem:[%s367 + $0x8] sm:$0xff]
      %v1051 = vld [vmem:[%s367 + $0x18] sm:$0xff]
      %v1052 = vld [vmem:[%s367 + $0x28] sm:$0xff]
      %v1053 = vld [vmem:[%s367 + $0x38] sm:$0xff]
      %v1054 = vld [vmem:[%s367 + $0x48] sm:$0xff]
      %v1055 = vld [vmem:[%s367 + $0x58] sm:$0xff]
      %v1056 = vld [vmem:[%s367 + $0x68] sm:$0xff]
      %v1057 = vld [vmem:[%s367 + $0x78] sm:$0xff]
      %s1058 = scalar_lea.vmem %s1, 32
      %v1059 = vld [vmem:[%s1058] sm:$0xf]
      %v1061 = vsel %vm215, %v1050, 0
      %v1064 = vsel %vm215, %v1051, 0
      %v1067 = vsel %vm215, %v1052, 0
      %v1070 = vsel %vm215, %v1053, 0
      %v1073 = vsel %vm215, %v1054, 0
      %v1076 = vsel %vm215, %v1055, 0
      %v1079 = vsel %vm215, %v1056, 0
      %v1082 = vsel %vm215, %v1057, 0
      %v1085 = vsel %vm421, %v1059, 0
      %1087 = vmatpush.msra.mxu0 0.0
      %1088 = vmatpush.msra.mxu0 0.0
      %1089 = vmatpush.msra.mxu0 0.0
      %1090 = vmatpush.msra.mxu0 0.0
      %1091 = vmatpush.msra.mxu0 0.0
      %1092 = vmatpush.msra.mxu0 0.0
      %1093 = vmatpush.msra.mxu0 0.0
      %1094 = vmatpush.msra.mxu0 0.0
      %1095 = vmatpush.msra.mxu0 0.0
      %1096 = vmatpush.msra.mxu0 0.0
      %1097 = vmatpush.msra.mxu0 0.0
      %1098 = vmatpush.msra.mxu0 0.0
      %1099 = vmatpush.msra.mxu0 0.0
      %1100 = vmatpush.msra.mxu0 0.0
      %1101 = vmatpush.msra.mxu0 0.0
      %1102 = vmatpush.msra.mxu0 %v1085
      %1103 = vmatmul.f32.gmra.mxu0 %v1061
      %v1104 = vpop.f32.mrf.mxu0
      %v1105 = vadd.f32 0.0, %v1104
      %1106 = vmatmul.f32.gmra.mxu0 %v1064
      %v1107 = vpop.f32.mrf.mxu0
      %v1108 = vadd.f32 0.0, %v1107
      %1109 = vmatmul.f32.gmra.mxu0 %v1067
      %v1110 = vpop.f32.mrf.mxu0
      %v1111 = vadd.f32 0.0, %v1110
      %1112 = vmatmul.f32.gmra.mxu0 %v1070
      %v1113 = vpop.f32.mrf.mxu0
      %v1114 = vadd.f32 0.0, %v1113
      %1115 = vmatmul.f32.gmra.mxu0 %v1073
      %v1116 = vpop.f32.mrf.mxu0
      %v1117 = vadd.f32 0.0, %v1116
      %1118 = vmatmul.f32.gmra.mxu0 %v1076
      %v1119 = vpop.f32.mrf.mxu0
      %v1120 = vadd.f32 0.0, %v1119
      %1121 = vmatmul.f32.gmra.mxu0 %v1079
      %v1122 = vpop.f32.mrf.mxu0
      %v1123 = vadd.f32 0.0, %v1122
      %1124 = vmatmul.f32.gmra.mxu0 %v1082
      %v1125 = vpop.f32.mrf.mxu0
      %v1126 = vadd.f32 0.0, %v1125
      %1127 = vdwg.mxu0
      %v1128 = vadd.f32 %v1042, %v1105
      %v1129 = vadd.f32 %v1043, %v1108
      %v1130 = vadd.f32 %v1044, %v1111
      %v1131 = vadd.f32 %v1045, %v1114
      %v1132 = vadd.f32 %v1046, %v1117
      %v1133 = vadd.f32 %v1047, %v1120
      %v1134 = vadd.f32 %v1048, %v1123
      %v1135 = vadd.f32 %v1049, %v1126
      %1136 = vst.msk [vmem:[%s208] sm:$0xff] %vm215, %v1128
      %1137 = vst.msk [vmem:[%s208 + $0x8] sm:$0xff] %vm215, %v1129
      %1138 = vst.msk [vmem:[%s208 + $0x10] sm:$0xff] %vm215, %v1130
      %1139 = vst.msk [vmem:[%s208 + $0x18] sm:$0xff] %vm215, %v1131
      %1140 = vst.msk [vmem:[%s208 + $0x20] sm:$0xff] %vm215, %v1132
      %1141 = vst.msk [vmem:[%s208 + $0x28] sm:$0xff] %vm215, %v1133
      %1142 = vst.msk [vmem:[%s208 + $0x30] sm:$0xff] %vm215, %v1134
      %1143 = vst.msk [vmem:[%s208 + $0x38] sm:$0xff] %vm215, %v1135
      %v1144 = vsel %vm215, %v1128, 0.0
      %v1145 = vsel %vm215, %v1129, 0.0
      %v1146 = vadd.f32 %v1144, %v1145
      %v1147 = vsel %vm215, %v1130, 0.0
      %v1148 = vadd.f32 %v1146, %v1147
      %v1149 = vsel %vm215, %v1131, 0.0
      %v1150 = vadd.f32 %v1148, %v1149
      %v1151 = vsel %vm215, %v1132, 0.0
      %v1152 = vadd.f32 %v1150, %v1151
      %v1153 = vsel %vm215, %v1133, 0.0
      %v1154 = vadd.f32 %v1152, %v1153
      %v1155 = vsel %vm215, %v1134, 0.0
      %v1156 = vadd.f32 %v1154, %v1155
      %v1157 = vsel %vm215, %v1135, 0.0
      %v1158 = vadd.f32 %v1156, %v1157
      %v1159 = vrot.slane %v1158, 4
      %v1160 = vadd.f32 %v1158, %v1159
      %v1161 = vrot.slane %v1160, 2
      %v1162 = vadd.f32 %v1160, %v1161
      %v1163 = vrot.slane %v1162, 1
      %v1164 = vadd.f32 %v1162, %v1163
      %vm1165 = vcmask 24576
      %1166 = vst.msk [vmem:[%s211] sm:$0x1] %vm1165, %v1164
      %v1167 = vmul.f32 %v1128, %v1128
      %v1168 = vmul.f32 %v1129, %v1129
      %v1169 = vmul.f32 %v1130, %v1130
      %v1170 = vmul.f32 %v1131, %v1131
      %v1171 = vmul.f32 %v1132, %v1132
      %v1172 = vmul.f32 %v1133, %v1133
      %v1173 = vmul.f32 %v1134, %v1134
      %v1174 = vmul.f32 %v1135, %v1135
      %v1175 = vsel %vm215, %v1167, 0.0
      %v1176 = vsel %vm215, %v1168, 0.0
      %v1177 = vadd.f32 %v1175, %v1176
      %v1178 = vsel %vm215, %v1169, 0.0
      %v1179 = vadd.f32 %v1177, %v1178
      %v1180 = vsel %vm215, %v1170, 0.0
      %v1181 = vadd.f32 %v1179, %v1180
      %v1182 = vsel %vm215, %v1171, 0.0
      %v1183 = vadd.f32 %v1181, %v1182
      %v1184 = vsel %vm215, %v1172, 0.0
      %v1185 = vadd.f32 %v1183, %v1184
      %v1186 = vsel %vm215, %v1173, 0.0
      %v1187 = vadd.f32 %v1185, %v1186
      %v1188 = vsel %vm215, %v1174, 0.0
      %v1189 = vadd.f32 %v1187, %v1188
      %v1190 = vrot.slane %v1189, 4
      %v1191 = vadd.f32 %v1189, %v1190
      %v1192 = vrot.slane %v1191, 2
      %v1193 = vadd.f32 %v1191, %v1192
      %v1194 = vrot.slane %v1193, 1
      %v1195 = vadd.f32 %v1193, %v1194
      %1196 = vst.msk [vmem:[%s214] sm:$0x1] %vm1165, %v1195
      %p1197 = scmp.lt.s32.totalorder %s16, 1
      %s1198 = scalar_select %p1197, %s16, 1
      %s1199 = smul.addr %s1198, 8
      %s1200 = smul.addr %s1199, 8
      %s1201 = scalar_lea.vmem %s2, %s1200
      %p1202 = scmp.lt.s32.totalorder %s16, 1
      %s1203 = scalar_select %p1202, %s16, 1
      %s1204 = scalar_lea.vmem %s3, %s1203
      %p1205 = scmp.lt.s32.totalorder %s16, 1
      %s1206 = scalar_select %p1205, %s16, 1
      %s1207 = scalar_lea.vmem %s4, %s1206
      // Predicated region
      $region29: #{sep_conv_forward.3} parent=27 // pred_check
        %p1208 = pneg %p81
      $region30: #{sep_conv_forward.3} parent=27 // pred_check_branch
        %1210 = sbr.rel (%p1208) target = $region32
      $region31: #{sep_conv_forward.3} parent=27 // pred_region
        _
      $region32: #{sep_conv_forward.3} parent=27 // pred_fallthru
        _
      // Predicated region
      $region33: #{sep_conv_forward.3} parent=27 // pred_check
        %p1211 = pneg %p107
      $region34: #{sep_conv_forward.3} parent=27 // pred_check_branch
        %1213 = sbr.rel (%p1211) target = $region36
      $region35: #{sep_conv_forward.3} parent=27 // pred_region
        _
      $region36: #{sep_conv_forward.3} parent=27 // pred_fallthru
        _
      // Predicated region
      $region37: #{sep_conv_forward.3} parent=27 // pred_check
        %p1214 = pneg %p133
      $region38: #{sep_conv_forward.3} parent=27 // pred_check_branch
        %1216 = sbr.rel (%p1214) target = $region40
      $region39: #{sep_conv_forward.3} parent=27 // pred_region
        _
      $region40: #{sep_conv_forward.3} parent=27 // pred_fallthru
        _
    $region28: #{sep_conv_forward.3} parent=5 // pred_fallthru
      _
    %p1217 = scmp.le.s32.totalorder 2, %s11
    // Predicated region
    $region41: #{sep_conv_forward.3} parent=5 // pred_check
      %p1218 = pneg %p1217
    $region42: #{sep_conv_forward.3} parent=5 // pred_check_branch
      %1220 = sbr.rel (%p1218) target = $region44
    $region43: #{sep_conv_forward.3} parent=5 // pred_region
      %s1221 = ssub.s32 %s11, 2
      // Predicated region
      $region45: #{sep_conv_forward.3} parent=43 // pred_check
        %p1222 = pneg %p87
      $region46: #{sep_conv_forward.3} parent=43 // pred_check_branch
        %1224 = sbr.rel (%p1222) target = $region48
      $region47: #{sep_conv_forward.3} parent=43 // pred_region
        %p1225 = scmp.lt.s32.totalorder %s17, 1
        %s1226 = scalar_select %p1225, %s17, 1
        %s1227 = smul.addr %s1226, 8
        %s1228 = smul.addr %s1227, 8
        %s1229 = scalar_lea.vmem %s2, %s1228
      $region48: #{sep_conv_forward.3} parent=43 // pred_fallthru
        _
      // Predicated region
      $region49: #{sep_conv_forward.3} parent=43 // pred_check
        %p1230 = pneg %p113
      $region50: #{sep_conv_forward.3} parent=43 // pred_check_branch
        %1232 = sbr.rel (%p1230) target = $region52
      $region51: #{sep_conv_forward.3} parent=43 // pred_region
        %p1233 = scmp.lt.s32.totalorder %s17, 1
        %s1234 = scalar_select %p1233, %s17, 1
        %s1235 = scalar_lea.vmem %s3, %s1234
      $region52: #{sep_conv_forward.3} parent=43 // pred_fallthru
        _
      // Predicated region
      $region53: #{sep_conv_forward.3} parent=43 // pred_check
        %p1236 = pneg %p139
      $region54: #{sep_conv_forward.3} parent=43 // pred_check_branch
        %1238 = sbr.rel (%p1236) target = $region56
      $region55: #{sep_conv_forward.3} parent=43 // pred_region
        %p1239 = scmp.lt.s32.totalorder %s17, 1
        %s1240 = scalar_select %p1239, %s17, 1
        %s1241 = scalar_lea.vmem %s4, %s1240
      $region56: #{sep_conv_forward.3} parent=43 // pred_fallthru
        _
    $region44: #{sep_conv_forward.3} parent=5 // pred_fallthru
      _
  $region6: #{sep_conv_forward.3} parent=0 // loop_footer
    %s15 = sadd.s32 1, %s11
  $region7: #{sep_conv_forward.3} parent=0 // loop_footer_branch
    %10 = sbr.rel target = $region3
  $region8: #{sep_conv_forward.3} parent=0 // loop_exit
    _

</llo_original>
